<compile_context>
chip_gen: v6e
topology: v6e:2x2x1
jax: 0.10.0
libtpu: 0.0.40
codegen_flags: <defaults>
</compile_context>

<pallas_src>
import functools

import jax
import jax.numpy as jnp
from jax.experimental import pallas as pl
from jax.experimental.pallas import tpu as pltpu

MAX_YR_LEN = 128   # number of ages/years in the probability table
MONTHS = 12


def _gather_annual_rows(idx_ref, tbl_ref, dst_ref, *, batch, yr, unroll):
    """Gather `batch` age-shifted annual rows into dst_ref[(batch, yr)].

    idx_ref : (Np,) int32 scalar-prefetch array in SMEM, packed start*2 + sex.
    tbl_ref : (2, 2*yr) decremented annual prob table, zero right half.
    dst_ref : (batch, yr) VMEM destination (staging scratch or output block).
    """
    i = pl.program_id(0)
    n = 2 * yr
    row0 = tbl_ref[0:1, :]        # (1, 2*yr)  sex 0 -- hoisted out of the loop
    row1 = tbl_ref[1:2, :]        # (1, 2*yr)  sex 1

    def body(b, carry):
        p = idx_ref[i * batch + b]          # SMEM scalar read (packed index)
        sex = p & 1
        st = p >> 1                         # window start, in [0, yr]
        row = jnp.where(sex == 0, row0, row1)
        # dst[j] = row[j + st]; dynamic lane rotation runs on the XLU slot.
        shifted = pltpu.roll(row, (n - st) % n, axis=1)
        dst_ref[pl.ds(b, 1), :] = shifted[:, :yr]
        return carry

    jax.lax.fori_loop(0, batch, body, 0, unroll=unroll)


def _prob_kernel_monthly(idx_ref, tbl_ref, exp_ref, out_ref, stage_ref,
                         *, batch, yr, unroll):
    _gather_annual_rows(idx_ref, tbl_ref, stage_ref,
                        batch=batch, yr=yr, unroll=unroll)
    # 12x monthly expansion on the MXU: stage (B, Y) @ one-hot (Y, 12Y).
    # HIGHEST precision keeps the f32 values exact through the one-hot matmul.
    out_ref[...] = jnp.dot(stage_ref[...], exp_ref[...],
                           preferred_element_type=jnp.float32,
                           precision=jax.lax.Precision.HIGHEST)


def _prob_kernel_annual(idx_ref, tbl_ref, out_ref, *, batch, yr, unroll):
    _gather_annual_rows(idx_ref, tbl_ref, out_ref,
                        batch=batch, yr=yr, unroll=unroll)


def probability_forward(mp_idx, mp_val, qx, kx=None, annual=False, *, batch=256):
    """Pallas equivalent of Probability.forward(mp_idx, mp_val, annual)."""
    del mp_val                          # unused by Probability.forward
    n_sex, Y = qx.shape
    assert n_sex == 2
    N = mp_idx.shape[0]
    months = 1 if annual else MONTHS
    W = Y * months                      # output row length (lane axis)

    qx = qx.astype(jnp.float32)
    kxx = jnp.zeros_like(qx) if kx is None else kx.astype(jnp.float32)

    # ---- decremented table at annual granularity (setup hoisted out) ----
    rate = qx if annual else jnp.expm1(jnp.log1p(qx) / 12.0)
    dec = rate * (1.0 - kxx)                         # (2, Y)
    tbl = jnp.pad(dec, ((0, 0), (0, Y)))             # (2, 2Y) zero right half

    sex = mp_idx[:, 0].astype(jnp.int32)
    age = mp_idx[:, 1].astype(jnp.int32)
    # Clamp: any age >= Y yields an all-zero row (same as time_slice overflow).
    # TODO(synk): negative ages are clamped to 0 rather than mimicking torch
    # negative-index behavior; validate inputs upstream.
    start = jnp.clip(age, 0, Y).astype(jnp.int32)    # annual start in [0, Y]
    packed = start * 2 + sex                         # one int32/point in SMEM
    # TODO(synk): for portfolios beyond ~2e5 points, stream the packed indices
    # per block via DMA instead of whole-array scalar prefetch (SMEM limit).

    # ---- per-step batch B (amortize ~0.35us per-step pipeline overhead) ----
    B = max(8, 8 * ((int(batch) + 7) // 8))          # sublane-aligned
    B = min(B, 512)                                  # VMEM headroom (v5e/v7x)
    while B > 8 and (N + B - 1) // B < 4:            # keep >=4 grid steps (v7x)
        B = max(8, 8 * (((B // 2) + 7) // 8))
    pad = (-N) % B
    if pad:
        packed = jnp.concatenate(
            [packed, jnp.full((pad,), 2 * Y, jnp.int32)])   # zero-row points
    Np = N + pad
    unroll = min(8, B)

    if annual:
        kernel = functools.partial(_prob_kernel_annual,
                                   batch=B, yr=Y, unroll=unroll)
        in_specs = [pl.BlockSpec((2, 2 * Y), lambda i, idx: (0, 0))]
        operands = (packed, tbl)
        scratch = []
    else:
        # One-hot expansion matrix E[y, t] = 1 iff t // 12 == y  -> (Y, 12Y).
        expand = (jnp.arange(W, dtype=jnp.int32)[None, :] // months
                  == jnp.arange(Y, dtype=jnp.int32)[:, None]).astype(jnp.float32)
        kernel = functools.partial(_prob_kernel_monthly,
                                   batch=B, yr=Y, unroll=unroll)
        in_specs = [pl.BlockSpec((2, 2 * Y), lambda i, idx: (0, 0)),
                    pl.BlockSpec((Y, W), lambda i, idx: (0, 0))]
        operands = (packed, tbl, expand)
        scratch = [pltpu.VMEM((B, Y), jnp.float32)]

    out = pl.pallas_call(
        kernel,
        out_shape=jax.ShapeDtypeStruct((Np, W), jnp.float32),
        grid_spec=pltpu.PrefetchScalarGridSpec(
            num_scalar_prefetch=1,            # packed sex/start lives in SMEM
            grid=(Np // B,),
            in_specs=in_specs,
            out_specs=pl.BlockSpec((B, W), lambda i, idx: (i, 0)),
            scratch_shapes=scratch),
        compiler_params=pltpu.CompilerParams(
            dimension_semantics=("parallel",)),   # no cross-step state
    )(*operands)

    return out[:N]


def probability_forward_ref(mp_idx, qx, kx, annual=False):
    """Pure-JAX reference reproducing the torch forward (time_slice fill 0.0)."""
    sex = mp_idx[:, 0]
    age = mp_idx[:, 1]
    qx = qx.astype(jnp.float32)
    kx = jnp.zeros_like(qx) if kx is None else kx.astype(jnp.float32)
    if annual:
        px, kxx = qx, kx
    else:
        px = jnp.repeat(jnp.expm1(jnp.log1p(qx) / 12.0), 12, axis=1)
        kxx = jnp.repeat(kx, 12, axis=1)
    px = px * (1.0 - kxx)
    idx = age if annual else age * 12
    px = px[sex]                                  # index_select(0, sex)
    T = px.shape[1]
    t = jnp.arange(T)
    gidx = idx[:, None] + t[None, :]
    valid = gidx < T
    gathered = jnp.take_along_axis(px, jnp.where(valid, gidx, 0), axis=1)
    return jnp.where(valid, gathered, 0.0)        # time_slice(px, idx, 0.0)


if __name__ == "__main__":
    key = jax.random.PRNGKey(0)
    k1, k2, k3, k4, k5 = jax.random.split(key, 5)

    # Synthetic parameters (module __init__: qx/kx of shape (2, MAX_YR_LEN)).
    qx = jax.random.uniform(k1, (2, MAX_YR_LEN), jnp.float32, 0.0, 0.1)
    kx = jax.random.uniform(k2, (2, MAX_YR_LEN), jnp.float32, 0.0, 0.5)

    # Model points: column 0 = sex (0/1), column 1 = age (some past table end).
    N = 37                               # odd -> exercises padding + multi-step grid
    sex_col = jax.random.randint(k3, (N,), 0, 2, jnp.int32)
    age_col = jax.random.randint(k4, (N,), 0, 140, jnp.int32)
    extra = jnp.zeros((N, 2), jnp.int32)
    mp_idx = jnp.concatenate(
        [sex_col[:, None], age_col[:, None], extra], axis=1)        # (N, 4)
    mp_val = jax.random.uniform(k5, (N, 4), jnp.float32)            # unused

    # Monthly (default) path.
    out_m = jax.block_until_ready(
        probability_forward(mp_idx, mp_val, qx, kx, annual=False))
    ref_m = probability_forward_ref(mp_idx, qx, kx, annual=False)
    assert out_m.shape == (N, MAX_YR_LEN * 12), out_m.shape
    assert jnp.allclose(out_m, ref_m, rtol=1e-5, atol=1e-6), float(
        jnp.max(jnp.abs(out_m - ref_m)))

    # Annual path.
    out_a = jax.block_until_ready(
        probability_forward(mp_idx, mp_val, qx, kx, annual=True))
    ref_a = probability_forward_ref(mp_idx, qx, kx, annual=True)
    assert out_a.shape == (N, MAX_YR_LEN), out_a.shape
    assert jnp.allclose(out_a, ref_a, rtol=1e-5, atol=1e-6), float(
        jnp.max(jnp.abs(out_a - ref_a)))

    # kx = None path (Probability with no kx parameter).
    out_n = jax.block_until_ready(
        probability_forward(mp_idx, mp_val, qx, None, annual=False))
    ref_n = probability_forward_ref(mp_idx, qx, None, annual=False)
    assert jnp.allclose(out_n, ref_n, rtol=1e-5, atol=1e-6), float(
        jnp.max(jnp.abs(out_n - ref_n)))

    # TODO(synk): SelectedProbability's sele_layer multiply is not modeled here
    # (no concrete selection-factor layer given); this covers Probability.forward.
    print("KERNEL_OK")
</pallas_src>

<mosaic_0001>
module attributes {stable_mosaic.version = 11 : i64} {
  func.func @_prob_kernel_monthly(%arg0: i32, %arg1: memref<40xi32, #tpu.memory_space<smem>>, %arg2: memref<2x256xf32, #tpu.memory_space<vmem>>, %arg3: memref<128x1536xf32, #tpu.memory_space<vmem>>, %arg4: memref<8x1536xf32, #tpu.memory_space<vmem>>, %arg5: memref<8x128xf32, #tpu.memory_space<vmem>>) attributes {dimension_semantics = [#tpu.dimension_semantics<parallel>], iteration_bounds = array<i64: 5>, scalar_prefetch = 1 : i64, scratch_operands = 1 : i64, tpu.core_type = #tpu.core_type<tc>, window_params = [{pipeline_mode = #tpu.pipeline_mode<synchronous>, transform_indices = @transform_0, window_bounds = array<i64: 2, 256>}, {pipeline_mode = #tpu.pipeline_mode<synchronous>, transform_indices = @transform_1, window_bounds = array<i64: 128, 1536>}, {transform_indices = @transform_2, window_bounds = array<i64: 8, 1536>}]} {
    %c0 = arith.constant 0 : index
    %c0_0 = arith.constant 0 : index
    %0 = vector.load %arg2[%c0, %c0_0] : memref<2x256xf32, #tpu.memory_space<vmem>>, vector<1x256xf32>
    %c1 = arith.constant 1 : index
    %c0_1 = arith.constant 0 : index
    %1 = vector.load %arg2[%c1, %c0_1] : memref<2x256xf32, #tpu.memory_space<vmem>>, vector<1x256xf32>
    %c0_i32 = arith.constant 0 : i32
    %c8_i32 = arith.constant 8 : i32
    %2 = arith.muli %arg0, %c8_i32 : i32
    %3 = arith.addi %2, %c0_i32 : i32
    %4 = arith.index_cast %3 : i32 to index
    %5 = memref.load %arg1[%4] : memref<40xi32, #tpu.memory_space<smem>>
    %c1_i32 = arith.constant 1 : i32
    %6 = arith.andi %5, %c1_i32 : i32
    %c1_i32_2 = arith.constant 1 : i32
    %7 = arith.shrsi %5, %c1_i32_2 : i32
    %c0_i32_3 = arith.constant 0 : i32
    %8 = arith.cmpi eq, %6, %c0_i32_3 : i32
    %9 = arith.select %8, %0, %1 : vector<1x256xf32>
    %c256_i32 = arith.constant 256 : i32
    %10 = arith.subi %c256_i32, %7 : i32
    %c256_i32_4 = arith.constant 256 : i32
    %c0_i32_5 = arith.constant 0 : i32
    %11 = arith.cmpi eq, %c256_i32_4, %c0_i32_5 : i32
    %c1_i32_6 = arith.constant 1 : i32
    %12 = arith.select %11, %c1_i32_6, %c256_i32_4 : i32
    %13 = arith.remsi %10, %12 : i32
    %c0_i32_7 = arith.constant 0 : i32
    %14 = arith.cmpi ne, %13, %c0_i32_7 : i32
    %c0_i32_8 = arith.constant 0 : i32
    %15 = arith.cmpi slt, %13, %c0_i32_8 : i32
    %c0_i32_9 = arith.constant 0 : i32
    %16 = arith.cmpi slt, %12, %c0_i32_9 : i32
    %17 = arith.xori %15, %16 : i1
    %18 = arith.andi %17, %14 : i1
    %19 = arith.addi %13, %12 : i32
    %20 = arith.select %18, %19, %13 : i32
    %21 = tpu.dynamic_rotate %9 by %20 dim 1 : vector<1x256xf32>, i32 -> vector<1x256xf32>
    %22 = vector.extract_strided_slice %21 {offsets = [0, 0], sizes = [1, 128], strides = [1, 1]} : vector<1x256xf32> to vector<1x128xf32>
    %23 = arith.index_cast %c0_i32 : i32 to index
    %c0_10 = arith.constant 0 : index
    %24 = vector.load %arg5[%23, %c0_10] : memref<8x128xf32, #tpu.memory_space<vmem>>, vector<1x128xf32>
    tpu.vector_store %arg5[%23, %c0_10], %22 {strides = array<i32>} : memref<8x128xf32, #tpu.memory_space<vmem>>, vector<1x128xf32>,
    %c1_i32_11 = arith.constant 1 : i32
    %c8_i32_12 = arith.constant 8 : i32
    %25 = arith.muli %arg0, %c8_i32_12 : i32
    %26 = arith.addi %25, %c1_i32_11 : i32
    %27 = arith.index_cast %26 : i32 to index
    %28 = memref.load %arg1[%27] : memref<40xi32, #tpu.memory_space<smem>>
    %c1_i32_13 = arith.constant 1 : i32
    %29 = arith.andi %28, %c1_i32_13 : i32
    %c1_i32_14 = arith.constant 1 : i32
    %30 = arith.shrsi %28, %c1_i32_14 : i32
    %c0_i32_15 = arith.constant 0 : i32
    %31 = arith.cmpi eq, %29, %c0_i32_15 : i32
    %32 = arith.select %31, %0, %1 : vector<1x256xf32>
    %c256_i32_16 = arith.constant 256 : i32
    %33 = arith.subi %c256_i32_16, %30 : i32
    %c256_i32_17 = arith.constant 256 : i32
    %c0_i32_18 = arith.constant 0 : i32
    %34 = arith.cmpi eq, %c256_i32_17, %c0_i32_18 : i32
    %c1_i32_19 = arith.constant 1 : i32
    %35 = arith.select %34, %c1_i32_19, %c256_i32_17 : i32
    %36 = arith.remsi %33, %35 : i32
    %c0_i32_20 = arith.constant 0 : i32
    %37 = arith.cmpi ne, %36, %c0_i32_20 : i32
    %c0_i32_21 = arith.constant 0 : i32
    %38 = arith.cmpi slt, %36, %c0_i32_21 : i32
    %c0_i32_22 = arith.constant 0 : i32
    %39 = arith.cmpi slt, %35, %c0_i32_22 : i32
    %40 = arith.xori %38, %39 : i1
    %41 = arith.andi %40, %37 : i1
    %42 = arith.addi %36, %35 : i32
    %43 = arith.select %41, %42, %36 : i32
    %44 = tpu.dynamic_rotate %32 by %43 dim 1 : vector<1x256xf32>, i32 -> vector<1x256xf32>
    %45 = vector.extract_strided_slice %44 {offsets = [0, 0], sizes = [1, 128], strides = [1, 1]} : vector<1x256xf32> to vector<1x128xf32>
    %46 = arith.index_cast %c1_i32_11 : i32 to index
    %c0_23 = arith.constant 0 : index
    %47 = vector.load %arg5[%46, %c0_23] : memref<8x128xf32, #tpu.memory_space<vmem>>, vector<1x128xf32>
    tpu.vector_store %arg5[%46, %c0_23], %45 {strides = array<i32>} : memref<8x128xf32, #tpu.memory_space<vmem>>, vector<1x128xf32>,
    %c2_i32 = arith.constant 2 : i32
    %c8_i32_24 = arith.constant 8 : i32
    %48 = arith.muli %arg0, %c8_i32_24 : i32
    %49 = arith.addi %48, %c2_i32 : i32
    %50 = arith.index_cast %49 : i32 to index
    %51 = memref.load %arg1[%50] : memref<40xi32, #tpu.memory_space<smem>>
    %c1_i32_25 = arith.constant 1 : i32
    %52 = arith.andi %51, %c1_i32_25 : i32
    %c1_i32_26 = arith.constant 1 : i32
    %53 = arith.shrsi %51, %c1_i32_26 : i32
    %c0_i32_27 = arith.constant 0 : i32
    %54 = arith.cmpi eq, %52, %c0_i32_27 : i32
    %55 = arith.select %54, %0, %1 : vector<1x256xf32>
    %c256_i32_28 = arith.constant 256 : i32
    %56 = arith.subi %c256_i32_28, %53 : i32
    %c256_i32_29 = arith.constant 256 : i32
    %c0_i32_30 = arith.constant 0 : i32
    %57 = arith.cmpi eq, %c256_i32_29, %c0_i32_30 : i32
    %c1_i32_31 = arith.constant 1 : i32
    %58 = arith.select %57, %c1_i32_31, %c256_i32_29 : i32
    %59 = arith.remsi %56, %58 : i32
    %c0_i32_32 = arith.constant 0 : i32
    %60 = arith.cmpi ne, %59, %c0_i32_32 : i32
    %c0_i32_33 = arith.constant 0 : i32
    %61 = arith.cmpi slt, %59, %c0_i32_33 : i32
    %c0_i32_34 = arith.constant 0 : i32
    %62 = arith.cmpi slt, %58, %c0_i32_34 : i32
    %63 = arith.xori %61, %62 : i1
    %64 = arith.andi %63, %60 : i1
    %65 = arith.addi %59, %58 : i32
    %66 = arith.select %64, %65, %59 : i32
    %67 = tpu.dynamic_rotate %55 by %66 dim 1 : vector<1x256xf32>, i32 -> vector<1x256xf32>
    %68 = vector.extract_strided_slice %67 {offsets = [0, 0], sizes = [1, 128], strides = [1, 1]} : vector<1x256xf32> to vector<1x128xf32>
    %69 = arith.index_cast %c2_i32 : i32 to index
    %c0_35 = arith.constant 0 : index
    %70 = vector.load %arg5[%69, %c0_35] : memref<8x128xf32, #tpu.memory_space<vmem>>, vector<1x128xf32>
    tpu.vector_store %arg5[%69, %c0_35], %68 {strides = array<i32>} : memref<8x128xf32, #tpu.memory_space<vmem>>, vector<1x128xf32>,
    %c3_i32 = arith.constant 3 : i32
    %c8_i32_36 = arith.constant 8 : i32
    %71 = arith.muli %arg0, %c8_i32_36 : i32
    %72 = arith.addi %71, %c3_i32 : i32
    %73 = arith.index_cast %72 : i32 to index
    %74 = memref.load %arg1[%73] : memref<40xi32, #tpu.memory_space<smem>>
    %c1_i32_37 = arith.constant 1 : i32
    %75 = arith.andi %74, %c1_i32_37 : i32
    %c1_i32_38 = arith.constant 1 : i32
    %76 = arith.shrsi %74, %c1_i32_38 : i32
    %c0_i32_39 = arith.constant 0 : i32
    %77 = arith.cmpi eq, %75, %c0_i32_39 : i32
    %78 = arith.select %77, %0, %1 : vector<1x256xf32>
    %c256_i32_40 = arith.constant 256 : i32
    %79 = arith.subi %c256_i32_40, %76 : i32
    %c256_i32_41 = arith.constant 256 : i32
    %c0_i32_42 = arith.constant 0 : i32
    %80 = arith.cmpi eq, %c256_i32_41, %c0_i32_42 : i32
    %c1_i32_43 = arith.constant 1 : i32
    %81 = arith.select %80, %c1_i32_43, %c256_i32_41 : i32
    %82 = arith.remsi %79, %81 : i32
    %c0_i32_44 = arith.constant 0 : i32
    %83 = arith.cmpi ne, %82, %c0_i32_44 : i32
    %c0_i32_45 = arith.constant 0 : i32
    %84 = arith.cmpi slt, %82, %c0_i32_45 : i32
    %c0_i32_46 = arith.constant 0 : i32
    %85 = arith.cmpi slt, %81, %c0_i32_46 : i32
    %86 = arith.xori %84, %85 : i1
    %87 = arith.andi %86, %83 : i1
    %88 = arith.addi %82, %81 : i32
    %89 = arith.select %87, %88, %82 : i32
    %90 = tpu.dynamic_rotate %78 by %89 dim 1 : vector<1x256xf32>, i32 -> vector<1x256xf32>
    %91 = vector.extract_strided_slice %90 {offsets = [0, 0], sizes = [1, 128], strides = [1, 1]} : vector<1x256xf32> to vector<1x128xf32>
    %92 = arith.index_cast %c3_i32 : i32 to index
    %c0_47 = arith.constant 0 : index
    %93 = vector.load %arg5[%92, %c0_47] : memref<8x128xf32, #tpu.memory_space<vmem>>, vector<1x128xf32>
    tpu.vector_store %arg5[%92, %c0_47], %91 {strides = array<i32>} : memref<8x128xf32, #tpu.memory_space<vmem>>, vector<1x128xf32>,
    %c4_i32 = arith.constant 4 : i32
    %c8_i32_48 = arith.constant 8 : i32
    %94 = arith.muli %arg0, %c8_i32_48 : i32
    %95 = arith.addi %94, %c4_i32 : i32
    %96 = arith.index_cast %95 : i32 to index
    %97 = memref.load %arg1[%96] : memref<40xi32, #tpu.memory_space<smem>>
    %c1_i32_49 = arith.constant 1 : i32
    %98 = arith.andi %97, %c1_i32_49 : i32
    %c1_i32_50 = arith.constant 1 : i32
    %99 = arith.shrsi %97, %c1_i32_50 : i32
    %c0_i32_51 = arith.constant 0 : i32
    %100 = arith.cmpi eq, %98, %c0_i32_51 : i32
    %101 = arith.select %100, %0, %1 : vector<1x256xf32>
    %c256_i32_52 = arith.constant 256 : i32
    %102 = arith.subi %c256_i32_52, %99 : i32
    %c256_i32_53 = arith.constant 256 : i32
    %c0_i32_54 = arith.constant 0 : i32
    %103 = arith.cmpi eq, %c256_i32_53, %c0_i32_54 : i32
    %c1_i32_55 = arith.constant 1 : i32
    %104 = arith.select %103, %c1_i32_55, %c256_i32_53 : i32
    %105 = arith.remsi %102, %104 : i32
    %c0_i32_56 = arith.constant 0 : i32
    %106 = arith.cmpi ne, %105, %c0_i32_56 : i32
    %c0_i32_57 = arith.constant 0 : i32
    %107 = arith.cmpi slt, %105, %c0_i32_57 : i32
    %c0_i32_58 = arith.constant 0 : i32
    %108 = arith.cmpi slt, %104, %c0_i32_58 : i32
    %109 = arith.xori %107, %108 : i1
    %110 = arith.andi %109, %106 : i1
    %111 = arith.addi %105, %104 : i32
    %112 = arith.select %110, %111, %105 : i32
    %113 = tpu.dynamic_rotate %101 by %112 dim 1 : vector<1x256xf32>, i32 -> vector<1x256xf32>
    %114 = vector.extract_strided_slice %113 {offsets = [0, 0], sizes = [1, 128], strides = [1, 1]} : vector<1x256xf32> to vector<1x128xf32>
    %115 = arith.index_cast %c4_i32 : i32 to index
    %c0_59 = arith.constant 0 : index
    %116 = vector.load %arg5[%115, %c0_59] : memref<8x128xf32, #tpu.memory_space<vmem>>, vector<1x128xf32>
    tpu.vector_store %arg5[%115, %c0_59], %114 {strides = array<i32>} : memref<8x128xf32, #tpu.memory_space<vmem>>, vector<1x128xf32>,
    %c5_i32 = arith.constant 5 : i32
    %c8_i32_60 = arith.constant 8 : i32
    %117 = arith.muli %arg0, %c8_i32_60 : i32
    %118 = arith.addi %117, %c5_i32 : i32
    %119 = arith.index_cast %118 : i32 to index
    %120 = memref.load %arg1[%119] : memref<40xi32, #tpu.memory_space<smem>>
    %c1_i32_61 = arith.constant 1 : i32
    %121 = arith.andi %120, %c1_i32_61 : i32
    %c1_i32_62 = arith.constant 1 : i32
    %122 = arith.shrsi %120, %c1_i32_62 : i32
    %c0_i32_63 = arith.constant 0 : i32
    %123 = arith.cmpi eq, %121, %c0_i32_63 : i32
    %124 = arith.select %123, %0, %1 : vector<1x256xf32>
    %c256_i32_64 = arith.constant 256 : i32
    %125 = arith.subi %c256_i32_64, %122 : i32
    %c256_i32_65 = arith.constant 256 : i32
    %c0_i32_66 = arith.constant 0 : i32
    %126 = arith.cmpi eq, %c256_i32_65, %c0_i32_66 : i32
    %c1_i32_67 = arith.constant 1 : i32
    %127 = arith.select %126, %c1_i32_67, %c256_i32_65 : i32
    %128 = arith.remsi %125, %127 : i32
    %c0_i32_68 = arith.constant 0 : i32
    %129 = arith.cmpi ne, %128, %c0_i32_68 : i32
    %c0_i32_69 = arith.constant 0 : i32
    %130 = arith.cmpi slt, %128, %c0_i32_69 : i32
    %c0_i32_70 = arith.constant 0 : i32
    %131 = arith.cmpi slt, %127, %c0_i32_70 : i32
    %132 = arith.xori %130, %131 : i1
    %133 = arith.andi %132, %129 : i1
    %134 = arith.addi %128, %127 : i32
    %135 = arith.select %133, %134, %128 : i32
    %136 = tpu.dynamic_rotate %124 by %135 dim 1 : vector<1x256xf32>, i32 -> vector<1x256xf32>
    %137 = vector.extract_strided_slice %136 {offsets = [0, 0], sizes = [1, 128], strides = [1, 1]} : vector<1x256xf32> to vector<1x128xf32>
    %138 = arith.index_cast %c5_i32 : i32 to index
    %c0_71 = arith.constant 0 : index
    %139 = vector.load %arg5[%138, %c0_71] : memref<8x128xf32, #tpu.memory_space<vmem>>, vector<1x128xf32>
    tpu.vector_store %arg5[%138, %c0_71], %137 {strides = array<i32>} : memref<8x128xf32, #tpu.memory_space<vmem>>, vector<1x128xf32>,
    %c6_i32 = arith.constant 6 : i32
    %c8_i32_72 = arith.constant 8 : i32
    %140 = arith.muli %arg0, %c8_i32_72 : i32
    %141 = arith.addi %140, %c6_i32 : i32
    %142 = arith.index_cast %141 : i32 to index
    %143 = memref.load %arg1[%142] : memref<40xi32, #tpu.memory_space<smem>>
    %c1_i32_73 = arith.constant 1 : i32
    %144 = arith.andi %143, %c1_i32_73 : i32
    %c1_i32_74 = arith.constant 1 : i32
    %145 = arith.shrsi %143, %c1_i32_74 : i32
    %c0_i32_75 = arith.constant 0 : i32
    %146 = arith.cmpi eq, %144, %c0_i32_75 : i32
    %147 = arith.select %146, %0, %1 : vector<1x256xf32>
    %c256_i32_76 = arith.constant 256 : i32
    %148 = arith.subi %c256_i32_76, %145 : i32
    %c256_i32_77 = arith.constant 256 : i32
    %c0_i32_78 = arith.constant 0 : i32
    %149 = arith.cmpi eq, %c256_i32_77, %c0_i32_78 : i32
    %c1_i32_79 = arith.constant 1 : i32
    %150 = arith.select %149, %c1_i32_79, %c256_i32_77 : i32
    %151 = arith.remsi %148, %150 : i32
    %c0_i32_80 = arith.constant 0 : i32
    %152 = arith.cmpi ne, %151, %c0_i32_80 : i32
    %c0_i32_81 = arith.constant 0 : i32
    %153 = arith.cmpi slt, %151, %c0_i32_81 : i32
    %c0_i32_82 = arith.constant 0 : i32
    %154 = arith.cmpi slt, %150, %c0_i32_82 : i32
    %155 = arith.xori %153, %154 : i1
    %156 = arith.andi %155, %152 : i1
    %157 = arith.addi %151, %150 : i32
    %158 = arith.select %156, %157, %151 : i32
    %159 = tpu.dynamic_rotate %147 by %158 dim 1 : vector<1x256xf32>, i32 -> vector<1x256xf32>
    %160 = vector.extract_strided_slice %159 {offsets = [0, 0], sizes = [1, 128], strides = [1, 1]} : vector<1x256xf32> to vector<1x128xf32>
    %161 = arith.index_cast %c6_i32 : i32 to index
    %c0_83 = arith.constant 0 : index
    %162 = vector.load %arg5[%161, %c0_83] : memref<8x128xf32, #tpu.memory_space<vmem>>, vector<1x128xf32>
    tpu.vector_store %arg5[%161, %c0_83], %160 {strides = array<i32>} : memref<8x128xf32, #tpu.memory_space<vmem>>, vector<1x128xf32>,
    %c7_i32 = arith.constant 7 : i32
    %c8_i32_84 = arith.constant 8 : i32
    %163 = arith.muli %arg0, %c8_i32_84 : i32
    %164 = arith.addi %163, %c7_i32 : i32
    %165 = arith.index_cast %164 : i32 to index
    %166 = memref.load %arg1[%165] : memref<40xi32, #tpu.memory_space<smem>>
    %c1_i32_85 = arith.constant 1 : i32
    %167 = arith.andi %166, %c1_i32_85 : i32
    %c1_i32_86 = arith.constant 1 : i32
    %168 = arith.shrsi %166, %c1_i32_86 : i32
    %c0_i32_87 = arith.constant 0 : i32
    %169 = arith.cmpi eq, %167, %c0_i32_87 : i32
    %170 = arith.select %169, %0, %1 : vector<1x256xf32>
    %c256_i32_88 = arith.constant 256 : i32
    %171 = arith.subi %c256_i32_88, %168 : i32
    %c256_i32_89 = arith.constant 256 : i32
    %c0_i32_90 = arith.constant 0 : i32
    %172 = arith.cmpi eq, %c256_i32_89, %c0_i32_90 : i32
    %c1_i32_91 = arith.constant 1 : i32
    %173 = arith.select %172, %c1_i32_91, %c256_i32_89 : i32
    %174 = arith.remsi %171, %173 : i32
    %c0_i32_92 = arith.constant 0 : i32
    %175 = arith.cmpi ne, %174, %c0_i32_92 : i32
    %c0_i32_93 = arith.constant 0 : i32
    %176 = arith.cmpi slt, %174, %c0_i32_93 : i32
    %c0_i32_94 = arith.constant 0 : i32
    %177 = arith.cmpi slt, %173, %c0_i32_94 : i32
    %178 = arith.xori %176, %177 : i1
    %179 = arith.andi %178, %175 : i1
    %180 = arith.addi %174, %173 : i32
    %181 = arith.select %179, %180, %174 : i32
    %182 = tpu.dynamic_rotate %170 by %181 dim 1 : vector<1x256xf32>, i32 -> vector<1x256xf32>
    %183 = vector.extract_strided_slice %182 {offsets = [0, 0], sizes = [1, 128], strides = [1, 1]} : vector<1x256xf32> to vector<1x128xf32>
    %184 = arith.index_cast %c7_i32 : i32 to index
    %c0_95 = arith.constant 0 : index
    %185 = vector.load %arg5[%184, %c0_95] : memref<8x128xf32, #tpu.memory_space<vmem>>, vector<1x128xf32>
    tpu.vector_store %arg5[%184, %c0_95], %183 {strides = array<i32>} : memref<8x128xf32, #tpu.memory_space<vmem>>, vector<1x128xf32>,
    %c8_i32_96 = arith.constant 8 : i32
    %c0_97 = arith.constant 0 : index
    %c0_98 = arith.constant 0 : index
    %186 = vector.load %arg5[%c0_97, %c0_98] : memref<8x128xf32, #tpu.memory_space<vmem>>, vector<8x128xf32>
    %c0_99 = arith.constant 0 : index
    %c0_100 = arith.constant 0 : index
    %187 = vector.load %arg3[%c0_99, %c0_100] : memref<128x1536xf32, #tpu.memory_space<vmem>>, vector<128x1536xf32>
    %cst = arith.constant dense<0.000000e+00> : vector<8x1536xf32>
    %188 = tpu.matmul %186, %187, %cst {dimension_numbers = #tpu.dot_dimension_numbers<[1], [0], [0], [1], [0, 0, 1, 1], [], []>, precision = #tpu.contract_precision<fp32>} : vector<8x128xf32>, vector<128x1536xf32>, vector<8x1536xf32> -> vector<8x1536xf32>
    %c0_101 = arith.constant 0 : index
    %c0_102 = arith.constant 0 : index
    %189 = vector.load %arg4[%c0_101, %c0_102] : memref<8x1536xf32, #tpu.memory_space<vmem>>, vector<8x1536xf32>
    tpu.vector_store %arg4[%c0_101, %c0_102], %188 {strides = array<i32>} : memref<8x1536xf32, #tpu.memory_space<vmem>>, vector<8x1536xf32>,
    return
  }
  func.func @transform_0(%arg0: i32, %arg1: memref<40xi32, #tpu.memory_space<smem>>) -> (i32, i32) {
    %c0_i32 = arith.constant 0 : i32
    %c0_i32_0 = arith.constant 0 : i32
    %c0_i32_1 = arith.constant 0 : i32
    return %c0_i32, %c0_i32_0 : i32, i32
  }
  func.func @transform_1(%arg0: i32, %arg1: memref<40xi32, #tpu.memory_space<smem>>) -> (i32, i32) {
    %c0_i32 = arith.constant 0 : i32
    %c0_i32_0 = arith.constant 0 : i32
    %c0_i32_1 = arith.constant 0 : i32
    return %c0_i32, %c0_i32_0 : i32, i32
  }
  func.func @transform_2(%arg0: i32, %arg1: memref<40xi32, #tpu.memory_space<smem>>) -> (i32, i32) {
    %c0_i32 = arith.constant 0 : i32
    %c0_i32_0 = arith.constant 0 : i32
    return %arg0, %c0_i32 : i32, i32
  }
}

</mosaic_0001>

<llo_original>
// kernel: tpu_custom_call.1
$region0: #{tpu_custom_call.1}
  #allocation0 [shape = 'u32[]', space=smem, size = 0x4, offset = 0x4, fixed_abs, tag = 'smem constant byte address 0x4 - core index']
  #allocation1 [shape = 'u32[144,128]{1,0:T(1,128)}', space=vmem, size = 0x12000, scoped, tag = 'internal scratch']
  #allocation2 [shape = 'f32[8,128]{1,0:T(8,128)}', space=vmem, size = 0x1000, scoped, tag = 'scratch operand']
  #allocation3 [shape = 's32[1]{0}', space=sflag, size = 0x4, scoped, tag = 'scoped memory for tpu_custom_call.1']
  #allocation4 [shape = 'u8[512]{0}', space=smem, size = 0x200, scoped, tag = 'prefetched SMEM operand 0']
  %s0 = inlined_call_operand.hbm [shape: s32[40], index: 0, kind: input, shape index: {}]
  %s1 = inlined_call_operand.hbm [shape: f32[2,256], index: 1, kind: input, shape index: {}]
  %s2 = inlined_call_operand.hbm [shape: f32[128,1536], index: 2, kind: input, shape index: {}]
  %s3 = inlined_call_operand.hbm [shape: f32[40,1536], index: 3, kind: output, shape index: {}]
  %s4 = sld [smem:[#allocation0]]
  $region49: #{tpu_custom_call.1} parent=0
    _
  %s6 = ssub.s32 1, %s4
  %s7 = scalar_select 0, %s6, %s4
  %9 = dma.hbm_to_smem %s0, 16, [#allocation4], [#allocation3]
  %10 = dma.done [#allocation3], 16
  %11 = sfence
  $region1: #{tpu_custom_call.1} parent=0
    #allocation5 [shape = 'u8[2048]{0}', space=vmem, size = 0x800, scoped, tag = 'input window, operand 1, single buffered']
    #allocation6 [shape = 's32[2]{0}', space=sflag, size = 0x8, scoped, tag = 'scoped memory for tpu_custom_call.1']
    #allocation7 [shape = 's32[2]{0}', space=sflag, size = 0x8, scoped, tag = 'scoped memory for tpu_custom_call.1']
    #allocation8 [shape = 'u8[786432]{0}', space=vmem, size = 0xc0000, scoped, tag = 'input window, operand 2, single buffered']
    #allocation9 [shape = 's32[1]{0}', space=sflag, size = 0x4, scoped, tag = 'scoped memory for tpu_custom_call.1']
    #allocation10 [shape = 'u8[98304]{0}', space=vmem, size = 0x18000, scoped, tag = 'output window, operand 0']
    %12 = vsyncpa [#allocation6], 0
    %13 = vsyncpa [#allocation9], 0
    %14 = vsyncpa [#allocation7], 0
    %s15 = scalar_lea.sflag [#allocation7], 1
    %16 = vsyncpa %s15, 0
    loop: start=0, step=1, limit=7
    $region2: #{tpu_custom_call.1} parent=1 // loop_pre_header
      _
    $region3: #{tpu_custom_call.1} parent=1 // loop_header
      %s18 = sphi 0, %s22
      %p19 = scmp.ge.s32.totalorder %s18, 7
      %s26 = sphi 0, %s26
      %s28 = sphi 0, %s26
      %s29 = sphi 0, %s28
      %s43 = sphi 0, %s29
      %s47 = sphi 0, %s47
      %s49 = sphi 0, %s47
      %s50 = sphi 0, %s49
      %s64 = sphi 0, %s50
      %s70 = sphi 0, %s72
      %s73 = sphi 0, %s70
      %s74 = sphi 0, %s73
      %s90 = sphi 0, %s74
    $region4: #{tpu_custom_call.1} parent=1 // loop_header_branch
      %21 = sbr.rel (%p19) target = $region8
    $region5: #{tpu_custom_call.1} parent=1 // loop_body
      %s23 = ssub.s32 %s18, 1
      %s24 = ssub.s32 %s18, 2
      %s25 = sadd.s32 %s18, 1
      %s27 = sadd.s32 %s26, 1
      %p30 = scmp.eq.s32.totalorder %s18, 4
      %p31 = scmp.ne.s32.totalorder %s26, %s28
      %p32 = scmp.eq.s32.totalorder %s18, 0
      %p33 = por %p31, %p32
      %p34 = scmp.ne.s32.totalorder %s26, %s28
      %p35 = scmp.eq.s32.totalorder %s23, 4
      %p36 = por %p34, %p35
      %p37 = scmp.ne.s32.totalorder %s28, %s29
      %p38 = scmp.eq.s32.totalorder %s23, 0
      %p39 = por %p37, %p38
      %p40 = scmp.ne.s32.totalorder %s28, %s29
      %p41 = scmp.eq.s32.totalorder %s24, 4
      %p42 = por %p40, %p41
      %p44 = scmp.ne.s32.totalorder %s29, %s43
      %p45 = scmp.eq.s32.totalorder %s24, 0
      %p46 = por %p44, %p45
      %s48 = sadd.s32 %s47, 1
      %p51 = scmp.eq.s32.totalorder %s18, 4
      %p52 = scmp.ne.s32.totalorder %s47, %s49
      %p53 = scmp.eq.s32.totalorder %s18, 0
      %p54 = por %p52, %p53
      %p55 = scmp.ne.s32.totalorder %s47, %s49
      %p56 = scmp.eq.s32.totalorder %s23, 4
      %p57 = por %p55, %p56
      %p58 = scmp.ne.s32.totalorder %s49, %s50
      %p59 = scmp.eq.s32.totalorder %s23, 0
      %p60 = por %p58, %p59
      %p61 = scmp.ne.s32.totalorder %s49, %s50
      %p62 = scmp.eq.s32.totalorder %s24, 4
      %p63 = por %p61, %p62
      %p65 = scmp.ne.s32.totalorder %s50, %s64
      %p66 = scmp.eq.s32.totalorder %s24, 0
      %p67 = por %p65, %p66
      %s68 = ssub.s32 %s18, %s25
      %p69 = scmp.eq.s32.totalorder %s68, 0
      %s71 = sadd.s32 %s70, 1
      %s72 = scalar_select %p69, %s70, %s71
      %p75 = pneg %p69
      %p76 = scmp.eq.s32.totalorder %s18, 4
      %p77 = por %p75, %p76
      %p78 = scmp.ne.s32.totalorder %s70, %s73
      %p79 = scmp.eq.s32.totalorder %s18, 0
      %p80 = por %p78, %p79
      %p81 = scmp.ne.s32.totalorder %s70, %s73
      %p82 = scmp.eq.s32.totalorder %s23, 4
      %p83 = por %p81, %p82
      %p84 = scmp.ne.s32.totalorder %s73, %s74
      %p85 = scmp.eq.s32.totalorder %s23, 0
      %p86 = por %p84, %p85
      %p87 = scmp.ne.s32.totalorder %s73, %s74
      %p88 = scmp.eq.s32.totalorder %s24, 4
      %p89 = por %p87, %p88
      %p91 = scmp.ne.s32.totalorder %s74, %s90
      %p92 = scmp.eq.s32.totalorder %s24, 0
      %p93 = por %p91, %p92
      %p94 = scmp.le.s32.totalorder 1, %s18
      %p95 = scmp.lt.s32.totalorder %s18, 6
      %p96 = pnand %p94, %p95
      %p97 = pneg %p96
      // Predicated region
      $region9: #{tpu_custom_call.1} parent=5 // pred_check
        _
      $region10: #{tpu_custom_call.1} parent=5 // pred_check_branch
        %99 = sbr.rel (%p96) target = $region12
      $region11: #{tpu_custom_call.1} parent=5 // pred_region
        %s100 = ssub.s32 %s18, 1
        // Predicated region
        $region13: #{tpu_custom_call.1} parent=11 // pred_check
          %p101 = pneg %p39
        $region14: #{tpu_custom_call.1} parent=11 // pred_check_branch
          %103 = sbr.rel (%p101) target = $region16
        $region15: #{tpu_custom_call.1} parent=11 // pred_region
          %s105 = ssub.s32 64, 64
          %106 = vsyncadd [#allocation6], %s105
          %s108 = sshll.u32 [#allocation5], 4
          %s109 = int_to_ptr.vmem [resolvable:$true] %s108
          %111 = dma.hbm_to_vmem [thread:$0]  %s1, 64, %s109, [#allocation6]
        $region16: #{tpu_custom_call.1} parent=11 // pred_fallthru
          _
        // Predicated region
        $region17: #{tpu_custom_call.1} parent=11 // pred_check
          %p112 = pneg %p60
        $region18: #{tpu_custom_call.1} parent=11 // pred_check_branch
          %114 = sbr.rel (%p112) target = $region20
        $region19: #{tpu_custom_call.1} parent=11 // pred_region
          %s116 = ssub.s32 24576, 24576
          %117 = vsyncadd [#allocation9], %s116
          %s118 = sshll.u32 [#allocation8], 4
          %s119 = int_to_ptr.vmem [resolvable:$true] %s118
          %124 = dma.hbm_to_vmem [thread:$0]  %s2, 24576, %s119, [#allocation9], 1536, 1536, 96
        $region20: #{tpu_custom_call.1} parent=11 // pred_fallthru
          _
      $region12: #{tpu_custom_call.1} parent=5 // pred_fallthru
        _
      %p125 = scmp.lt.s32.totalorder %s18, 5
      // Predicated region
      $region21: #{tpu_custom_call.1} parent=5 // pred_check
        %p126 = pneg %p125
      $region22: #{tpu_custom_call.1} parent=5 // pred_check_branch
        %128 = sbr.rel (%p126) target = $region24
      $region23: #{tpu_custom_call.1} parent=5 // pred_region
        _
      $region24: #{tpu_custom_call.1} parent=5 // pred_fallthru
        _
      %p129 = scmp.le.s32.totalorder 1, %s18
      %p130 = scmp.lt.s32.totalorder %s18, 6
      %p131 = pnand %p129, %p130
      %p132 = pneg %p131
      // Predicated region
      $region25: #{tpu_custom_call.1} parent=5 // pred_check
        _
      $region26: #{tpu_custom_call.1} parent=5 // pred_check_branch
        %134 = sbr.rel (%p131) target = $region28
      $region27: #{tpu_custom_call.1} parent=5 // pred_region
        %s135 = ssub.s32 %s18, 1
        // Predicated region
        $region29: #{tpu_custom_call.1} parent=27 // pred_check
          %p136 = pneg %p39
        $region30: #{tpu_custom_call.1} parent=27 // pred_check_branch
          %138 = sbr.rel (%p136) target = $region32
        $region31: #{tpu_custom_call.1} parent=27 // pred_region
          %139 = dma.done [#allocation6], 64
        $region32: #{tpu_custom_call.1} parent=27 // pred_fallthru
          _
        // Predicated region
        $region33: #{tpu_custom_call.1} parent=27 // pred_check
          %p140 = pneg %p60
        $region34: #{tpu_custom_call.1} parent=27 // pred_check_branch
          %142 = sbr.rel (%p140) target = $region36
        $region35: #{tpu_custom_call.1} parent=27 // pred_region
          %143 = dma.done [#allocation9], 24576
        $region36: #{tpu_custom_call.1} parent=27 // pred_fallthru
          _
        %p144 = pneg %p39
        %p145 = pneg %p36
        %p146 = pneg %p60
        %p147 = pneg %p57
        %p148 = pneg %p86
        %p149 = pneg %p83
        %s150 = sand.u32 %s73, 1
        %s151 = scalar_lea.sflag [#allocation7], %s150
        %s152 = sand.u32 %s73, 1
        %s153 = smul.addr %s152, 96
        %s154 = scalar_lea.vmem [#allocation10], %s153
        %v155 = vld [vmem:[#allocation5] ss:$2 sm:$0x3]
        %s156 = scalar_lea.vmem [#allocation5], 1
        %v157 = vld [vmem:[%s156] ss:$2 sm:$0x3]
        %s158 = smul.u32 %s23, 8
        %s159 = sld [smem:[#allocation4 + %s158]]
        %s160 = sand.u32 %s159, 1
        %s161 = sshra.s32 %s159, 1
        %p162 = scmp.eq.s32.totalorder %s160, 0
        %s163 = scalar_select %p162, 1, 0
        %v164 = vstv %s163
        %vm165 = vcmp.eq.s32.totalorder %v164, 1
        %v166 = vsel %vm165, %v155, %v157
        %s167 = ssub.s32 256, %s161
        %p168 = scmp.lt.s32.totalorder %s167, 0
        %s169 = ssub.s32 0, %s167
        %s170 = scalar_select %p168, %s169, %s167
        %s171 = sand.u32 %s170, 255
        %s172 = ssub.s32 0, %s171
        %s173 = scalar_select %p168, %s172, %s171
        %p174 = scmp.ne.s32.totalorder %s173, 0
        %p175 = scmp.lt.s32.totalorder %s173, 0
        %p176 = pnand %p175, %p174
        %p177 = pneg %p176
        %s178 = sadd.s32 %s173, 256
        %s179 = scalar_select %p177, %s178, %s173
        %v181 = vlaneseq
        %v182 = vshrl.u32 %v181, 7
        %v183 = vsub.s32 0, %v182
        %v184 = vrot.slane %v166, %v183
        %v185 = vlaneseq
        %v186 = vshrl.u32 %v185, 7
        %v187 = vsub.s32 1, %v186
        %v188 = vrot.slane %v166, %v187
        %s191 = sand.u32 %s179, 255
        %s192 = sand.u32 %s191, 127
        %s193 = sshrl.u32 %s191, 7
        %194 = vrot.lane.b32.xlu0 %v184, %s192
        %v195 = vpop.permute.xlu0 %194
        %196 = vrot.lane.b32.xlu0 %v188, %s192
        %v197 = vpop.permute.xlu0 %196
        %v198 = vstv %s192
        %v199 = vlaneseq
        %v200 = vand.u32 %v199, 127
        %vm201 = vcmp.lt.s32.totalorder %v200, %v198
        %v202 = vsel %vm201, %v195, %v197
        %v203 = vsel %vm201, %v197, %v195
        %s204 = sand.u32 %s193, 1
        %v205 = vstv %s204
        %vm206 = vcmp.ne.s32.totalorder %v205, 0
        %v207 = vsel %vm206, %v202, %v203
        %208 = vst [vmem:[#allocation2] sm:$0x1] %v207
        %s209 = sadd.s32 %s158, 1
        %s210 = sld [smem:[#allocation4 + %s209]]
        %s211 = sand.u32 %s210, 1
        %s212 = sshra.s32 %s210, 1
        %p213 = scmp.eq.s32.totalorder %s211, 0
        %s214 = scalar_select %p213, 1, 0
        %v215 = vstv %s214
        %vm216 = vcmp.eq.s32.totalorder %v215, 1
        %v217 = vsel %vm216, %v155, %v157
        %s218 = ssub.s32 256, %s212
        %p219 = scmp.lt.s32.totalorder %s218, 0
        %s220 = ssub.s32 0, %s218
        %s221 = scalar_select %p219, %s220, %s218
        %s222 = sand.u32 %s221, 255
        %s223 = ssub.s32 0, %s222
        %s224 = scalar_select %p219, %s223, %s222
        %p225 = scmp.ne.s32.totalorder %s224, 0
        %p226 = scmp.lt.s32.totalorder %s224, 0
        %p227 = pnand %p226, %p225
        %p228 = pneg %p227
        %s229 = sadd.s32 %s224, 256
        %s230 = scalar_select %p228, %s229, %s224
        %v232 = vlaneseq
        %v233 = vshrl.u32 %v232, 7
        %v234 = vsub.s32 0, %v233
        %v235 = vrot.slane %v217, %v234
        %v236 = vlaneseq
        %v237 = vshrl.u32 %v236, 7
        %v238 = vsub.s32 1, %v237
        %v239 = vrot.slane %v217, %v238
        %s242 = sand.u32 %s230, 255
        %s243 = sand.u32 %s242, 127
        %s244 = sshrl.u32 %s242, 7
        %245 = vrot.lane.b32.xlu0 %v235, %s243
        %v246 = vpop.permute.xlu0 %245
        %247 = vrot.lane.b32.xlu0 %v239, %s243
        %v248 = vpop.permute.xlu0 %247
        %v249 = vstv %s243
        %vm250 = vcmp.lt.s32.totalorder %v200, %v249
        %v251 = vsel %vm250, %v246, %v248
        %v252 = vsel %vm250, %v248, %v246
        %s253 = sand.u32 %s244, 1
        %v254 = vstv %s253
        %vm255 = vcmp.ne.s32.totalorder %v254, 0
        %v256 = vsel %vm255, %v251, %v252
        %257 = vst [vmem:[#allocation2 + $0x1] sm:$0x1] %v256
        %s258 = sadd.s32 %s158, 2
        %s259 = sld [smem:[#allocation4 + %s258]]
        %s260 = sand.u32 %s259, 1
        %s261 = sshra.s32 %s259, 1
        %p262 = scmp.eq.s32.totalorder %s260, 0
        %s263 = scalar_select %p262, 1, 0
        %v264 = vstv %s263
        %vm265 = vcmp.eq.s32.totalorder %v264, 1
        %v266 = vsel %vm265, %v155, %v157
        %s267 = ssub.s32 256, %s261
        %p268 = scmp.lt.s32.totalorder %s267, 0
        %s269 = ssub.s32 0, %s267
        %s270 = scalar_select %p268, %s269, %s267
        %s271 = sand.u32 %s270, 255
        %s272 = ssub.s32 0, %s271
        %s273 = scalar_select %p268, %s272, %s271
        %p274 = scmp.ne.s32.totalorder %s273, 0
        %p275 = scmp.lt.s32.totalorder %s273, 0
        %p276 = pnand %p275, %p274
        %p277 = pneg %p276
        %s278 = sadd.s32 %s273, 256
        %s279 = scalar_select %p277, %s278, %s273
        %v281 = vlaneseq
        %v282 = vshrl.u32 %v281, 7
        %v283 = vsub.s32 0, %v282
        %v284 = vrot.slane %v266, %v283
        %v285 = vlaneseq
        %v286 = vshrl.u32 %v285, 7
        %v287 = vsub.s32 1, %v286
        %v288 = vrot.slane %v266, %v287
        %s291 = sand.u32 %s279, 255
        %s292 = sand.u32 %s291, 127
        %s293 = sshrl.u32 %s291, 7
        %294 = vrot.lane.b32.xlu0 %v284, %s292
        %v295 = vpop.permute.xlu0 %294
        %296 = vrot.lane.b32.xlu0 %v288, %s292
        %v297 = vpop.permute.xlu0 %296
        %v298 = vstv %s292
        %vm299 = vcmp.lt.s32.totalorder %v200, %v298
        %v300 = vsel %vm299, %v295, %v297
        %v301 = vsel %vm299, %v297, %v295
        %s302 = sand.u32 %s293, 1
        %v303 = vstv %s302
        %vm304 = vcmp.ne.s32.totalorder %v303, 0
        %v305 = vsel %vm304, %v300, %v301
        %306 = vst [vmem:[#allocation2 + $0x2] sm:$0x1] %v305
        %s307 = sadd.s32 %s158, 3
        %s308 = sld [smem:[#allocation4 + %s307]]
        %s309 = sand.u32 %s308, 1
        %s310 = sshra.s32 %s308, 1
        %p311 = scmp.eq.s32.totalorder %s309, 0
        %s312 = scalar_select %p311, 1, 0
        %v313 = vstv %s312
        %vm314 = vcmp.eq.s32.totalorder %v313, 1
        %v315 = vsel %vm314, %v155, %v157
        %s316 = ssub.s32 256, %s310
        %p317 = scmp.lt.s32.totalorder %s316, 0
        %s318 = ssub.s32 0, %s316
        %s319 = scalar_select %p317, %s318, %s316
        %s320 = sand.u32 %s319, 255
        %s321 = ssub.s32 0, %s320
        %s322 = scalar_select %p317, %s321, %s320
        %p323 = scmp.ne.s32.totalorder %s322, 0
        %p324 = scmp.lt.s32.totalorder %s322, 0
        %p325 = pnand %p324, %p323
        %p326 = pneg %p325
        %s327 = sadd.s32 %s322, 256
        %s328 = scalar_select %p326, %s327, %s322
        %v330 = vlaneseq
        %v331 = vshrl.u32 %v330, 7
        %v332 = vsub.s32 0, %v331
        %v333 = vrot.slane %v315, %v332
        %v334 = vlaneseq
        %v335 = vshrl.u32 %v334, 7
        %v336 = vsub.s32 1, %v335
        %v337 = vrot.slane %v315, %v336
        %s340 = sand.u32 %s328, 255
        %s341 = sand.u32 %s340, 127
        %s342 = sshrl.u32 %s340, 7
        %343 = vrot.lane.b32.xlu0 %v333, %s341
        %v344 = vpop.permute.xlu0 %343
        %345 = vrot.lane.b32.xlu0 %v337, %s341
        %v346 = vpop.permute.xlu0 %345
        %v347 = vstv %s341
        %vm348 = vcmp.lt.s32.totalorder %v200, %v347
        %v349 = vsel %vm348, %v344, %v346
        %v350 = vsel %vm348, %v346, %v344
        %s351 = sand.u32 %s342, 1
        %v352 = vstv %s351
        %vm353 = vcmp.ne.s32.totalorder %v352, 0
        %v354 = vsel %vm353, %v349, %v350
        %355 = vst [vmem:[#allocation2 + $0x3] sm:$0x1] %v354
        %s356 = sadd.s32 %s158, 4
        %s357 = sld [smem:[#allocation4 + %s356]]
        %s358 = sand.u32 %s357, 1
        %s359 = sshra.s32 %s357, 1
        %p360 = scmp.eq.s32.totalorder %s358, 0
        %s361 = scalar_select %p360, 1, 0
        %v362 = vstv %s361
        %vm363 = vcmp.eq.s32.totalorder %v362, 1
        %v364 = vsel %vm363, %v155, %v157
        %s365 = ssub.s32 256, %s359
        %p366 = scmp.lt.s32.totalorder %s365, 0
        %s367 = ssub.s32 0, %s365
        %s368 = scalar_select %p366, %s367, %s365
        %s369 = sand.u32 %s368, 255
        %s370 = ssub.s32 0, %s369
        %s371 = scalar_select %p366, %s370, %s369
        %p372 = scmp.ne.s32.totalorder %s371, 0
        %p373 = scmp.lt.s32.totalorder %s371, 0
        %p374 = pnand %p373, %p372
        %p375 = pneg %p374
        %s376 = sadd.s32 %s371, 256
        %s377 = scalar_select %p375, %s376, %s371
        %v379 = vlaneseq
        %v380 = vshrl.u32 %v379, 7
        %v381 = vsub.s32 0, %v380
        %v382 = vrot.slane %v364, %v381
        %v383 = vlaneseq
        %v384 = vshrl.u32 %v383, 7
        %v385 = vsub.s32 1, %v384
        %v386 = vrot.slane %v364, %v385
        %s389 = sand.u32 %s377, 255
        %s390 = sand.u32 %s389, 127
        %s391 = sshrl.u32 %s389, 7
        %392 = vrot.lane.b32.xlu0 %v382, %s390
        %v393 = vpop.permute.xlu0 %392
        %394 = vrot.lane.b32.xlu0 %v386, %s390
        %v395 = vpop.permute.xlu0 %394
        %v396 = vstv %s390
        %vm397 = vcmp.lt.s32.totalorder %v200, %v396
        %v398 = vsel %vm397, %v393, %v395
        %v399 = vsel %vm397, %v395, %v393
        %s400 = sand.u32 %s391, 1
        %v401 = vstv %s400
        %vm402 = vcmp.ne.s32.totalorder %v401, 0
        %v403 = vsel %vm402, %v398, %v399
        %404 = vst [vmem:[#allocation2 + $0x4] sm:$0x1] %v403
        %s405 = sadd.s32 %s158, 5
        %s406 = sld [smem:[#allocation4 + %s405]]
        %s407 = sand.u32 %s406, 1
        %s408 = sshra.s32 %s406, 1
        %p409 = scmp.eq.s32.totalorder %s407, 0
        %s410 = scalar_select %p409, 1, 0
        %v411 = vstv %s410
        %vm412 = vcmp.eq.s32.totalorder %v411, 1
        %v413 = vsel %vm412, %v155, %v157
        %s414 = ssub.s32 256, %s408
        %p415 = scmp.lt.s32.totalorder %s414, 0
        %s416 = ssub.s32 0, %s414
        %s417 = scalar_select %p415, %s416, %s414
        %s418 = sand.u32 %s417, 255
        %s419 = ssub.s32 0, %s418
        %s420 = scalar_select %p415, %s419, %s418
        %p421 = scmp.ne.s32.totalorder %s420, 0
        %p422 = scmp.lt.s32.totalorder %s420, 0
        %p423 = pnand %p422, %p421
        %p424 = pneg %p423
        %s425 = sadd.s32 %s420, 256
        %s426 = scalar_select %p424, %s425, %s420
        %v428 = vlaneseq
        %v429 = vshrl.u32 %v428, 7
        %v430 = vsub.s32 0, %v429
        %v431 = vrot.slane %v413, %v430
        %v432 = vlaneseq
        %v433 = vshrl.u32 %v432, 7
        %v434 = vsub.s32 1, %v433
        %v435 = vrot.slane %v413, %v434
        %s438 = sand.u32 %s426, 255
        %s439 = sand.u32 %s438, 127
        %s440 = sshrl.u32 %s438, 7
        %441 = vrot.lane.b32.xlu0 %v431, %s439
        %v442 = vpop.permute.xlu0 %441
        %443 = vrot.lane.b32.xlu0 %v435, %s439
        %v444 = vpop.permute.xlu0 %443
        %v445 = vstv %s439
        %vm446 = vcmp.lt.s32.totalorder %v200, %v445
        %v447 = vsel %vm446, %v442, %v444
        %v448 = vsel %vm446, %v444, %v442
        %s449 = sand.u32 %s440, 1
        %v450 = vstv %s449
        %vm451 = vcmp.ne.s32.totalorder %v450, 0
        %v452 = vsel %vm451, %v447, %v448
        %453 = vst [vmem:[#allocation2 + $0x5] sm:$0x1] %v452
        %s454 = sadd.s32 %s158, 6
        %s455 = sld [smem:[#allocation4 + %s454]]
        %s456 = sand.u32 %s455, 1
        %s457 = sshra.s32 %s455, 1
        %p458 = scmp.eq.s32.totalorder %s456, 0
        %s459 = scalar_select %p458, 1, 0
        %v460 = vstv %s459
        %vm461 = vcmp.eq.s32.totalorder %v460, 1
        %v462 = vsel %vm461, %v155, %v157
        %s463 = ssub.s32 256, %s457
        %p464 = scmp.lt.s32.totalorder %s463, 0
        %s465 = ssub.s32 0, %s463
        %s466 = scalar_select %p464, %s465, %s463
        %s467 = sand.u32 %s466, 255
        %s468 = ssub.s32 0, %s467
        %s469 = scalar_select %p464, %s468, %s467
        %p470 = scmp.ne.s32.totalorder %s469, 0
        %p471 = scmp.lt.s32.totalorder %s469, 0
        %p472 = pnand %p471, %p470
        %p473 = pneg %p472
        %s474 = sadd.s32 %s469, 256
        %s475 = scalar_select %p473, %s474, %s469
        %v477 = vlaneseq
        %v478 = vshrl.u32 %v477, 7
        %v479 = vsub.s32 0, %v478
        %v480 = vrot.slane %v462, %v479
        %v481 = vlaneseq
        %v482 = vshrl.u32 %v481, 7
        %v483 = vsub.s32 1, %v482
        %v484 = vrot.slane %v462, %v483
        %s487 = sand.u32 %s475, 255
        %s488 = sand.u32 %s487, 127
        %s489 = sshrl.u32 %s487, 7
        %490 = vrot.lane.b32.xlu0 %v480, %s488
        %v491 = vpop.permute.xlu0 %490
        %492 = vrot.lane.b32.xlu0 %v484, %s488
        %v493 = vpop.permute.xlu0 %492
        %v494 = vstv %s488
        %vm495 = vcmp.lt.s32.totalorder %v200, %v494
        %v496 = vsel %vm495, %v491, %v493
        %v497 = vsel %vm495, %v493, %v491
        %s498 = sand.u32 %s489, 1
        %v499 = vstv %s498
        %vm500 = vcmp.ne.s32.totalorder %v499, 0
        %v501 = vsel %vm500, %v496, %v497
        %502 = vst [vmem:[#allocation2 + $0x6] sm:$0x1] %v501
        %s503 = sadd.s32 %s158, 7
        %s504 = sld [smem:[#allocation4 + %s503]]
        %s505 = sand.u32 %s504, 1
        %s506 = sshra.s32 %s504, 1
        %p507 = scmp.eq.s32.totalorder %s505, 0
        %s508 = scalar_select %p507, 1, 0
        %v509 = vstv %s508
        %vm510 = vcmp.eq.s32.totalorder %v509, 1
        %v511 = vsel %vm510, %v155, %v157
        %s512 = ssub.s32 256, %s506
        %p513 = scmp.lt.s32.totalorder %s512, 0
        %s514 = ssub.s32 0, %s512
        %s515 = scalar_select %p513, %s514, %s512
        %s516 = sand.u32 %s515, 255
        %s517 = ssub.s32 0, %s516
        %s518 = scalar_select %p513, %s517, %s516
        %p519 = scmp.ne.s32.totalorder %s518, 0
        %p520 = scmp.lt.s32.totalorder %s518, 0
        %p521 = pnand %p520, %p519
        %p522 = pneg %p521
        %s523 = sadd.s32 %s518, 256
        %s524 = scalar_select %p522, %s523, %s518
        %v526 = vlaneseq
        %v527 = vshrl.u32 %v526, 7
        %v528 = vsub.s32 0, %v527
        %v529 = vrot.slane %v511, %v528
        %v530 = vlaneseq
        %v531 = vshrl.u32 %v530, 7
        %v532 = vsub.s32 1, %v531
        %v533 = vrot.slane %v511, %v532
        %s536 = sand.u32 %s524, 255
        %s537 = sand.u32 %s536, 127
        %s538 = sshrl.u32 %s536, 7
        %539 = vrot.lane.b32.xlu0 %v529, %s537
        %v540 = vpop.permute.xlu0 %539
        %541 = vrot.lane.b32.xlu0 %v533, %s537
        %v542 = vpop.permute.xlu0 %541
        %v543 = vstv %s537
        %vm544 = vcmp.lt.s32.totalorder %v200, %v543
        %v545 = vsel %vm544, %v540, %v542
        %v546 = vsel %vm544, %v542, %v540
        %s547 = sand.u32 %s538, 1
        %v548 = vstv %s547
        %vm549 = vcmp.ne.s32.totalorder %v548, 0
        %v550 = vsel %vm549, %v545, %v546
        %551 = vst [vmem:[#allocation2 + $0x7] sm:$0x1] %v550
        %v552 = vld [vmem:[#allocation2] sm:$0xff]
        %v553 = vld [vmem:[#allocation8] sm:$0xff]
        %v554 = vld [vmem:[#allocation8 + $0x8] sm:$0xff]
        %v555 = vld [vmem:[#allocation8 + $0x10] sm:$0xff]
        %v556 = vld [vmem:[#allocation8 + $0x18] sm:$0xff]
        %v557 = vld [vmem:[#allocation8 + $0x20] sm:$0xff]
        %v558 = vld [vmem:[#allocation8 + $0x28] sm:$0xff]
        %v559 = vld [vmem:[#allocation8 + $0x30] sm:$0xff]
        %v560 = vld [vmem:[#allocation8 + $0x38] sm:$0xff]
        %v561 = vld [vmem:[#allocation8 + $0x40] sm:$0xff]
        %v562 = vld [vmem:[#allocation8 + $0x48] sm:$0xff]
        %v563 = vld [vmem:[#allocation8 + $0x50] sm:$0xff]
        %v564 = vld [vmem:[#allocation8 + $0x58] sm:$0xff]
        %v565 = vld [vmem:[#allocation8 + $0x60] sm:$0xff]
        %v566 = vld [vmem:[#allocation8 + $0x68] sm:$0xff]
        %v567 = vld [vmem:[#allocation8 + $0x70] sm:$0xff]
        %v568 = vld [vmem:[#allocation8 + $0x78] sm:$0xff]
        %v569 = vld [vmem:[#allocation8 + $0x80] sm:$0xff]
        %v570 = vld [vmem:[#allocation8 + $0x88] sm:$0xff]
        %v571 = vld [vmem:[#allocation8 + $0x90] sm:$0xff]
        %v572 = vld [vmem:[#allocation8 + $0x98] sm:$0xff]
        %v573 = vld [vmem:[#allocation8 + $0xa0] sm:$0xff]
        %v574 = vld [vmem:[#allocation8 + $0xa8] sm:$0xff]
        %v575 = vld [vmem:[#allocation8 + $0xb0] sm:$0xff]
        %v576 = vld [vmem:[#allocation8 + $0xb8] sm:$0xff]
        %v577 = vld [vmem:[#allocation8 + $0xc0] sm:$0xff]
        %v578 = vld [vmem:[#allocation8 + $0xc8] sm:$0xff]
        %v579 = vld [vmem:[#allocation8 + $0xd0] sm:$0xff]
        %v580 = vld [vmem:[#allocation8 + $0xd8] sm:$0xff]
        %v581 = vld [vmem:[#allocation8 + $0xe0] sm:$0xff]
        %v582 = vld [vmem:[#allocation8 + $0xe8] sm:$0xff]
        %v583 = vld [vmem:[#allocation8 + $0xf0] sm:$0xff]
        %v584 = vld [vmem:[#allocation8 + $0xf8] sm:$0xff]
        %v585 = vld [vmem:[#allocation8 + $0x100] sm:$0xff]
        %v586 = vld [vmem:[#allocation8 + $0x108] sm:$0xff]
        %v587 = vld [vmem:[#allocation8 + $0x110] sm:$0xff]
        %v588 = vld [vmem:[#allocation8 + $0x118] sm:$0xff]
        %v589 = vld [vmem:[#allocation8 + $0x120] sm:$0xff]
        %v590 = vld [vmem:[#allocation8 + $0x128] sm:$0xff]
        %v591 = vld [vmem:[#allocation8 + $0x130] sm:$0xff]
        %v592 = vld [vmem:[#allocation8 + $0x138] sm:$0xff]
        %v593 = vld [vmem:[#allocation8 + $0x140] sm:$0xff]
        %v594 = vld [vmem:[#allocation8 + $0x148] sm:$0xff]
        %v595 = vld [vmem:[#allocation8 + $0x150] sm:$0xff]
        %v596 = vld [vmem:[#allocation8 + $0x158] sm:$0xff]
        %v597 = vld [vmem:[#allocation8 + $0x160] sm:$0xff]
        %v598 = vld [vmem:[#allocation8 + $0x168] sm:$0xff]
        %v599 = vld [vmem:[#allocation8 + $0x170] sm:$0xff]
        %v600 = vld [vmem:[#allocation8 + $0x178] sm:$0xff]
        %v601 = vld [vmem:[#allocation8 + $0x180] sm:$0xff]
        %v602 = vld [vmem:[#allocation8 + $0x188] sm:$0xff]
        %v603 = vld [vmem:[#allocation8 + $0x190] sm:$0xff]
        %v604 = vld [vmem:[#allocation8 + $0x198] sm:$0xff]
        %v605 = vld [vmem:[#allocation8 + $0x1a0] sm:$0xff]
        %v606 = vld [vmem:[#allocation8 + $0x1a8] sm:$0xff]
        %v607 = vld [vmem:[#allocation8 + $0x1b0] sm:$0xff]
        %v608 = vld [vmem:[#allocation8 + $0x1b8] sm:$0xff]
        %v609 = vld [vmem:[#allocation8 + $0x1c0] sm:$0xff]
        %v610 = vld [vmem:[#allocation8 + $0x1c8] sm:$0xff]
        %v611 = vld [vmem:[#allocation8 + $0x1d0] sm:$0xff]
        %v612 = vld [vmem:[#allocation8 + $0x1d8] sm:$0xff]
        %v613 = vld [vmem:[#allocation8 + $0x1e0] sm:$0xff]
        %v614 = vld [vmem:[#allocation8 + $0x1e8] sm:$0xff]
        %v615 = vld [vmem:[#allocation8 + $0x1f0] sm:$0xff]
        %v616 = vld [vmem:[#allocation8 + $0x1f8] sm:$0xff]
        %v617 = vld [vmem:[#allocation8 + $0x200] sm:$0xff]
        %v618 = vld [vmem:[#allocation8 + $0x208] sm:$0xff]
        %v619 = vld [vmem:[#allocation8 + $0x210] sm:$0xff]
        %v620 = vld [vmem:[#allocation8 + $0x218] sm:$0xff]
        %v621 = vld [vmem:[#allocation8 + $0x220] sm:$0xff]
        %v622 = vld [vmem:[#allocation8 + $0x228] sm:$0xff]
        %v623 = vld [vmem:[#allocation8 + $0x230] sm:$0xff]
        %v624 = vld [vmem:[#allocation8 + $0x238] sm:$0xff]
        %v625 = vld [vmem:[#allocation8 + $0x240] sm:$0xff]
        %v626 = vld [vmem:[#allocation8 + $0x248] sm:$0xff]
        %v627 = vld [vmem:[#allocation8 + $0x250] sm:$0xff]
        %v628 = vld [vmem:[#allocation8 + $0x258] sm:$0xff]
        %v629 = vld [vmem:[#allocation8 + $0x260] sm:$0xff]
        %v630 = vld [vmem:[#allocation8 + $0x268] sm:$0xff]
        %v631 = vld [vmem:[#allocation8 + $0x270] sm:$0xff]
        %v632 = vld [vmem:[#allocation8 + $0x278] sm:$0xff]
        %v633 = vld [vmem:[#allocation8 + $0x280] sm:$0xff]
        %v634 = vld [vmem:[#allocation8 + $0x288] sm:$0xff]
        %v635 = vld [vmem:[#allocation8 + $0x290] sm:$0xff]
        %v636 = vld [vmem:[#allocation8 + $0x298] sm:$0xff]
        %v637 = vld [vmem:[#allocation8 + $0x2a0] sm:$0xff]
        %v638 = vld [vmem:[#allocation8 + $0x2a8] sm:$0xff]
        %v639 = vld [vmem:[#allocation8 + $0x2b0] sm:$0xff]
        %v640 = vld [vmem:[#allocation8 + $0x2b8] sm:$0xff]
        %v641 = vld [vmem:[#allocation8 + $0x2c0] sm:$0xff]
        %v642 = vld [vmem:[#allocation8 + $0x2c8] sm:$0xff]
        %v643 = vld [vmem:[#allocation8 + $0x2d0] sm:$0xff]
        %v644 = vld [vmem:[#allocation8 + $0x2d8] sm:$0xff]
        %v645 = vld [vmem:[#allocation8 + $0x2e0] sm:$0xff]
        %v646 = vld [vmem:[#allocation8 + $0x2e8] sm:$0xff]
        %v647 = vld [vmem:[#allocation8 + $0x2f0] sm:$0xff]
        %v648 = vld [vmem:[#allocation8 + $0x2f8] sm:$0xff]
        %v649 = vld [vmem:[#allocation8 + $0x300] sm:$0xff]
        %v650 = vld [vmem:[#allocation8 + $0x308] sm:$0xff]
        %v651 = vld [vmem:[#allocation8 + $0x310] sm:$0xff]
        %v652 = vld [vmem:[#allocation8 + $0x318] sm:$0xff]
        %v653 = vld [vmem:[#allocation8 + $0x320] sm:$0xff]
        %v654 = vld [vmem:[#allocation8 + $0x328] sm:$0xff]
        %v655 = vld [vmem:[#allocation8 + $0x330] sm:$0xff]
        %v656 = vld [vmem:[#allocation8 + $0x338] sm:$0xff]
        %v657 = vld [vmem:[#allocation8 + $0x340] sm:$0xff]
        %v658 = vld [vmem:[#allocation8 + $0x348] sm:$0xff]
        %v659 = vld [vmem:[#allocation8 + $0x350] sm:$0xff]
        %v660 = vld [vmem:[#allocation8 + $0x358] sm:$0xff]
        %v661 = vld [vmem:[#allocation8 + $0x360] sm:$0xff]
        %v662 = vld [vmem:[#allocation8 + $0x368] sm:$0xff]
        %v663 = vld [vmem:[#allocation8 + $0x370] sm:$0xff]
        %v664 = vld [vmem:[#allocation8 + $0x378] sm:$0xff]
        %v665 = vld [vmem:[#allocation8 + $0x380] sm:$0xff]
        %v666 = vld [vmem:[#allocation8 + $0x388] sm:$0xff]
        %v667 = vld [vmem:[#allocation8 + $0x390] sm:$0xff]
        %v668 = vld [vmem:[#allocation8 + $0x398] sm:$0xff]
        %v669 = vld [vmem:[#allocation8 + $0x3a0] sm:$0xff]
        %v670 = vld [vmem:[#allocation8 + $0x3a8] sm:$0xff]
        %v671 = vld [vmem:[#allocation8 + $0x3b0] sm:$0xff]
        %v672 = vld [vmem:[#allocation8 + $0x3b8] sm:$0xff]
        %v673 = vld [vmem:[#allocation8 + $0x3c0] sm:$0xff]
        %v674 = vld [vmem:[#allocation8 + $0x3c8] sm:$0xff]
        %v675 = vld [vmem:[#allocation8 + $0x3d0] sm:$0xff]
        %v676 = vld [vmem:[#allocation8 + $0x3d8] sm:$0xff]
        %v677 = vld [vmem:[#allocation8 + $0x3e0] sm:$0xff]
        %v678 = vld [vmem:[#allocation8 + $0x3e8] sm:$0xff]
        %v679 = vld [vmem:[#allocation8 + $0x3f0] sm:$0xff]
        %v680 = vld [vmem:[#allocation8 + $0x3f8] sm:$0xff]
        %v681 = vld [vmem:[#allocation8 + $0x400] sm:$0xff]
        %v682 = vld [vmem:[#allocation8 + $0x408] sm:$0xff]
        %v683 = vld [vmem:[#allocation8 + $0x410] sm:$0xff]
        %v684 = vld [vmem:[#allocation8 + $0x418] sm:$0xff]
        %v685 = vld [vmem:[#allocation8 + $0x420] sm:$0xff]
        %v686 = vld [vmem:[#allocation8 + $0x428] sm:$0xff]
        %v687 = vld [vmem:[#allocation8 + $0x430] sm:$0xff]
        %v688 = vld [vmem:[#allocation8 + $0x438] sm:$0xff]
        %v689 = vld [vmem:[#allocation8 + $0x440] sm:$0xff]
        %v690 = vld [vmem:[#allocation8 + $0x448] sm:$0xff]
        %v691 = vld [vmem:[#allocation8 + $0x450] sm:$0xff]
        %v692 = vld [vmem:[#allocation8 + $0x458] sm:$0xff]
        %v693 = vld [vmem:[#allocation8 + $0x460] sm:$0xff]
        %v694 = vld [vmem:[#allocation8 + $0x468] sm:$0xff]
        %v695 = vld [vmem:[#allocation8 + $0x470] sm:$0xff]
        %v696 = vld [vmem:[#allocation8 + $0x478] sm:$0xff]
        %v697 = vld [vmem:[#allocation8 + $0x480] sm:$0xff]
        %v698 = vld [vmem:[#allocation8 + $0x488] sm:$0xff]
        %v699 = vld [vmem:[#allocation8 + $0x490] sm:$0xff]
        %v700 = vld [vmem:[#allocation8 + $0x498] sm:$0xff]
        %v701 = vld [vmem:[#allocation8 + $0x4a0] sm:$0xff]
        %v702 = vld [vmem:[#allocation8 + $0x4a8] sm:$0xff]
        %v703 = vld [vmem:[#allocation8 + $0x4b0] sm:$0xff]
        %v704 = vld [vmem:[#allocation8 + $0x4b8] sm:$0xff]
        %v705 = vld [vmem:[#allocation8 + $0x4c0] sm:$0xff]
        %v706 = vld [vmem:[#allocation8 + $0x4c8] sm:$0xff]
        %v707 = vld [vmem:[#allocation8 + $0x4d0] sm:$0xff]
        %v708 = vld [vmem:[#allocation8 + $0x4d8] sm:$0xff]
        %v709 = vld [vmem:[#allocation8 + $0x4e0] sm:$0xff]
        %v710 = vld [vmem:[#allocation8 + $0x4e8] sm:$0xff]
        %v711 = vld [vmem:[#allocation8 + $0x4f0] sm:$0xff]
        %v712 = vld [vmem:[#allocation8 + $0x4f8] sm:$0xff]
        %v713 = vld [vmem:[#allocation8 + $0x500] sm:$0xff]
        %v714 = vld [vmem:[#allocation8 + $0x508] sm:$0xff]
        %v715 = vld [vmem:[#allocation8 + $0x510] sm:$0xff]
        %v716 = vld [vmem:[#allocation8 + $0x518] sm:$0xff]
        %v717 = vld [vmem:[#allocation8 + $0x520] sm:$0xff]
        %v718 = vld [vmem:[#allocation8 + $0x528] sm:$0xff]
        %v719 = vld [vmem:[#allocation8 + $0x530] sm:$0xff]
        %v720 = vld [vmem:[#allocation8 + $0x538] sm:$0xff]
        %v721 = vld [vmem:[#allocation8 + $0x540] sm:$0xff]
        %v722 = vld [vmem:[#allocation8 + $0x548] sm:$0xff]
        %v723 = vld [vmem:[#allocation8 + $0x550] sm:$0xff]
        %v724 = vld [vmem:[#allocation8 + $0x558] sm:$0xff]
        %v725 = vld [vmem:[#allocation8 + $0x560] sm:$0xff]
        %v726 = vld [vmem:[#allocation8 + $0x568] sm:$0xff]
        %v727 = vld [vmem:[#allocation8 + $0x570] sm:$0xff]
        %v728 = vld [vmem:[#allocation8 + $0x578] sm:$0xff]
        %v729 = vld [vmem:[#allocation8 + $0x580] sm:$0xff]
        %v730 = vld [vmem:[#allocation8 + $0x588] sm:$0xff]
        %v731 = vld [vmem:[#allocation8 + $0x590] sm:$0xff]
        %v732 = vld [vmem:[#allocation8 + $0x598] sm:$0xff]
        %v733 = vld [vmem:[#allocation8 + $0x5a0] sm:$0xff]
        %v734 = vld [vmem:[#allocation8 + $0x5a8] sm:$0xff]
        %v735 = vld [vmem:[#allocation8 + $0x5b0] sm:$0xff]
        %v736 = vld [vmem:[#allocation8 + $0x5b8] sm:$0xff]
        %v737 = vld [vmem:[#allocation8 + $0x5c0] sm:$0xff]
        %v738 = vld [vmem:[#allocation8 + $0x5c8] sm:$0xff]
        %v739 = vld [vmem:[#allocation8 + $0x5d0] sm:$0xff]
        %v740 = vld [vmem:[#allocation8 + $0x5d8] sm:$0xff]
        %v741 = vld [vmem:[#allocation8 + $0x5e0] sm:$0xff]
        %v742 = vld [vmem:[#allocation8 + $0x5e8] sm:$0xff]
        %v743 = vld [vmem:[#allocation8 + $0x5f0] sm:$0xff]
        %v744 = vld [vmem:[#allocation8 + $0x5f8] sm:$0xff]
        %v745 = vand.u32 %v734, 4294901760
        %746 = vmatprep.subr.mxu0 %v745
        %v747 = vand.u32 %v733, 4294901760
        %748 = vmatpush1.msra.mxu0 %v747
        %v749 = vand.u32 %v722, 4294901760
        %750 = vmatprep.subr.mxu0 %v749
        %v751 = vand.u32 %v721, 4294901760
        %752 = vmatpush1.msra.mxu0 %v751
        %v753 = vand.u32 %v710, 4294901760
        %754 = vmatprep.subr.mxu0 %v753
        %v755 = vand.u32 %v709, 4294901760
        %756 = vmatpush1.msra.mxu0 %v755
        %v757 = vand.u32 %v698, 4294901760
        %758 = vmatprep.subr.mxu0 %v757
        %v759 = vand.u32 %v697, 4294901760
        %760 = vmatpush1.msra.mxu0 %v759
        %v761 = vand.u32 %v686, 4294901760
        %762 = vmatprep.subr.mxu0 %v761
        %v763 = vand.u32 %v685, 4294901760
        %764 = vmatpush1.msra.mxu0 %v763
        %v765 = vand.u32 %v674, 4294901760
        %766 = vmatprep.subr.mxu0 %v765
        %v767 = vand.u32 %v673, 4294901760
        %768 = vmatpush1.msra.mxu0 %v767
        %v769 = vand.u32 %v662, 4294901760
        %770 = vmatprep.subr.mxu0 %v769
        %v771 = vand.u32 %v661, 4294901760
        %772 = vmatpush1.msra.mxu0 %v771
        %v773 = vand.u32 %v650, 4294901760
        %774 = vmatprep.subr.mxu0 %v773
        %v775 = vand.u32 %v649, 4294901760
        %776 = vmatpush1.msra.mxu0 %v775
        %v777 = vand.u32 %v638, 4294901760
        %778 = vmatprep.subr.mxu0 %v777
        %v779 = vand.u32 %v637, 4294901760
        %780 = vmatpush1.msra.mxu0 %v779
        %v781 = vand.u32 %v626, 4294901760
        %782 = vmatprep.subr.mxu0 %v781
        %v783 = vand.u32 %v625, 4294901760
        %784 = vmatpush1.msra.mxu0 %v783
        %v785 = vand.u32 %v614, 4294901760
        %786 = vmatprep.subr.mxu0 %v785
        %v787 = vand.u32 %v613, 4294901760
        %788 = vmatpush1.msra.mxu0 %v787
        %v789 = vand.u32 %v602, 4294901760
        %790 = vmatprep.subr.mxu0 %v789
        %v791 = vand.u32 %v601, 4294901760
        %792 = vmatpush1.msra.mxu0 %v791
        %v793 = vand.u32 %v590, 4294901760
        %794 = vmatprep.subr.mxu0 %v793
        %v795 = vand.u32 %v589, 4294901760
        %796 = vmatpush1.msra.mxu0 %v795
        %v797 = vand.u32 %v578, 4294901760
        %798 = vmatprep.subr.mxu0 %v797
        %v799 = vand.u32 %v577, 4294901760
        %800 = vmatpush1.msra.mxu0 %v799
        %v801 = vand.u32 %v566, 4294901760
        %802 = vmatprep.subr.mxu0 %v801
        %v803 = vand.u32 %v565, 4294901760
        %804 = vmatpush1.msra.mxu0 %v803
        %v805 = vand.u32 %v554, 4294901760
        %806 = vmatprep.subr.mxu0 %v805
        %v807 = vand.u32 %v553, 4294901760
        %808 = vmatpush1.msra.mxu0 %v807
        %809 = vmatprep.subr.mxu0 0.0
        %810 = vmatpush2.msra.mxu0 0.0
        %811 = vmatprep.subr.mxu0 0.0
        %812 = vmatpush2.msra.mxu0 0.0
        %813 = vmatprep.subr.mxu0 0.0
        %814 = vmatpush2.msra.mxu0 0.0
        %815 = vmatprep.subr.mxu0 0.0
        %816 = vmatpush2.msra.mxu0 0.0
        %817 = vmatprep.subr.mxu0 0.0
        %818 = vmatpush2.msra.mxu0 0.0
        %819 = vmatprep.subr.mxu0 0.0
        %820 = vmatpush2.msra.mxu0 0.0
        %821 = vmatprep.subr.mxu0 0.0
        %822 = vmatpush2.msra.mxu0 0.0
        %823 = vmatprep.subr.mxu0 0.0
        %824 = vmatpush2.msra.mxu0 0.0
        %825 = vmatprep.subr.mxu0 0.0
        %826 = vmatpush2.msra.mxu0 0.0
        %827 = vmatprep.subr.mxu0 0.0
        %828 = vmatpush2.msra.mxu0 0.0
        %829 = vmatprep.subr.mxu0 0.0
        %830 = vmatpush2.msra.mxu0 0.0
        %831 = vmatprep.subr.mxu0 0.0
        %832 = vmatpush2.msra.mxu0 0.0
        %833 = vmatprep.subr.mxu0 0.0
        %834 = vmatpush2.msra.mxu0 0.0
        %835 = vmatprep.subr.mxu0 0.0
        %836 = vmatpush2.msra.mxu0 0.0
        %837 = vmatprep.subr.mxu0 0.0
        %838 = vmatpush2.msra.mxu0 0.0
        %839 = vmatprep.subr.mxu0 0.0
        %840 = vmatpush2.msra.mxu0 0.0
        %841 = vmatprep.mubr.f32.mxu0 0.0
        %v842 = vand.u32 %v552, 4294901760
        %v843 = vsub.f32 %v552, %v842
        %v844 = vand.u32 %v843, 4294901760
        %v845 = vsub.f32 %v843, %v844
        %v846 = vand.u32 %v845, 4294901760
        %847 = vmatmul.mubr.f32.gmra.mxu0 %v846
        %v848 = vpop.f32.mrf.mxu0
        %v849 = vadd.f32 0.0, %v848
        %v850 = vpop.f32.mrf.mxu0
        %v851 = vadd.f32 0.0, %v850
        %852 = vdwg.mxu0
        %v853 = vand.u32 %v734, 4294901760
        %v854 = vsub.f32 %v734, %v853
        %v855 = vand.u32 %v854, 4294901760
        %v856 = vsub.f32 %v854, %v855
        %v857 = vand.u32 %v856, 4294901760
        %858 = vmatprep.subr.mxu0 %v857
        %v859 = vand.u32 %v733, 4294901760
        %v860 = vsub.f32 %v733, %v859
        %v861 = vand.u32 %v860, 4294901760
        %v862 = vsub.f32 %v860, %v861
        %v863 = vand.u32 %v862, 4294901760
        %864 = vmatpush1.msra.mxu0 %v863
        %v865 = vand.u32 %v722, 4294901760
        %v866 = vsub.f32 %v722, %v865
        %v867 = vand.u32 %v866, 4294901760
        %v868 = vsub.f32 %v866, %v867
        %v869 = vand.u32 %v868, 4294901760
        %870 = vmatprep.subr.mxu0 %v869
        %v871 = vand.u32 %v721, 4294901760
        %v872 = vsub.f32 %v721, %v871
        %v873 = vand.u32 %v872, 4294901760
        %v874 = vsub.f32 %v872, %v873
        %v875 = vand.u32 %v874, 4294901760
        %876 = vmatpush1.msra.mxu0 %v875
        %v877 = vand.u32 %v710, 4294901760
        %v878 = vsub.f32 %v710, %v877
        %v879 = vand.u32 %v878, 4294901760
        %v880 = vsub.f32 %v878, %v879
        %v881 = vand.u32 %v880, 4294901760
        %882 = vmatprep.subr.mxu0 %v881
        %v883 = vand.u32 %v709, 4294901760
        %v884 = vsub.f32 %v709, %v883
        %v885 = vand.u32 %v884, 4294901760
        %v886 = vsub.f32 %v884, %v885
        %v887 = vand.u32 %v886, 4294901760
        %888 = vmatpush1.msra.mxu0 %v887
        %v889 = vand.u32 %v698, 4294901760
        %v890 = vsub.f32 %v698, %v889
        %v891 = vand.u32 %v890, 4294901760
        %v892 = vsub.f32 %v890, %v891
        %v893 = vand.u32 %v892, 4294901760
        %894 = vmatprep.subr.mxu0 %v893
        %v895 = vand.u32 %v697, 4294901760
        %v896 = vsub.f32 %v697, %v895
        %v897 = vand.u32 %v896, 4294901760
        %v898 = vsub.f32 %v896, %v897
        %v899 = vand.u32 %v898, 4294901760
        %900 = vmatpush1.msra.mxu0 %v899
        %v901 = vand.u32 %v686, 4294901760
        %v902 = vsub.f32 %v686, %v901
        %v903 = vand.u32 %v902, 4294901760
        %v904 = vsub.f32 %v902, %v903
        %v905 = vand.u32 %v904, 4294901760
        %906 = vmatprep.subr.mxu0 %v905
        %v907 = vand.u32 %v685, 4294901760
        %v908 = vsub.f32 %v685, %v907
        %v909 = vand.u32 %v908, 4294901760
        %v910 = vsub.f32 %v908, %v909
        %v911 = vand.u32 %v910, 4294901760
        %912 = vmatpush1.msra.mxu0 %v911
        %v913 = vand.u32 %v674, 4294901760
        %v914 = vsub.f32 %v674, %v913
        %v915 = vand.u32 %v914, 4294901760
        %v916 = vsub.f32 %v914, %v915
        %v917 = vand.u32 %v916, 4294901760
        %918 = vmatprep.subr.mxu0 %v917
        %v919 = vand.u32 %v673, 4294901760
        %v920 = vsub.f32 %v673, %v919
        %v921 = vand.u32 %v920, 4294901760
        %v922 = vsub.f32 %v920, %v921
        %v923 = vand.u32 %v922, 4294901760
        %924 = vmatpush1.msra.mxu0 %v923
        %v925 = vand.u32 %v662, 4294901760
        %v926 = vsub.f32 %v662, %v925
        %v927 = vand.u32 %v926, 4294901760
        %v928 = vsub.f32 %v926, %v927
        %v929 = vand.u32 %v928, 4294901760
        %930 = vmatprep.subr.mxu0 %v929
        %v931 = vand.u32 %v661, 4294901760
        %v932 = vsub.f32 %v661, %v931
        %v933 = vand.u32 %v932, 4294901760
        %v934 = vsub.f32 %v932, %v933
        %v935 = vand.u32 %v934, 4294901760
        %936 = vmatpush1.msra.mxu0 %v935
        %v937 = vand.u32 %v650, 4294901760
        %v938 = vsub.f32 %v650, %v937
        %v939 = vand.u32 %v938, 4294901760
        %v940 = vsub.f32 %v938, %v939
        %v941 = vand.u32 %v940, 4294901760
        %942 = vmatprep.subr.mxu0 %v941
        %v943 = vand.u32 %v649, 4294901760
        %v944 = vsub.f32 %v649, %v943
        %v945 = vand.u32 %v944, 4294901760
        %v946 = vsub.f32 %v944, %v945
        %v947 = vand.u32 %v946, 4294901760
        %948 = vmatpush1.msra.mxu0 %v947
        %v949 = vand.u32 %v638, 4294901760
        %v950 = vsub.f32 %v638, %v949
        %v951 = vand.u32 %v950, 4294901760
        %v952 = vsub.f32 %v950, %v951
        %v953 = vand.u32 %v952, 4294901760
        %954 = vmatprep.subr.mxu0 %v953
        %v955 = vand.u32 %v637, 4294901760
        %v956 = vsub.f32 %v637, %v955
        %v957 = vand.u32 %v956, 4294901760
        %v958 = vsub.f32 %v956, %v957
        %v959 = vand.u32 %v958, 4294901760
        %960 = vmatpush1.msra.mxu0 %v959
        %v961 = vand.u32 %v626, 4294901760
        %v962 = vsub.f32 %v626, %v961
        %v963 = vand.u32 %v962, 4294901760
        %v964 = vsub.f32 %v962, %v963
        %v965 = vand.u32 %v964, 4294901760
        %966 = vmatprep.subr.mxu0 %v965
        %v967 = vand.u32 %v625, 4294901760
        %v968 = vsub.f32 %v625, %v967
        %v969 = vand.u32 %v968, 4294901760
        %v970 = vsub.f32 %v968, %v969
        %v971 = vand.u32 %v970, 4294901760
        %972 = vmatpush1.msra.mxu0 %v971
        %v973 = vand.u32 %v614, 4294901760
        %v974 = vsub.f32 %v614, %v973
        %v975 = vand.u32 %v974, 4294901760
        %v976 = vsub.f32 %v974, %v975
        %v977 = vand.u32 %v976, 4294901760
        %978 = vmatprep.subr.mxu0 %v977
        %v979 = vand.u32 %v613, 4294901760
        %v980 = vsub.f32 %v613, %v979
        %v981 = vand.u32 %v980, 4294901760
        %v982 = vsub.f32 %v980, %v981
        %v983 = vand.u32 %v982, 4294901760
        %984 = vmatpush1.msra.mxu0 %v983
        %v985 = vand.u32 %v602, 4294901760
        %v986 = vsub.f32 %v602, %v985
        %v987 = vand.u32 %v986, 4294901760
        %v988 = vsub.f32 %v986, %v987
        %v989 = vand.u32 %v988, 4294901760
        %990 = vmatprep.subr.mxu0 %v989
        %v991 = vand.u32 %v601, 4294901760
        %v992 = vsub.f32 %v601, %v991
        %v993 = vand.u32 %v992, 4294901760
        %v994 = vsub.f32 %v992, %v993
        %v995 = vand.u32 %v994, 4294901760
        %996 = vmatpush1.msra.mxu0 %v995
        %v997 = vand.u32 %v590, 4294901760
        %v998 = vsub.f32 %v590, %v997
        %v999 = vand.u32 %v998, 4294901760
        %v1000 = vsub.f32 %v998, %v999
        %v1001 = vand.u32 %v1000, 4294901760
        %1002 = vmatprep.subr.mxu0 %v1001
        %v1003 = vand.u32 %v589, 4294901760
        %v1004 = vsub.f32 %v589, %v1003
        %v1005 = vand.u32 %v1004, 4294901760
        %v1006 = vsub.f32 %v1004, %v1005
        %v1007 = vand.u32 %v1006, 4294901760
        %1008 = vmatpush1.msra.mxu0 %v1007
        %v1009 = vand.u32 %v578, 4294901760
        %v1010 = vsub.f32 %v578, %v1009
        %v1011 = vand.u32 %v1010, 4294901760
        %v1012 = vsub.f32 %v1010, %v1011
        %v1013 = vand.u32 %v1012, 4294901760
        %1014 = vmatprep.subr.mxu0 %v1013
        %v1015 = vand.u32 %v577, 4294901760
        %v1016 = vsub.f32 %v577, %v1015
        %v1017 = vand.u32 %v1016, 4294901760
        %v1018 = vsub.f32 %v1016, %v1017
        %v1019 = vand.u32 %v1018, 4294901760
        %1020 = vmatpush1.msra.mxu0 %v1019
        %v1021 = vand.u32 %v566, 4294901760
        %v1022 = vsub.f32 %v566, %v1021
        %v1023 = vand.u32 %v1022, 4294901760
        %v1024 = vsub.f32 %v1022, %v1023
        %v1025 = vand.u32 %v1024, 4294901760
        %1026 = vmatprep.subr.mxu0 %v1025
        %v1027 = vand.u32 %v565, 4294901760
        %v1028 = vsub.f32 %v565, %v1027
        %v1029 = vand.u32 %v1028, 4294901760
        %v1030 = vsub.f32 %v1028, %v1029
        %v1031 = vand.u32 %v1030, 4294901760
        %1032 = vmatpush1.msra.mxu0 %v1031
        %v1033 = vand.u32 %v554, 4294901760
        %v1034 = vsub.f32 %v554, %v1033
        %v1035 = vand.u32 %v1034, 4294901760
        %v1036 = vsub.f32 %v1034, %v1035
        %v1037 = vand.u32 %v1036, 4294901760
        %1038 = vmatprep.subr.mxu0 %v1037
        %v1039 = vand.u32 %v553, 4294901760
        %v1040 = vsub.f32 %v553, %v1039
        %v1041 = vand.u32 %v1040, 4294901760
        %v1042 = vsub.f32 %v1040, %v1041
        %v1043 = vand.u32 %v1042, 4294901760
        %1044 = vmatpush1.msra.mxu0 %v1043
        %1045 = vmatprep.subr.mxu0 0.0
        %1046 = vmatpush2.msra.mxu0 0.0
        %1047 = vmatprep.subr.mxu0 0.0
        %1048 = vmatpush2.msra.mxu0 0.0
        %1049 = vmatprep.subr.mxu0 0.0
        %1050 = vmatpush2.msra.mxu0 0.0
        %1051 = vmatprep.subr.mxu0 0.0
        %1052 = vmatpush2.msra.mxu0 0.0
        %1053 = vmatprep.subr.mxu0 0.0
        %1054 = vmatpush2.msra.mxu0 0.0
        %1055 = vmatprep.subr.mxu0 0.0
        %1056 = vmatpush2.msra.mxu0 0.0
        %1057 = vmatprep.subr.mxu0 0.0
        %1058 = vmatpush2.msra.mxu0 0.0
        %1059 = vmatprep.subr.mxu0 0.0
        %1060 = vmatpush2.msra.mxu0 0.0
        %1061 = vmatprep.subr.mxu0 0.0
        %1062 = vmatpush2.msra.mxu0 0.0
        %1063 = vmatprep.subr.mxu0 0.0
        %1064 = vmatpush2.msra.mxu0 0.0
        %1065 = vmatprep.subr.mxu0 0.0
        %1066 = vmatpush2.msra.mxu0 0.0
        %1067 = vmatprep.subr.mxu0 0.0
        %1068 = vmatpush2.msra.mxu0 0.0
        %1069 = vmatprep.subr.mxu0 0.0
        %1070 = vmatpush2.msra.mxu0 0.0
        %1071 = vmatprep.subr.mxu0 0.0
        %1072 = vmatpush2.msra.mxu0 0.0
        %1073 = vmatprep.subr.mxu0 0.0
        %1074 = vmatpush2.msra.mxu0 0.0
        %1075 = vmatprep.subr.mxu0 0.0
        %1076 = vmatpush2.msra.mxu0 0.0
        %1077 = vmatprep.mubr.f32.mxu0 0.0
        %v1078 = vand.u32 %v552, 4294901760
        %1079 = vmatmul.mubr.f32.gmra.mxu0 %v1078
        %v1080 = vpop.f32.mrf.mxu0
        %v1081 = vadd.f32 %v849, %v1080
        %v1082 = vpop.f32.mrf.mxu0
        %v1083 = vadd.f32 %v851, %v1082
        %1084 = vdwg.mxu0
        %v1085 = vand.u32 %v734, 4294901760
        %v1086 = vsub.f32 %v734, %v1085
        %1087 = vmatprep.subr.mxu0 %v1086
        %v1088 = vand.u32 %v733, 4294901760
        %v1089 = vsub.f32 %v733, %v1088
        %1090 = vmatpush1.msra.mxu0 %v1089
        %v1091 = vand.u32 %v722, 4294901760
        %v1092 = vsub.f32 %v722, %v1091
        %1093 = vmatprep.subr.mxu0 %v1092
        %v1094 = vand.u32 %v721, 4294901760
        %v1095 = vsub.f32 %v721, %v1094
        %1096 = vmatpush1.msra.mxu0 %v1095
        %v1097 = vand.u32 %v710, 4294901760
        %v1098 = vsub.f32 %v710, %v1097
        %1099 = vmatprep.subr.mxu0 %v1098
        %v1100 = vand.u32 %v709, 4294901760
        %v1101 = vsub.f32 %v709, %v1100
        %1102 = vmatpush1.msra.mxu0 %v1101
        %v1103 = vand.u32 %v698, 4294901760
        %v1104 = vsub.f32 %v698, %v1103
        %1105 = vmatprep.subr.mxu0 %v1104
        %v1106 = vand.u32 %v697, 4294901760
        %v1107 = vsub.f32 %v697, %v1106
        %1108 = vmatpush1.msra.mxu0 %v1107
        %v1109 = vand.u32 %v686, 4294901760
        %v1110 = vsub.f32 %v686, %v1109
        %1111 = vmatprep.subr.mxu0 %v1110
        %v1112 = vand.u32 %v685, 4294901760
        %v1113 = vsub.f32 %v685, %v1112
        %1114 = vmatpush1.msra.mxu0 %v1113
        %v1115 = vand.u32 %v674, 4294901760
        %v1116 = vsub.f32 %v674, %v1115
        %1117 = vmatprep.subr.mxu0 %v1116
        %v1118 = vand.u32 %v673, 4294901760
        %v1119 = vsub.f32 %v673, %v1118
        %1120 = vmatpush1.msra.mxu0 %v1119
        %v1121 = vand.u32 %v662, 4294901760
        %v1122 = vsub.f32 %v662, %v1121
        %1123 = vmatprep.subr.mxu0 %v1122
        %v1124 = vand.u32 %v661, 4294901760
        %v1125 = vsub.f32 %v661, %v1124
        %1126 = vmatpush1.msra.mxu0 %v1125
        %v1127 = vand.u32 %v650, 4294901760
        %v1128 = vsub.f32 %v650, %v1127
        %1129 = vmatprep.subr.mxu0 %v1128
        %v1130 = vand.u32 %v649, 4294901760
        %v1131 = vsub.f32 %v649, %v1130
        %1132 = vmatpush1.msra.mxu0 %v1131
        %v1133 = vand.u32 %v638, 4294901760
        %v1134 = vsub.f32 %v638, %v1133
        %1135 = vmatprep.subr.mxu0 %v1134
        %v1136 = vand.u32 %v637, 4294901760
        %v1137 = vsub.f32 %v637, %v1136
        %1138 = vmatpush1.msra.mxu0 %v1137
        %v1139 = vand.u32 %v626, 4294901760
        %v1140 = vsub.f32 %v626, %v1139
        %1141 = vmatprep.subr.mxu0 %v1140
        %v1142 = vand.u32 %v625, 4294901760
        %v1143 = vsub.f32 %v625, %v1142
        %1144 = vmatpush1.msra.mxu0 %v1143
        %v1145 = vand.u32 %v614, 4294901760
        %v1146 = vsub.f32 %v614, %v1145
        %1147 = vmatprep.subr.mxu0 %v1146
        %v1148 = vand.u32 %v613, 4294901760
        %v1149 = vsub.f32 %v613, %v1148
        %1150 = vmatpush1.msra.mxu0 %v1149
        %v1151 = vand.u32 %v602, 4294901760
        %v1152 = vsub.f32 %v602, %v1151
        %1153 = vmatprep.subr.mxu0 %v1152
        %v1154 = vand.u32 %v601, 4294901760
        %v1155 = vsub.f32 %v601, %v1154
        %1156 = vmatpush1.msra.mxu0 %v1155
        %v1157 = vand.u32 %v590, 4294901760
        %v1158 = vsub.f32 %v590, %v1157
        %1159 = vmatprep.subr.mxu0 %v1158
        %v1160 = vand.u32 %v589, 4294901760
        %v1161 = vsub.f32 %v589, %v1160
        %1162 = vmatpush1.msra.mxu0 %v1161
        %v1163 = vand.u32 %v578, 4294901760
        %v1164 = vsub.f32 %v578, %v1163
        %1165 = vmatprep.subr.mxu0 %v1164
        %v1166 = vand.u32 %v577, 4294901760
        %v1167 = vsub.f32 %v577, %v1166
        %1168 = vmatpush1.msra.mxu0 %v1167
        %v1169 = vand.u32 %v566, 4294901760
        %v1170 = vsub.f32 %v566, %v1169
        %1171 = vmatprep.subr.mxu0 %v1170
        %v1172 = vand.u32 %v565, 4294901760
        %v1173 = vsub.f32 %v565, %v1172
        %1174 = vmatpush1.msra.mxu0 %v1173
        %v1175 = vand.u32 %v554, 4294901760
        %v1176 = vsub.f32 %v554, %v1175
        %1177 = vmatprep.subr.mxu0 %v1176
        %v1178 = vand.u32 %v553, 4294901760
        %v1179 = vsub.f32 %v553, %v1178
        %1180 = vmatpush1.msra.mxu0 %v1179
        %1181 = vmatprep.subr.mxu0 0.0
        %1182 = vmatpush2.msra.mxu0 0.0
        %1183 = vmatprep.subr.mxu0 0.0
        %1184 = vmatpush2.msra.mxu0 0.0
        %1185 = vmatprep.subr.mxu0 0.0
        %1186 = vmatpush2.msra.mxu0 0.0
        %1187 = vmatprep.subr.mxu0 0.0
        %1188 = vmatpush2.msra.mxu0 0.0
        %1189 = vmatprep.subr.mxu0 0.0
        %1190 = vmatpush2.msra.mxu0 0.0
        %1191 = vmatprep.subr.mxu0 0.0
        %1192 = vmatpush2.msra.mxu0 0.0
        %1193 = vmatprep.subr.mxu0 0.0
        %1194 = vmatpush2.msra.mxu0 0.0
        %1195 = vmatprep.subr.mxu0 0.0
        %1196 = vmatpush2.msra.mxu0 0.0
        %1197 = vmatprep.subr.mxu0 0.0
        %1198 = vmatpush2.msra.mxu0 0.0
        %1199 = vmatprep.subr.mxu0 0.0
        %1200 = vmatpush2.msra.mxu0 0.0
        %1201 = vmatprep.subr.mxu0 0.0
        %1202 = vmatpush2.msra.mxu0 0.0
        %1203 = vmatprep.subr.mxu0 0.0
        %1204 = vmatpush2.msra.mxu0 0.0
        %1205 = vmatprep.subr.mxu0 0.0
        %1206 = vmatpush2.msra.mxu0 0.0
        %1207 = vmatprep.subr.mxu0 0.0
        %1208 = vmatpush2.msra.mxu0 0.0
        %1209 = vmatprep.subr.mxu0 0.0
        %1210 = vmatpush2.msra.mxu0 0.0
        %1211 = vmatprep.subr.mxu0 0.0
        %1212 = vmatpush2.msra.mxu0 0.0
        %1213 = vmatprep.mubr.f32.mxu0 0.0
        %v1214 = vand.u32 %v552, 4294901760
        %v1215 = vsub.f32 %v552, %v1214
        %1216 = vmatmul.mubr.f32.gmra.mxu0 %v1215
        %v1217 = vpop.f32.mrf.mxu0
        %v1218 = vadd.f32 %v1081, %v1217
        %v1219 = vpop.f32.mrf.mxu0
        %v1220 = vadd.f32 %v1083, %v1219
        %1221 = vdwg.mxu0
        %v1222 = vand.u32 %v734, 4294901760
        %1223 = vmatprep.subr.mxu0 %v1222
        %v1224 = vand.u32 %v733, 4294901760
        %1225 = vmatpush1.msra.mxu0 %v1224
        %v1226 = vand.u32 %v722, 4294901760
        %1227 = vmatprep.subr.mxu0 %v1226
        %v1228 = vand.u32 %v721, 4294901760
        %1229 = vmatpush1.msra.mxu0 %v1228
        %v1230 = vand.u32 %v710, 4294901760
        %1231 = vmatprep.subr.mxu0 %v1230
        %v1232 = vand.u32 %v709, 4294901760
        %1233 = vmatpush1.msra.mxu0 %v1232
        %v1234 = vand.u32 %v698, 4294901760
        %1235 = vmatprep.subr.mxu0 %v1234
        %v1236 = vand.u32 %v697, 4294901760
        %1237 = vmatpush1.msra.mxu0 %v1236
        %v1238 = vand.u32 %v686, 4294901760
        %1239 = vmatprep.subr.mxu0 %v1238
        %v1240 = vand.u32 %v685, 4294901760
        %1241 = vmatpush1.msra.mxu0 %v1240
        %v1242 = vand.u32 %v674, 4294901760
        %1243 = vmatprep.subr.mxu0 %v1242
        %v1244 = vand.u32 %v673, 4294901760
        %1245 = vmatpush1.msra.mxu0 %v1244
        %v1246 = vand.u32 %v662, 4294901760
        %1247 = vmatprep.subr.mxu0 %v1246
        %v1248 = vand.u32 %v661, 4294901760
        %1249 = vmatpush1.msra.mxu0 %v1248
        %v1250 = vand.u32 %v650, 4294901760
        %1251 = vmatprep.subr.mxu0 %v1250
        %v1252 = vand.u32 %v649, 4294901760
        %1253 = vmatpush1.msra.mxu0 %v1252
        %v1254 = vand.u32 %v638, 4294901760
        %1255 = vmatprep.subr.mxu0 %v1254
        %v1256 = vand.u32 %v637, 4294901760
        %1257 = vmatpush1.msra.mxu0 %v1256
        %v1258 = vand.u32 %v626, 4294901760
        %1259 = vmatprep.subr.mxu0 %v1258
        %v1260 = vand.u32 %v625, 4294901760
        %1261 = vmatpush1.msra.mxu0 %v1260
        %v1262 = vand.u32 %v614, 4294901760
        %1263 = vmatprep.subr.mxu0 %v1262
        %v1264 = vand.u32 %v613, 4294901760
        %1265 = vmatpush1.msra.mxu0 %v1264
        %v1266 = vand.u32 %v602, 4294901760
        %1267 = vmatprep.subr.mxu0 %v1266
        %v1268 = vand.u32 %v601, 4294901760
        %1269 = vmatpush1.msra.mxu0 %v1268
        %v1270 = vand.u32 %v590, 4294901760
        %1271 = vmatprep.subr.mxu0 %v1270
        %v1272 = vand.u32 %v589, 4294901760
        %1273 = vmatpush1.msra.mxu0 %v1272
        %v1274 = vand.u32 %v578, 4294901760
        %1275 = vmatprep.subr.mxu0 %v1274
        %v1276 = vand.u32 %v577, 4294901760
        %1277 = vmatpush1.msra.mxu0 %v1276
        %v1278 = vand.u32 %v566, 4294901760
        %1279 = vmatprep.subr.mxu0 %v1278
        %v1280 = vand.u32 %v565, 4294901760
        %1281 = vmatpush1.msra.mxu0 %v1280
        %v1282 = vand.u32 %v554, 4294901760
        %1283 = vmatprep.subr.mxu0 %v1282
        %v1284 = vand.u32 %v553, 4294901760
        %1285 = vmatpush1.msra.mxu0 %v1284
        %1286 = vmatprep.subr.mxu0 0.0
        %1287 = vmatpush2.msra.mxu0 0.0
        %1288 = vmatprep.subr.mxu0 0.0
        %1289 = vmatpush2.msra.mxu0 0.0
        %1290 = vmatprep.subr.mxu0 0.0
        %1291 = vmatpush2.msra.mxu0 0.0
        %1292 = vmatprep.subr.mxu0 0.0
        %1293 = vmatpush2.msra.mxu0 0.0
        %1294 = vmatprep.subr.mxu0 0.0
        %1295 = vmatpush2.msra.mxu0 0.0
        %1296 = vmatprep.subr.mxu0 0.0
        %1297 = vmatpush2.msra.mxu0 0.0
        %1298 = vmatprep.subr.mxu0 0.0
        %1299 = vmatpush2.msra.mxu0 0.0
        %1300 = vmatprep.subr.mxu0 0.0
        %1301 = vmatpush2.msra.mxu0 0.0
        %1302 = vmatprep.subr.mxu0 0.0
        %1303 = vmatpush2.msra.mxu0 0.0
        %1304 = vmatprep.subr.mxu0 0.0
        %1305 = vmatpush2.msra.mxu0 0.0
        %1306 = vmatprep.subr.mxu0 0.0
        %1307 = vmatpush2.msra.mxu0 0.0
        %1308 = vmatprep.subr.mxu0 0.0
        %1309 = vmatpush2.msra.mxu0 0.0
        %1310 = vmatprep.subr.mxu0 0.0
        %1311 = vmatpush2.msra.mxu0 0.0
        %1312 = vmatprep.subr.mxu0 0.0
        %1313 = vmatpush2.msra.mxu0 0.0
        %1314 = vmatprep.subr.mxu0 0.0
        %1315 = vmatpush2.msra.mxu0 0.0
        %1316 = vmatprep.subr.mxu0 0.0
        %1317 = vmatpush2.msra.mxu0 0.0
        %1318 = vmatprep.mubr.f32.mxu0 0.0
        %v1319 = vand.u32 %v552, 4294901760
        %v1320 = vsub.f32 %v552, %v1319
        %v1321 = vand.u32 %v1320, 4294901760
        %1322 = vmatmul.mubr.f32.gmra.mxu0 %v1321
        %v1323 = vpop.f32.mrf.mxu0
        %v1324 = vadd.f32 %v1218, %v1323
        %v1325 = vpop.f32.mrf.mxu0
        %v1326 = vadd.f32 %v1220, %v1325
        %1327 = vdwg.mxu0
        %v1328 = vand.u32 %v734, 4294901760
        %v1329 = vsub.f32 %v734, %v1328
        %v1330 = vand.u32 %v1329, 4294901760
        %1331 = vmatprep.subr.mxu0 %v1330
        %v1332 = vand.u32 %v733, 4294901760
        %v1333 = vsub.f32 %v733, %v1332
        %v1334 = vand.u32 %v1333, 4294901760
        %1335 = vmatpush1.msra.mxu0 %v1334
        %v1336 = vand.u32 %v722, 4294901760
        %v1337 = vsub.f32 %v722, %v1336
        %v1338 = vand.u32 %v1337, 4294901760
        %1339 = vmatprep.subr.mxu0 %v1338
        %v1340 = vand.u32 %v721, 4294901760
        %v1341 = vsub.f32 %v721, %v1340
        %v1342 = vand.u32 %v1341, 4294901760
        %1343 = vmatpush1.msra.mxu0 %v1342
        %v1344 = vand.u32 %v710, 4294901760
        %v1345 = vsub.f32 %v710, %v1344
        %v1346 = vand.u32 %v1345, 4294901760
        %1347 = vmatprep.subr.mxu0 %v1346
        %v1348 = vand.u32 %v709, 4294901760
        %v1349 = vsub.f32 %v709, %v1348
        %v1350 = vand.u32 %v1349, 4294901760
        %1351 = vmatpush1.msra.mxu0 %v1350
        %v1352 = vand.u32 %v698, 4294901760
        %v1353 = vsub.f32 %v698, %v1352
        %v1354 = vand.u32 %v1353, 4294901760
        %1355 = vmatprep.subr.mxu0 %v1354
        %v1356 = vand.u32 %v697, 4294901760
        %v1357 = vsub.f32 %v697, %v1356
        %v1358 = vand.u32 %v1357, 4294901760
        %1359 = vmatpush1.msra.mxu0 %v1358
        %v1360 = vand.u32 %v686, 4294901760
        %v1361 = vsub.f32 %v686, %v1360
        %v1362 = vand.u32 %v1361, 4294901760
        %1363 = vmatprep.subr.mxu0 %v1362
        %v1364 = vand.u32 %v685, 4294901760
        %v1365 = vsub.f32 %v685, %v1364
        %v1366 = vand.u32 %v1365, 4294901760
        %1367 = vmatpush1.msra.mxu0 %v1366
        %v1368 = vand.u32 %v674, 4294901760
        %v1369 = vsub.f32 %v674, %v1368
        %v1370 = vand.u32 %v1369, 4294901760
        %1371 = vmatprep.subr.mxu0 %v1370
        %v1372 = vand.u32 %v673, 4294901760
        %v1373 = vsub.f32 %v673, %v1372
        %v1374 = vand.u32 %v1373, 4294901760
        %1375 = vmatpush1.msra.mxu0 %v1374
        %v1376 = vand.u32 %v662, 4294901760
        %v1377 = vsub.f32 %v662, %v1376
        %v1378 = vand.u32 %v1377, 4294901760
        %1379 = vmatprep.subr.mxu0 %v1378
        %v1380 = vand.u32 %v661, 4294901760
        %v1381 = vsub.f32 %v661, %v1380
        %v1382 = vand.u32 %v1381, 4294901760
        %1383 = vmatpush1.msra.mxu0 %v1382
        %v1384 = vand.u32 %v650, 4294901760
        %v1385 = vsub.f32 %v650, %v1384
        %v1386 = vand.u32 %v1385, 4294901760
        %1387 = vmatprep.subr.mxu0 %v1386
        %v1388 = vand.u32 %v649, 4294901760
        %v1389 = vsub.f32 %v649, %v1388
        %v1390 = vand.u32 %v1389, 4294901760
        %1391 = vmatpush1.msra.mxu0 %v1390
        %v1392 = vand.u32 %v638, 4294901760
        %v1393 = vsub.f32 %v638, %v1392
        %v1394 = vand.u32 %v1393, 4294901760
        %1395 = vmatprep.subr.mxu0 %v1394
        %v1396 = vand.u32 %v637, 4294901760
        %v1397 = vsub.f32 %v637, %v1396
        %v1398 = vand.u32 %v1397, 4294901760
        %1399 = vmatpush1.msra.mxu0 %v1398
        %v1400 = vand.u32 %v626, 4294901760
        %v1401 = vsub.f32 %v626, %v1400
        %v1402 = vand.u32 %v1401, 4294901760
        %1403 = vmatprep.subr.mxu0 %v1402
        %v1404 = vand.u32 %v625, 4294901760
        %v1405 = vsub.f32 %v625, %v1404
        %v1406 = vand.u32 %v1405, 4294901760
        %1407 = vmatpush1.msra.mxu0 %v1406
        %v1408 = vand.u32 %v614, 4294901760
        %v1409 = vsub.f32 %v614, %v1408
        %v1410 = vand.u32 %v1409, 4294901760
        %1411 = vmatprep.subr.mxu0 %v1410
        %v1412 = vand.u32 %v613, 4294901760
        %v1413 = vsub.f32 %v613, %v1412
        %v1414 = vand.u32 %v1413, 4294901760
        %1415 = vmatpush1.msra.mxu0 %v1414
        %v1416 = vand.u32 %v602, 4294901760
        %v1417 = vsub.f32 %v602, %v1416
        %v1418 = vand.u32 %v1417, 4294901760
        %1419 = vmatprep.subr.mxu0 %v1418
        %v1420 = vand.u32 %v601, 4294901760
        %v1421 = vsub.f32 %v601, %v1420
        %v1422 = vand.u32 %v1421, 4294901760
        %1423 = vmatpush1.msra.mxu0 %v1422
        %v1424 = vand.u32 %v590, 4294901760
        %v1425 = vsub.f32 %v590, %v1424
        %v1426 = vand.u32 %v1425, 4294901760
        %1427 = vmatprep.subr.mxu0 %v1426
        %v1428 = vand.u32 %v589, 4294901760
        %v1429 = vsub.f32 %v589, %v1428
        %v1430 = vand.u32 %v1429, 4294901760
        %1431 = vmatpush1.msra.mxu0 %v1430
        %v1432 = vand.u32 %v578, 4294901760
        %v1433 = vsub.f32 %v578, %v1432
        %v1434 = vand.u32 %v1433, 4294901760
        %1435 = vmatprep.subr.mxu0 %v1434
        %v1436 = vand.u32 %v577, 4294901760
        %v1437 = vsub.f32 %v577, %v1436
        %v1438 = vand.u32 %v1437, 4294901760
        %1439 = vmatpush1.msra.mxu0 %v1438
        %v1440 = vand.u32 %v566, 4294901760
        %v1441 = vsub.f32 %v566, %v1440
        %v1442 = vand.u32 %v1441, 4294901760
        %1443 = vmatprep.subr.mxu0 %v1442
        %v1444 = vand.u32 %v565, 4294901760
        %v1445 = vsub.f32 %v565, %v1444
        %v1446 = vand.u32 %v1445, 4294901760
        %1447 = vmatpush1.msra.mxu0 %v1446
        %v1448 = vand.u32 %v554, 4294901760
        %v1449 = vsub.f32 %v554, %v1448
        %v1450 = vand.u32 %v1449, 4294901760
        %1451 = vmatprep.subr.mxu0 %v1450
        %v1452 = vand.u32 %v553, 4294901760
        %v1453 = vsub.f32 %v553, %v1452
        %v1454 = vand.u32 %v1453, 4294901760
        %1455 = vmatpush1.msra.mxu0 %v1454
        %1456 = vmatprep.subr.mxu0 0.0
        %1457 = vmatpush2.msra.mxu0 0.0
        %1458 = vmatprep.subr.mxu0 0.0
        %1459 = vmatpush2.msra.mxu0 0.0
        %1460 = vmatprep.subr.mxu0 0.0
        %1461 = vmatpush2.msra.mxu0 0.0
        %1462 = vmatprep.subr.mxu0 0.0
        %1463 = vmatpush2.msra.mxu0 0.0
        %1464 = vmatprep.subr.mxu0 0.0
        %1465 = vmatpush2.msra.mxu0 0.0
        %1466 = vmatprep.subr.mxu0 0.0
        %1467 = vmatpush2.msra.mxu0 0.0
        %1468 = vmatprep.subr.mxu0 0.0
        %1469 = vmatpush2.msra.mxu0 0.0
        %1470 = vmatprep.subr.mxu0 0.0
        %1471 = vmatpush2.msra.mxu0 0.0
        %1472 = vmatprep.subr.mxu0 0.0
        %1473 = vmatpush2.msra.mxu0 0.0
        %1474 = vmatprep.subr.mxu0 0.0
        %1475 = vmatpush2.msra.mxu0 0.0
        %1476 = vmatprep.subr.mxu0 0.0
        %1477 = vmatpush2.msra.mxu0 0.0
        %1478 = vmatprep.subr.mxu0 0.0
        %1479 = vmatpush2.msra.mxu0 0.0
        %1480 = vmatprep.subr.mxu0 0.0
        %1481 = vmatpush2.msra.mxu0 0.0
        %1482 = vmatprep.subr.mxu0 0.0
        %1483 = vmatpush2.msra.mxu0 0.0
        %1484 = vmatprep.subr.mxu0 0.0
        %1485 = vmatpush2.msra.mxu0 0.0
        %1486 = vmatprep.subr.mxu0 0.0
        %1487 = vmatpush2.msra.mxu0 0.0
        %1488 = vmatprep.mubr.f32.mxu0 0.0
        %v1489 = vand.u32 %v552, 4294901760
        %1490 = vmatmul.mubr.f32.gmra.mxu0 %v1489
        %v1491 = vpop.f32.mrf.mxu0
        %v1492 = vadd.f32 %v1324, %v1491
        %v1493 = vpop.f32.mrf.mxu0
        %v1494 = vadd.f32 %v1326, %v1493
        %1495 = vdwg.mxu0
        %v1496 = vand.u32 %v734, 4294901760
        %1497 = vmatprep.subr.mxu0 %v1496
        %v1498 = vand.u32 %v733, 4294901760
        %1499 = vmatpush1.msra.mxu0 %v1498
        %v1500 = vand.u32 %v722, 4294901760
        %1501 = vmatprep.subr.mxu0 %v1500
        %v1502 = vand.u32 %v721, 4294901760
        %1503 = vmatpush1.msra.mxu0 %v1502
        %v1504 = vand.u32 %v710, 4294901760
        %1505 = vmatprep.subr.mxu0 %v1504
        %v1506 = vand.u32 %v709, 4294901760
        %1507 = vmatpush1.msra.mxu0 %v1506
        %v1508 = vand.u32 %v698, 4294901760
        %1509 = vmatprep.subr.mxu0 %v1508
        %v1510 = vand.u32 %v697, 4294901760
        %1511 = vmatpush1.msra.mxu0 %v1510
        %v1512 = vand.u32 %v686, 4294901760
        %1513 = vmatprep.subr.mxu0 %v1512
        %v1514 = vand.u32 %v685, 4294901760
        %1515 = vmatpush1.msra.mxu0 %v1514
        %v1516 = vand.u32 %v674, 4294901760
        %1517 = vmatprep.subr.mxu0 %v1516
        %v1518 = vand.u32 %v673, 4294901760
        %1519 = vmatpush1.msra.mxu0 %v1518
        %v1520 = vand.u32 %v662, 4294901760
        %1521 = vmatprep.subr.mxu0 %v1520
        %v1522 = vand.u32 %v661, 4294901760
        %1523 = vmatpush1.msra.mxu0 %v1522
        %v1524 = vand.u32 %v650, 4294901760
        %1525 = vmatprep.subr.mxu0 %v1524
        %v1526 = vand.u32 %v649, 4294901760
        %1527 = vmatpush1.msra.mxu0 %v1526
        %v1528 = vand.u32 %v638, 4294901760
        %1529 = vmatprep.subr.mxu0 %v1528
        %v1530 = vand.u32 %v637, 4294901760
        %1531 = vmatpush1.msra.mxu0 %v1530
        %v1532 = vand.u32 %v626, 4294901760
        %1533 = vmatprep.subr.mxu0 %v1532
        %v1534 = vand.u32 %v625, 4294901760
        %1535 = vmatpush1.msra.mxu0 %v1534
        %v1536 = vand.u32 %v614, 4294901760
        %1537 = vmatprep.subr.mxu0 %v1536
        %v1538 = vand.u32 %v613, 4294901760
        %1539 = vmatpush1.msra.mxu0 %v1538
        %v1540 = vand.u32 %v602, 4294901760
        %1541 = vmatprep.subr.mxu0 %v1540
        %v1542 = vand.u32 %v601, 4294901760
        %1543 = vmatpush1.msra.mxu0 %v1542
        %v1544 = vand.u32 %v590, 4294901760
        %1545 = vmatprep.subr.mxu0 %v1544
        %v1546 = vand.u32 %v589, 4294901760
        %1547 = vmatpush1.msra.mxu0 %v1546
        %v1548 = vand.u32 %v578, 4294901760
        %1549 = vmatprep.subr.mxu0 %v1548
        %v1550 = vand.u32 %v577, 4294901760
        %1551 = vmatpush1.msra.mxu0 %v1550
        %v1552 = vand.u32 %v566, 4294901760
        %1553 = vmatprep.subr.mxu0 %v1552
        %v1554 = vand.u32 %v565, 4294901760
        %1555 = vmatpush1.msra.mxu0 %v1554
        %v1556 = vand.u32 %v554, 4294901760
        %1557 = vmatprep.subr.mxu0 %v1556
        %v1558 = vand.u32 %v553, 4294901760
        %1559 = vmatpush1.msra.mxu0 %v1558
        %1560 = vmatprep.subr.mxu0 0.0
        %1561 = vmatpush2.msra.mxu0 0.0
        %1562 = vmatprep.subr.mxu0 0.0
        %1563 = vmatpush2.msra.mxu0 0.0
        %1564 = vmatprep.subr.mxu0 0.0
        %1565 = vmatpush2.msra.mxu0 0.0
        %1566 = vmatprep.subr.mxu0 0.0
        %1567 = vmatpush2.msra.mxu0 0.0
        %1568 = vmatprep.subr.mxu0 0.0
        %1569 = vmatpush2.msra.mxu0 0.0
        %1570 = vmatprep.subr.mxu0 0.0
        %1571 = vmatpush2.msra.mxu0 0.0
        %1572 = vmatprep.subr.mxu0 0.0
        %1573 = vmatpush2.msra.mxu0 0.0
        %1574 = vmatprep.subr.mxu0 0.0
        %1575 = vmatpush2.msra.mxu0 0.0
        %1576 = vmatprep.subr.mxu0 0.0
        %1577 = vmatpush2.msra.mxu0 0.0
        %1578 = vmatprep.subr.mxu0 0.0
        %1579 = vmatpush2.msra.mxu0 0.0
        %1580 = vmatprep.subr.mxu0 0.0
        %1581 = vmatpush2.msra.mxu0 0.0
        %1582 = vmatprep.subr.mxu0 0.0
        %1583 = vmatpush2.msra.mxu0 0.0
        %1584 = vmatprep.subr.mxu0 0.0
        %1585 = vmatpush2.msra.mxu0 0.0
        %1586 = vmatprep.subr.mxu0 0.0
        %1587 = vmatpush2.msra.mxu0 0.0
        %1588 = vmatprep.subr.mxu0 0.0
        %1589 = vmatpush2.msra.mxu0 0.0
        %1590 = vmatprep.subr.mxu0 0.0
        %1591 = vmatpush2.msra.mxu0 0.0
        %1592 = vmatprep.mubr.f32.mxu0 0.0
        %v1593 = vand.u32 %v552, 4294901760
        %1594 = vmatmul.mubr.f32.gmra.mxu0 %v1593
        %v1595 = vpop.f32.mrf.mxu0
        %v1596 = vadd.f32 %v1492, %v1595
        %v1597 = vpop.f32.mrf.mxu0
        %v1598 = vadd.f32 %v1494, %v1597
        %1599 = vdwg.mxu0
        %v1600 = vand.u32 %v736, 4294901760
        %1601 = vmatprep.subr.mxu0 %v1600
        %v1602 = vand.u32 %v735, 4294901760
        %1603 = vmatpush1.msra.mxu0 %v1602
        %v1604 = vand.u32 %v724, 4294901760
        %1605 = vmatprep.subr.mxu0 %v1604
        %v1606 = vand.u32 %v723, 4294901760
        %1607 = vmatpush1.msra.mxu0 %v1606
        %v1608 = vand.u32 %v712, 4294901760
        %1609 = vmatprep.subr.mxu0 %v1608
        %v1610 = vand.u32 %v711, 4294901760
        %1611 = vmatpush1.msra.mxu0 %v1610
        %v1612 = vand.u32 %v700, 4294901760
        %1613 = vmatprep.subr.mxu0 %v1612
        %v1614 = vand.u32 %v699, 4294901760
        %1615 = vmatpush1.msra.mxu0 %v1614
        %v1616 = vand.u32 %v688, 4294901760
        %1617 = vmatprep.subr.mxu0 %v1616
        %v1618 = vand.u32 %v687, 4294901760
        %1619 = vmatpush1.msra.mxu0 %v1618
        %v1620 = vand.u32 %v676, 4294901760
        %1621 = vmatprep.subr.mxu0 %v1620
        %v1622 = vand.u32 %v675, 4294901760
        %1623 = vmatpush1.msra.mxu0 %v1622
        %v1624 = vand.u32 %v664, 4294901760
        %1625 = vmatprep.subr.mxu0 %v1624
        %v1626 = vand.u32 %v663, 4294901760
        %1627 = vmatpush1.msra.mxu0 %v1626
        %v1628 = vand.u32 %v652, 4294901760
        %1629 = vmatprep.subr.mxu0 %v1628
        %v1630 = vand.u32 %v651, 4294901760
        %1631 = vmatpush1.msra.mxu0 %v1630
        %v1632 = vand.u32 %v640, 4294901760
        %1633 = vmatprep.subr.mxu0 %v1632
        %v1634 = vand.u32 %v639, 4294901760
        %1635 = vmatpush1.msra.mxu0 %v1634
        %v1636 = vand.u32 %v628, 4294901760
        %1637 = vmatprep.subr.mxu0 %v1636
        %v1638 = vand.u32 %v627, 4294901760
        %1639 = vmatpush1.msra.mxu0 %v1638
        %v1640 = vand.u32 %v616, 4294901760
        %1641 = vmatprep.subr.mxu0 %v1640
        %v1642 = vand.u32 %v615, 4294901760
        %1643 = vmatpush1.msra.mxu0 %v1642
        %v1644 = vand.u32 %v604, 4294901760
        %1645 = vmatprep.subr.mxu0 %v1644
        %v1646 = vand.u32 %v603, 4294901760
        %1647 = vmatpush1.msra.mxu0 %v1646
        %v1648 = vand.u32 %v592, 4294901760
        %1649 = vmatprep.subr.mxu0 %v1648
        %v1650 = vand.u32 %v591, 4294901760
        %1651 = vmatpush1.msra.mxu0 %v1650
        %v1652 = vand.u32 %v580, 4294901760
        %1653 = vmatprep.subr.mxu0 %v1652
        %v1654 = vand.u32 %v579, 4294901760
        %1655 = vmatpush1.msra.mxu0 %v1654
        %v1656 = vand.u32 %v568, 4294901760
        %1657 = vmatprep.subr.mxu0 %v1656
        %v1658 = vand.u32 %v567, 4294901760
        %1659 = vmatpush1.msra.mxu0 %v1658
        %v1660 = vand.u32 %v556, 4294901760
        %1661 = vmatprep.subr.mxu0 %v1660
        %v1662 = vand.u32 %v555, 4294901760
        %1663 = vmatpush1.msra.mxu0 %v1662
        %1664 = vmatprep.subr.mxu0 0.0
        %1665 = vmatpush2.msra.mxu0 0.0
        %1666 = vmatprep.subr.mxu0 0.0
        %1667 = vmatpush2.msra.mxu0 0.0
        %1668 = vmatprep.subr.mxu0 0.0
        %1669 = vmatpush2.msra.mxu0 0.0
        %1670 = vmatprep.subr.mxu0 0.0
        %1671 = vmatpush2.msra.mxu0 0.0
        %1672 = vmatprep.subr.mxu0 0.0
        %1673 = vmatpush2.msra.mxu0 0.0
        %1674 = vmatprep.subr.mxu0 0.0
        %1675 = vmatpush2.msra.mxu0 0.0
        %1676 = vmatprep.subr.mxu0 0.0
        %1677 = vmatpush2.msra.mxu0 0.0
        %1678 = vmatprep.subr.mxu0 0.0
        %1679 = vmatpush2.msra.mxu0 0.0
        %1680 = vmatprep.subr.mxu0 0.0
        %1681 = vmatpush2.msra.mxu0 0.0
        %1682 = vmatprep.subr.mxu0 0.0
        %1683 = vmatpush2.msra.mxu0 0.0
        %1684 = vmatprep.subr.mxu0 0.0
        %1685 = vmatpush2.msra.mxu0 0.0
        %1686 = vmatprep.subr.mxu0 0.0
        %1687 = vmatpush2.msra.mxu0 0.0
        %1688 = vmatprep.subr.mxu0 0.0
        %1689 = vmatpush2.msra.mxu0 0.0
        %1690 = vmatprep.subr.mxu0 0.0
        %1691 = vmatpush2.msra.mxu0 0.0
        %1692 = vmatprep.subr.mxu0 0.0
        %1693 = vmatpush2.msra.mxu0 0.0
        %1694 = vmatprep.subr.mxu0 0.0
        %1695 = vmatpush2.msra.mxu0 0.0
        %1696 = vmatprep.mubr.f32.mxu0 0.0
        %v1697 = vand.u32 %v552, 4294901760
        %v1698 = vsub.f32 %v552, %v1697
        %v1699 = vand.u32 %v1698, 4294901760
        %v1700 = vsub.f32 %v1698, %v1699
        %v1701 = vand.u32 %v1700, 4294901760
        %1702 = vmatmul.mubr.f32.gmra.mxu0 %v1701
        %v1703 = vpop.f32.mrf.mxu0
        %v1704 = vadd.f32 0.0, %v1703
        %v1705 = vpop.f32.mrf.mxu0
        %v1706 = vadd.f32 0.0, %v1705
        %1707 = vdwg.mxu0
        %v1708 = vand.u32 %v736, 4294901760
        %v1709 = vsub.f32 %v736, %v1708
        %v1710 = vand.u32 %v1709, 4294901760
        %v1711 = vsub.f32 %v1709, %v1710
        %v1712 = vand.u32 %v1711, 4294901760
        %1713 = vmatprep.subr.mxu0 %v1712
        %v1714 = vand.u32 %v735, 4294901760
        %v1715 = vsub.f32 %v735, %v1714
        %v1716 = vand.u32 %v1715, 4294901760
        %v1717 = vsub.f32 %v1715, %v1716
        %v1718 = vand.u32 %v1717, 4294901760
        %1719 = vmatpush1.msra.mxu0 %v1718
        %v1720 = vand.u32 %v724, 4294901760
        %v1721 = vsub.f32 %v724, %v1720
        %v1722 = vand.u32 %v1721, 4294901760
        %v1723 = vsub.f32 %v1721, %v1722
        %v1724 = vand.u32 %v1723, 4294901760
        %1725 = vmatprep.subr.mxu0 %v1724
        %v1726 = vand.u32 %v723, 4294901760
        %v1727 = vsub.f32 %v723, %v1726
        %v1728 = vand.u32 %v1727, 4294901760
        %v1729 = vsub.f32 %v1727, %v1728
        %v1730 = vand.u32 %v1729, 4294901760
        %1731 = vmatpush1.msra.mxu0 %v1730
        %v1732 = vand.u32 %v712, 4294901760
        %v1733 = vsub.f32 %v712, %v1732
        %v1734 = vand.u32 %v1733, 4294901760
        %v1735 = vsub.f32 %v1733, %v1734
        %v1736 = vand.u32 %v1735, 4294901760
        %1737 = vmatprep.subr.mxu0 %v1736
        %v1738 = vand.u32 %v711, 4294901760
        %v1739 = vsub.f32 %v711, %v1738
        %v1740 = vand.u32 %v1739, 4294901760
        %v1741 = vsub.f32 %v1739, %v1740
        %v1742 = vand.u32 %v1741, 4294901760
        %1743 = vmatpush1.msra.mxu0 %v1742
        %v1744 = vand.u32 %v700, 4294901760
        %v1745 = vsub.f32 %v700, %v1744
        %v1746 = vand.u32 %v1745, 4294901760
        %v1747 = vsub.f32 %v1745, %v1746
        %v1748 = vand.u32 %v1747, 4294901760
        %1749 = vmatprep.subr.mxu0 %v1748
        %v1750 = vand.u32 %v699, 4294901760
        %v1751 = vsub.f32 %v699, %v1750
        %v1752 = vand.u32 %v1751, 4294901760
        %v1753 = vsub.f32 %v1751, %v1752
        %v1754 = vand.u32 %v1753, 4294901760
        %1755 = vmatpush1.msra.mxu0 %v1754
        %v1756 = vand.u32 %v688, 4294901760
        %v1757 = vsub.f32 %v688, %v1756
        %v1758 = vand.u32 %v1757, 4294901760
        %v1759 = vsub.f32 %v1757, %v1758
        %v1760 = vand.u32 %v1759, 4294901760
        %1761 = vmatprep.subr.mxu0 %v1760
        %v1762 = vand.u32 %v687, 4294901760
        %v1763 = vsub.f32 %v687, %v1762
        %v1764 = vand.u32 %v1763, 4294901760
        %v1765 = vsub.f32 %v1763, %v1764
        %v1766 = vand.u32 %v1765, 4294901760
        %1767 = vmatpush1.msra.mxu0 %v1766
        %v1768 = vand.u32 %v676, 4294901760
        %v1769 = vsub.f32 %v676, %v1768
        %v1770 = vand.u32 %v1769, 4294901760
        %v1771 = vsub.f32 %v1769, %v1770
        %v1772 = vand.u32 %v1771, 4294901760
        %1773 = vmatprep.subr.mxu0 %v1772
        %v1774 = vand.u32 %v675, 4294901760
        %v1775 = vsub.f32 %v675, %v1774
        %v1776 = vand.u32 %v1775, 4294901760
        %v1777 = vsub.f32 %v1775, %v1776
        %v1778 = vand.u32 %v1777, 4294901760
        %1779 = vmatpush1.msra.mxu0 %v1778
        %v1780 = vand.u32 %v664, 4294901760
        %v1781 = vsub.f32 %v664, %v1780
        %v1782 = vand.u32 %v1781, 4294901760
        %v1783 = vsub.f32 %v1781, %v1782
        %v1784 = vand.u32 %v1783, 4294901760
        %1785 = vmatprep.subr.mxu0 %v1784
        %v1786 = vand.u32 %v663, 4294901760
        %v1787 = vsub.f32 %v663, %v1786
        %v1788 = vand.u32 %v1787, 4294901760
        %v1789 = vsub.f32 %v1787, %v1788
        %v1790 = vand.u32 %v1789, 4294901760
        %1791 = vmatpush1.msra.mxu0 %v1790
        %v1792 = vand.u32 %v652, 4294901760
        %v1793 = vsub.f32 %v652, %v1792
        %v1794 = vand.u32 %v1793, 4294901760
        %v1795 = vsub.f32 %v1793, %v1794
        %v1796 = vand.u32 %v1795, 4294901760
        %1797 = vmatprep.subr.mxu0 %v1796
        %v1798 = vand.u32 %v651, 4294901760
        %v1799 = vsub.f32 %v651, %v1798
        %v1800 = vand.u32 %v1799, 4294901760
        %v1801 = vsub.f32 %v1799, %v1800
        %v1802 = vand.u32 %v1801, 4294901760
        %1803 = vmatpush1.msra.mxu0 %v1802
        %v1804 = vand.u32 %v640, 4294901760
        %v1805 = vsub.f32 %v640, %v1804
        %v1806 = vand.u32 %v1805, 4294901760
        %v1807 = vsub.f32 %v1805, %v1806
        %v1808 = vand.u32 %v1807, 4294901760
        %1809 = vmatprep.subr.mxu0 %v1808
        %v1810 = vand.u32 %v639, 4294901760
        %v1811 = vsub.f32 %v639, %v1810
        %v1812 = vand.u32 %v1811, 4294901760
        %v1813 = vsub.f32 %v1811, %v1812
        %v1814 = vand.u32 %v1813, 4294901760
        %1815 = vmatpush1.msra.mxu0 %v1814
        %v1816 = vand.u32 %v628, 4294901760
        %v1817 = vsub.f32 %v628, %v1816
        %v1818 = vand.u32 %v1817, 4294901760
        %v1819 = vsub.f32 %v1817, %v1818
        %v1820 = vand.u32 %v1819, 4294901760
        %1821 = vmatprep.subr.mxu0 %v1820
        %v1822 = vand.u32 %v627, 4294901760
        %v1823 = vsub.f32 %v627, %v1822
        %v1824 = vand.u32 %v1823, 4294901760
        %v1825 = vsub.f32 %v1823, %v1824
        %v1826 = vand.u32 %v1825, 4294901760
        %1827 = vmatpush1.msra.mxu0 %v1826
        %v1828 = vand.u32 %v616, 4294901760
        %v1829 = vsub.f32 %v616, %v1828
        %v1830 = vand.u32 %v1829, 4294901760
        %v1831 = vsub.f32 %v1829, %v1830
        %v1832 = vand.u32 %v1831, 4294901760
        %1833 = vmatprep.subr.mxu0 %v1832
        %v1834 = vand.u32 %v615, 4294901760
        %v1835 = vsub.f32 %v615, %v1834
        %v1836 = vand.u32 %v1835, 4294901760
        %v1837 = vsub.f32 %v1835, %v1836
        %v1838 = vand.u32 %v1837, 4294901760
        %1839 = vmatpush1.msra.mxu0 %v1838
        %v1840 = vand.u32 %v604, 4294901760
        %v1841 = vsub.f32 %v604, %v1840
        %v1842 = vand.u32 %v1841, 4294901760
        %v1843 = vsub.f32 %v1841, %v1842
        %v1844 = vand.u32 %v1843, 4294901760
        %1845 = vmatprep.subr.mxu0 %v1844
        %v1846 = vand.u32 %v603, 4294901760
        %v1847 = vsub.f32 %v603, %v1846
        %v1848 = vand.u32 %v1847, 4294901760
        %v1849 = vsub.f32 %v1847, %v1848
        %v1850 = vand.u32 %v1849, 4294901760
        %1851 = vmatpush1.msra.mxu0 %v1850
        %v1852 = vand.u32 %v592, 4294901760
        %v1853 = vsub.f32 %v592, %v1852
        %v1854 = vand.u32 %v1853, 4294901760
        %v1855 = vsub.f32 %v1853, %v1854
        %v1856 = vand.u32 %v1855, 4294901760
        %1857 = vmatprep.subr.mxu0 %v1856
        %v1858 = vand.u32 %v591, 4294901760
        %v1859 = vsub.f32 %v591, %v1858
        %v1860 = vand.u32 %v1859, 4294901760
        %v1861 = vsub.f32 %v1859, %v1860
        %v1862 = vand.u32 %v1861, 4294901760
        %1863 = vmatpush1.msra.mxu0 %v1862
        %v1864 = vand.u32 %v580, 4294901760
        %v1865 = vsub.f32 %v580, %v1864
        %v1866 = vand.u32 %v1865, 4294901760
        %v1867 = vsub.f32 %v1865, %v1866
        %v1868 = vand.u32 %v1867, 4294901760
        %1869 = vmatprep.subr.mxu0 %v1868
        %v1870 = vand.u32 %v579, 4294901760
        %v1871 = vsub.f32 %v579, %v1870
        %v1872 = vand.u32 %v1871, 4294901760
        %v1873 = vsub.f32 %v1871, %v1872
        %v1874 = vand.u32 %v1873, 4294901760
        %1875 = vmatpush1.msra.mxu0 %v1874
        %v1876 = vand.u32 %v568, 4294901760
        %v1877 = vsub.f32 %v568, %v1876
        %v1878 = vand.u32 %v1877, 4294901760
        %v1879 = vsub.f32 %v1877, %v1878
        %v1880 = vand.u32 %v1879, 4294901760
        %1881 = vmatprep.subr.mxu0 %v1880
        %v1882 = vand.u32 %v567, 4294901760
        %v1883 = vsub.f32 %v567, %v1882
        %v1884 = vand.u32 %v1883, 4294901760
        %v1885 = vsub.f32 %v1883, %v1884
        %v1886 = vand.u32 %v1885, 4294901760
        %1887 = vmatpush1.msra.mxu0 %v1886
        %v1888 = vand.u32 %v556, 4294901760
        %v1889 = vsub.f32 %v556, %v1888
        %v1890 = vand.u32 %v1889, 4294901760
        %v1891 = vsub.f32 %v1889, %v1890
        %v1892 = vand.u32 %v1891, 4294901760
        %1893 = vmatprep.subr.mxu0 %v1892
        %v1894 = vand.u32 %v555, 4294901760
        %v1895 = vsub.f32 %v555, %v1894
        %v1896 = vand.u32 %v1895, 4294901760
        %v1897 = vsub.f32 %v1895, %v1896
        %v1898 = vand.u32 %v1897, 4294901760
        %1899 = vmatpush1.msra.mxu0 %v1898
        %1900 = vmatprep.subr.mxu0 0.0
        %1901 = vmatpush2.msra.mxu0 0.0
        %1902 = vmatprep.subr.mxu0 0.0
        %1903 = vmatpush2.msra.mxu0 0.0
        %1904 = vmatprep.subr.mxu0 0.0
        %1905 = vmatpush2.msra.mxu0 0.0
        %1906 = vmatprep.subr.mxu0 0.0
        %1907 = vmatpush2.msra.mxu0 0.0
        %1908 = vmatprep.subr.mxu0 0.0
        %1909 = vmatpush2.msra.mxu0 0.0
        %1910 = vmatprep.subr.mxu0 0.0
        %1911 = vmatpush2.msra.mxu0 0.0
        %1912 = vmatprep.subr.mxu0 0.0
        %1913 = vmatpush2.msra.mxu0 0.0
        %1914 = vmatprep.subr.mxu0 0.0
        %1915 = vmatpush2.msra.mxu0 0.0
        %1916 = vmatprep.subr.mxu0 0.0
        %1917 = vmatpush2.msra.mxu0 0.0
        %1918 = vmatprep.subr.mxu0 0.0
        %1919 = vmatpush2.msra.mxu0 0.0
        %1920 = vmatprep.subr.mxu0 0.0
        %1921 = vmatpush2.msra.mxu0 0.0
        %1922 = vmatprep.subr.mxu0 0.0
        %1923 = vmatpush2.msra.mxu0 0.0
        %1924 = vmatprep.subr.mxu0 0.0
        %1925 = vmatpush2.msra.mxu0 0.0
        %1926 = vmatprep.subr.mxu0 0.0
        %1927 = vmatpush2.msra.mxu0 0.0
        %1928 = vmatprep.subr.mxu0 0.0
        %1929 = vmatpush2.msra.mxu0 0.0
        %1930 = vmatprep.subr.mxu0 0.0
        %1931 = vmatpush2.msra.mxu0 0.0
        %1932 = vmatprep.mubr.f32.mxu0 0.0
        %v1933 = vand.u32 %v552, 4294901760
        %1934 = vmatmul.mubr.f32.gmra.mxu0 %v1933
        %v1935 = vpop.f32.mrf.mxu0
        %v1936 = vadd.f32 %v1704, %v1935
        %v1937 = vpop.f32.mrf.mxu0
        %v1938 = vadd.f32 %v1706, %v1937
        %1939 = vdwg.mxu0
        %v1940 = vand.u32 %v736, 4294901760
        %v1941 = vsub.f32 %v736, %v1940
        %1942 = vmatprep.subr.mxu0 %v1941
        %v1943 = vand.u32 %v735, 4294901760
        %v1944 = vsub.f32 %v735, %v1943
        %1945 = vmatpush1.msra.mxu0 %v1944
        %v1946 = vand.u32 %v724, 4294901760
        %v1947 = vsub.f32 %v724, %v1946
        %1948 = vmatprep.subr.mxu0 %v1947
        %v1949 = vand.u32 %v723, 4294901760
        %v1950 = vsub.f32 %v723, %v1949
        %1951 = vmatpush1.msra.mxu0 %v1950
        %v1952 = vand.u32 %v712, 4294901760
        %v1953 = vsub.f32 %v712, %v1952
        %1954 = vmatprep.subr.mxu0 %v1953
        %v1955 = vand.u32 %v711, 4294901760
        %v1956 = vsub.f32 %v711, %v1955
        %1957 = vmatpush1.msra.mxu0 %v1956
        %v1958 = vand.u32 %v700, 4294901760
        %v1959 = vsub.f32 %v700, %v1958
        %1960 = vmatprep.subr.mxu0 %v1959
        %v1961 = vand.u32 %v699, 4294901760
        %v1962 = vsub.f32 %v699, %v1961
        %1963 = vmatpush1.msra.mxu0 %v1962
        %v1964 = vand.u32 %v688, 4294901760
        %v1965 = vsub.f32 %v688, %v1964
        %1966 = vmatprep.subr.mxu0 %v1965
        %v1967 = vand.u32 %v687, 4294901760
        %v1968 = vsub.f32 %v687, %v1967
        %1969 = vmatpush1.msra.mxu0 %v1968
        %v1970 = vand.u32 %v676, 4294901760
        %v1971 = vsub.f32 %v676, %v1970
        %1972 = vmatprep.subr.mxu0 %v1971
        %v1973 = vand.u32 %v675, 4294901760
        %v1974 = vsub.f32 %v675, %v1973
        %1975 = vmatpush1.msra.mxu0 %v1974
        %v1976 = vand.u32 %v664, 4294901760
        %v1977 = vsub.f32 %v664, %v1976
        %1978 = vmatprep.subr.mxu0 %v1977
        %v1979 = vand.u32 %v663, 4294901760
        %v1980 = vsub.f32 %v663, %v1979
        %1981 = vmatpush1.msra.mxu0 %v1980
        %v1982 = vand.u32 %v652, 4294901760
        %v1983 = vsub.f32 %v652, %v1982
        %1984 = vmatprep.subr.mxu0 %v1983
        %v1985 = vand.u32 %v651, 4294901760
        %v1986 = vsub.f32 %v651, %v1985
        %1987 = vmatpush1.msra.mxu0 %v1986
        %v1988 = vand.u32 %v640, 4294901760
        %v1989 = vsub.f32 %v640, %v1988
        %1990 = vmatprep.subr.mxu0 %v1989
        %v1991 = vand.u32 %v639, 4294901760
        %v1992 = vsub.f32 %v639, %v1991
        %1993 = vmatpush1.msra.mxu0 %v1992
        %v1994 = vand.u32 %v628, 4294901760
        %v1995 = vsub.f32 %v628, %v1994
        %1996 = vmatprep.subr.mxu0 %v1995
        %v1997 = vand.u32 %v627, 4294901760
        %v1998 = vsub.f32 %v627, %v1997
        %1999 = vmatpush1.msra.mxu0 %v1998
        %v2000 = vand.u32 %v616, 4294901760
        %v2001 = vsub.f32 %v616, %v2000
        %2002 = vmatprep.subr.mxu0 %v2001
        %v2003 = vand.u32 %v615, 4294901760
        %v2004 = vsub.f32 %v615, %v2003
        %2005 = vmatpush1.msra.mxu0 %v2004
        %v2006 = vand.u32 %v604, 4294901760
        %v2007 = vsub.f32 %v604, %v2006
        %2008 = vmatprep.subr.mxu0 %v2007
        %v2009 = vand.u32 %v603, 4294901760
        %v2010 = vsub.f32 %v603, %v2009
        %2011 = vmatpush1.msra.mxu0 %v2010
        %v2012 = vand.u32 %v592, 4294901760
        %v2013 = vsub.f32 %v592, %v2012
        %2014 = vmatprep.subr.mxu0 %v2013
        %v2015 = vand.u32 %v591, 4294901760
        %v2016 = vsub.f32 %v591, %v2015
        %2017 = vmatpush1.msra.mxu0 %v2016
        %v2018 = vand.u32 %v580, 4294901760
        %v2019 = vsub.f32 %v580, %v2018
        %2020 = vmatprep.subr.mxu0 %v2019
        %v2021 = vand.u32 %v579, 4294901760
        %v2022 = vsub.f32 %v579, %v2021
        %2023 = vmatpush1.msra.mxu0 %v2022
        %v2024 = vand.u32 %v568, 4294901760
        %v2025 = vsub.f32 %v568, %v2024
        %2026 = vmatprep.subr.mxu0 %v2025
        %v2027 = vand.u32 %v567, 4294901760
        %v2028 = vsub.f32 %v567, %v2027
        %2029 = vmatpush1.msra.mxu0 %v2028
        %v2030 = vand.u32 %v556, 4294901760
        %v2031 = vsub.f32 %v556, %v2030
        %2032 = vmatprep.subr.mxu0 %v2031
        %v2033 = vand.u32 %v555, 4294901760
        %v2034 = vsub.f32 %v555, %v2033
        %2035 = vmatpush1.msra.mxu0 %v2034
        %2036 = vmatprep.subr.mxu0 0.0
        %2037 = vmatpush2.msra.mxu0 0.0
        %2038 = vmatprep.subr.mxu0 0.0
        %2039 = vmatpush2.msra.mxu0 0.0
        %2040 = vmatprep.subr.mxu0 0.0
        %2041 = vmatpush2.msra.mxu0 0.0
        %2042 = vmatprep.subr.mxu0 0.0
        %2043 = vmatpush2.msra.mxu0 0.0
        %2044 = vmatprep.subr.mxu0 0.0
        %2045 = vmatpush2.msra.mxu0 0.0
        %2046 = vmatprep.subr.mxu0 0.0
        %2047 = vmatpush2.msra.mxu0 0.0
        %2048 = vmatprep.subr.mxu0 0.0
        %2049 = vmatpush2.msra.mxu0 0.0
        %2050 = vmatprep.subr.mxu0 0.0
        %2051 = vmatpush2.msra.mxu0 0.0
        %2052 = vmatprep.subr.mxu0 0.0
        %2053 = vmatpush2.msra.mxu0 0.0
        %2054 = vmatprep.subr.mxu0 0.0
        %2055 = vmatpush2.msra.mxu0 0.0
        %2056 = vmatprep.subr.mxu0 0.0
        %2057 = vmatpush2.msra.mxu0 0.0
        %2058 = vmatprep.subr.mxu0 0.0
        %2059 = vmatpush2.msra.mxu0 0.0
        %2060 = vmatprep.subr.mxu0 0.0
        %2061 = vmatpush2.msra.mxu0 0.0
        %2062 = vmatprep.subr.mxu0 0.0
        %2063 = vmatpush2.msra.mxu0 0.0
        %2064 = vmatprep.subr.mxu0 0.0
        %2065 = vmatpush2.msra.mxu0 0.0
        %2066 = vmatprep.subr.mxu0 0.0
        %2067 = vmatpush2.msra.mxu0 0.0
        %2068 = vmatprep.mubr.f32.mxu0 0.0
        %v2069 = vand.u32 %v552, 4294901760
        %v2070 = vsub.f32 %v552, %v2069
        %2071 = vmatmul.mubr.f32.gmra.mxu0 %v2070
        %v2072 = vpop.f32.mrf.mxu0
        %v2073 = vadd.f32 %v1936, %v2072
        %v2074 = vpop.f32.mrf.mxu0
        %v2075 = vadd.f32 %v1938, %v2074
        %2076 = vdwg.mxu0
        %v2077 = vand.u32 %v736, 4294901760
        %2078 = vmatprep.subr.mxu0 %v2077
        %v2079 = vand.u32 %v735, 4294901760
        %2080 = vmatpush1.msra.mxu0 %v2079
        %v2081 = vand.u32 %v724, 4294901760
        %2082 = vmatprep.subr.mxu0 %v2081
        %v2083 = vand.u32 %v723, 4294901760
        %2084 = vmatpush1.msra.mxu0 %v2083
        %v2085 = vand.u32 %v712, 4294901760
        %2086 = vmatprep.subr.mxu0 %v2085
        %v2087 = vand.u32 %v711, 4294901760
        %2088 = vmatpush1.msra.mxu0 %v2087
        %v2089 = vand.u32 %v700, 4294901760
        %2090 = vmatprep.subr.mxu0 %v2089
        %v2091 = vand.u32 %v699, 4294901760
        %2092 = vmatpush1.msra.mxu0 %v2091
        %v2093 = vand.u32 %v688, 4294901760
        %2094 = vmatprep.subr.mxu0 %v2093
        %v2095 = vand.u32 %v687, 4294901760
        %2096 = vmatpush1.msra.mxu0 %v2095
        %v2097 = vand.u32 %v676, 4294901760
        %2098 = vmatprep.subr.mxu0 %v2097
        %v2099 = vand.u32 %v675, 4294901760
        %2100 = vmatpush1.msra.mxu0 %v2099
        %v2101 = vand.u32 %v664, 4294901760
        %2102 = vmatprep.subr.mxu0 %v2101
        %v2103 = vand.u32 %v663, 4294901760
        %2104 = vmatpush1.msra.mxu0 %v2103
        %v2105 = vand.u32 %v652, 4294901760
        %2106 = vmatprep.subr.mxu0 %v2105
        %v2107 = vand.u32 %v651, 4294901760
        %2108 = vmatpush1.msra.mxu0 %v2107
        %v2109 = vand.u32 %v640, 4294901760
        %2110 = vmatprep.subr.mxu0 %v2109
        %v2111 = vand.u32 %v639, 4294901760
        %2112 = vmatpush1.msra.mxu0 %v2111
        %v2113 = vand.u32 %v628, 4294901760
        %2114 = vmatprep.subr.mxu0 %v2113
        %v2115 = vand.u32 %v627, 4294901760
        %2116 = vmatpush1.msra.mxu0 %v2115
        %v2117 = vand.u32 %v616, 4294901760
        %2118 = vmatprep.subr.mxu0 %v2117
        %v2119 = vand.u32 %v615, 4294901760
        %2120 = vmatpush1.msra.mxu0 %v2119
        %v2121 = vand.u32 %v604, 4294901760
        %2122 = vmatprep.subr.mxu0 %v2121
        %v2123 = vand.u32 %v603, 4294901760
        %2124 = vmatpush1.msra.mxu0 %v2123
        %v2125 = vand.u32 %v592, 4294901760
        %2126 = vmatprep.subr.mxu0 %v2125
        %v2127 = vand.u32 %v591, 4294901760
        %2128 = vmatpush1.msra.mxu0 %v2127
        %v2129 = vand.u32 %v580, 4294901760
        %2130 = vmatprep.subr.mxu0 %v2129
        %v2131 = vand.u32 %v579, 4294901760
        %2132 = vmatpush1.msra.mxu0 %v2131
        %v2133 = vand.u32 %v568, 4294901760
        %2134 = vmatprep.subr.mxu0 %v2133
        %v2135 = vand.u32 %v567, 4294901760
        %2136 = vmatpush1.msra.mxu0 %v2135
        %v2137 = vand.u32 %v556, 4294901760
        %2138 = vmatprep.subr.mxu0 %v2137
        %v2139 = vand.u32 %v555, 4294901760
        %2140 = vmatpush1.msra.mxu0 %v2139
        %2141 = vmatprep.subr.mxu0 0.0
        %2142 = vmatpush2.msra.mxu0 0.0
        %2143 = vmatprep.subr.mxu0 0.0
        %2144 = vmatpush2.msra.mxu0 0.0
        %2145 = vmatprep.subr.mxu0 0.0
        %2146 = vmatpush2.msra.mxu0 0.0
        %2147 = vmatprep.subr.mxu0 0.0
        %2148 = vmatpush2.msra.mxu0 0.0
        %2149 = vmatprep.subr.mxu0 0.0
        %2150 = vmatpush2.msra.mxu0 0.0
        %2151 = vmatprep.subr.mxu0 0.0
        %2152 = vmatpush2.msra.mxu0 0.0
        %2153 = vmatprep.subr.mxu0 0.0
        %2154 = vmatpush2.msra.mxu0 0.0
        %2155 = vmatprep.subr.mxu0 0.0
        %2156 = vmatpush2.msra.mxu0 0.0
        %2157 = vmatprep.subr.mxu0 0.0
        %2158 = vmatpush2.msra.mxu0 0.0
        %2159 = vmatprep.subr.mxu0 0.0
        %2160 = vmatpush2.msra.mxu0 0.0
        %2161 = vmatprep.subr.mxu0 0.0
        %2162 = vmatpush2.msra.mxu0 0.0
        %2163 = vmatprep.subr.mxu0 0.0
        %2164 = vmatpush2.msra.mxu0 0.0
        %2165 = vmatprep.subr.mxu0 0.0
        %2166 = vmatpush2.msra.mxu0 0.0
        %2167 = vmatprep.subr.mxu0 0.0
        %2168 = vmatpush2.msra.mxu0 0.0
        %2169 = vmatprep.subr.mxu0 0.0
        %2170 = vmatpush2.msra.mxu0 0.0
        %2171 = vmatprep.subr.mxu0 0.0
        %2172 = vmatpush2.msra.mxu0 0.0
        %2173 = vmatprep.mubr.f32.mxu0 0.0
        %v2174 = vand.u32 %v552, 4294901760
        %v2175 = vsub.f32 %v552, %v2174
        %v2176 = vand.u32 %v2175, 4294901760
        %2177 = vmatmul.mubr.f32.gmra.mxu0 %v2176
        %v2178 = vpop.f32.mrf.mxu0
        %v2179 = vadd.f32 %v2073, %v2178
        %v2180 = vpop.f32.mrf.mxu0
        %v2181 = vadd.f32 %v2075, %v2180
        %2182 = vdwg.mxu0
        %v2183 = vand.u32 %v736, 4294901760
        %v2184 = vsub.f32 %v736, %v2183
        %v2185 = vand.u32 %v2184, 4294901760
        %2186 = vmatprep.subr.mxu0 %v2185
        %v2187 = vand.u32 %v735, 4294901760
        %v2188 = vsub.f32 %v735, %v2187
        %v2189 = vand.u32 %v2188, 4294901760
        %2190 = vmatpush1.msra.mxu0 %v2189
        %v2191 = vand.u32 %v724, 4294901760
        %v2192 = vsub.f32 %v724, %v2191
        %v2193 = vand.u32 %v2192, 4294901760
        %2194 = vmatprep.subr.mxu0 %v2193
        %v2195 = vand.u32 %v723, 4294901760
        %v2196 = vsub.f32 %v723, %v2195
        %v2197 = vand.u32 %v2196, 4294901760
        %2198 = vmatpush1.msra.mxu0 %v2197
        %v2199 = vand.u32 %v712, 4294901760
        %v2200 = vsub.f32 %v712, %v2199
        %v2201 = vand.u32 %v2200, 4294901760
        %2202 = vmatprep.subr.mxu0 %v2201
        %v2203 = vand.u32 %v711, 4294901760
        %v2204 = vsub.f32 %v711, %v2203
        %v2205 = vand.u32 %v2204, 4294901760
        %2206 = vmatpush1.msra.mxu0 %v2205
        %v2207 = vand.u32 %v700, 4294901760
        %v2208 = vsub.f32 %v700, %v2207
        %v2209 = vand.u32 %v2208, 4294901760
        %2210 = vmatprep.subr.mxu0 %v2209
        %v2211 = vand.u32 %v699, 4294901760
        %v2212 = vsub.f32 %v699, %v2211
        %v2213 = vand.u32 %v2212, 4294901760
        %2214 = vmatpush1.msra.mxu0 %v2213
        %v2215 = vand.u32 %v688, 4294901760
        %v2216 = vsub.f32 %v688, %v2215
        %v2217 = vand.u32 %v2216, 4294901760
        %2218 = vmatprep.subr.mxu0 %v2217
        %v2219 = vand.u32 %v687, 4294901760
        %v2220 = vsub.f32 %v687, %v2219
        %v2221 = vand.u32 %v2220, 4294901760
        %2222 = vmatpush1.msra.mxu0 %v2221
        %v2223 = vand.u32 %v676, 4294901760
        %v2224 = vsub.f32 %v676, %v2223
        %v2225 = vand.u32 %v2224, 4294901760
        %2226 = vmatprep.subr.mxu0 %v2225
        %v2227 = vand.u32 %v675, 4294901760
        %v2228 = vsub.f32 %v675, %v2227
        %v2229 = vand.u32 %v2228, 4294901760
        %2230 = vmatpush1.msra.mxu0 %v2229
        %v2231 = vand.u32 %v664, 4294901760
        %v2232 = vsub.f32 %v664, %v2231
        %v2233 = vand.u32 %v2232, 4294901760
        %2234 = vmatprep.subr.mxu0 %v2233
        %v2235 = vand.u32 %v663, 4294901760
        %v2236 = vsub.f32 %v663, %v2235
        %v2237 = vand.u32 %v2236, 4294901760
        %2238 = vmatpush1.msra.mxu0 %v2237
        %v2239 = vand.u32 %v652, 4294901760
        %v2240 = vsub.f32 %v652, %v2239
        %v2241 = vand.u32 %v2240, 4294901760
        %2242 = vmatprep.subr.mxu0 %v2241
        %v2243 = vand.u32 %v651, 4294901760
        %v2244 = vsub.f32 %v651, %v2243
        %v2245 = vand.u32 %v2244, 4294901760
        %2246 = vmatpush1.msra.mxu0 %v2245
        %v2247 = vand.u32 %v640, 4294901760
        %v2248 = vsub.f32 %v640, %v2247
        %v2249 = vand.u32 %v2248, 4294901760
        %2250 = vmatprep.subr.mxu0 %v2249
        %v2251 = vand.u32 %v639, 4294901760
        %v2252 = vsub.f32 %v639, %v2251
        %v2253 = vand.u32 %v2252, 4294901760
        %2254 = vmatpush1.msra.mxu0 %v2253
        %v2255 = vand.u32 %v628, 4294901760
        %v2256 = vsub.f32 %v628, %v2255
        %v2257 = vand.u32 %v2256, 4294901760
        %2258 = vmatprep.subr.mxu0 %v2257
        %v2259 = vand.u32 %v627, 4294901760
        %v2260 = vsub.f32 %v627, %v2259
        %v2261 = vand.u32 %v2260, 4294901760
        %2262 = vmatpush1.msra.mxu0 %v2261
        %v2263 = vand.u32 %v616, 4294901760
        %v2264 = vsub.f32 %v616, %v2263
        %v2265 = vand.u32 %v2264, 4294901760
        %2266 = vmatprep.subr.mxu0 %v2265
        %v2267 = vand.u32 %v615, 4294901760
        %v2268 = vsub.f32 %v615, %v2267
        %v2269 = vand.u32 %v2268, 4294901760
        %2270 = vmatpush1.msra.mxu0 %v2269
        %v2271 = vand.u32 %v604, 4294901760
        %v2272 = vsub.f32 %v604, %v2271
        %v2273 = vand.u32 %v2272, 4294901760
        %2274 = vmatprep.subr.mxu0 %v2273
        %v2275 = vand.u32 %v603, 4294901760
        %v2276 = vsub.f32 %v603, %v2275
        %v2277 = vand.u32 %v2276, 4294901760
        %2278 = vmatpush1.msra.mxu0 %v2277
        %v2279 = vand.u32 %v592, 4294901760
        %v2280 = vsub.f32 %v592, %v2279
        %v2281 = vand.u32 %v2280, 4294901760
        %2282 = vmatprep.subr.mxu0 %v2281
        %v2283 = vand.u32 %v591, 4294901760
        %v2284 = vsub.f32 %v591, %v2283
        %v2285 = vand.u32 %v2284, 4294901760
        %2286 = vmatpush1.msra.mxu0 %v2285
        %v2287 = vand.u32 %v580, 4294901760
        %v2288 = vsub.f32 %v580, %v2287
        %v2289 = vand.u32 %v2288, 4294901760
        %2290 = vmatprep.subr.mxu0 %v2289
        %v2291 = vand.u32 %v579, 4294901760
        %v2292 = vsub.f32 %v579, %v2291
        %v2293 = vand.u32 %v2292, 4294901760
        %2294 = vmatpush1.msra.mxu0 %v2293
        %v2295 = vand.u32 %v568, 4294901760
        %v2296 = vsub.f32 %v568, %v2295
        %v2297 = vand.u32 %v2296, 4294901760
        %2298 = vmatprep.subr.mxu0 %v2297
        %v2299 = vand.u32 %v567, 4294901760
        %v2300 = vsub.f32 %v567, %v2299
        %v2301 = vand.u32 %v2300, 4294901760
        %2302 = vmatpush1.msra.mxu0 %v2301
        %v2303 = vand.u32 %v556, 4294901760
        %v2304 = vsub.f32 %v556, %v2303
        %v2305 = vand.u32 %v2304, 4294901760
        %2306 = vmatprep.subr.mxu0 %v2305
        %v2307 = vand.u32 %v555, 4294901760
        %v2308 = vsub.f32 %v555, %v2307
        %v2309 = vand.u32 %v2308, 4294901760
        %2310 = vmatpush1.msra.mxu0 %v2309
        %2311 = vmatprep.subr.mxu0 0.0
        %2312 = vmatpush2.msra.mxu0 0.0
        %2313 = vmatprep.subr.mxu0 0.0
        %2314 = vmatpush2.msra.mxu0 0.0
        %2315 = vmatprep.subr.mxu0 0.0
        %2316 = vmatpush2.msra.mxu0 0.0
        %2317 = vmatprep.subr.mxu0 0.0
        %2318 = vmatpush2.msra.mxu0 0.0
        %2319 = vmatprep.subr.mxu0 0.0
        %2320 = vmatpush2.msra.mxu0 0.0
        %2321 = vmatprep.subr.mxu0 0.0
        %2322 = vmatpush2.msra.mxu0 0.0
        %2323 = vmatprep.subr.mxu0 0.0
        %2324 = vmatpush2.msra.mxu0 0.0
        %2325 = vmatprep.subr.mxu0 0.0
        %2326 = vmatpush2.msra.mxu0 0.0
        %2327 = vmatprep.subr.mxu0 0.0
        %2328 = vmatpush2.msra.mxu0 0.0
        %2329 = vmatprep.subr.mxu0 0.0
        %2330 = vmatpush2.msra.mxu0 0.0
        %2331 = vmatprep.subr.mxu0 0.0
        %2332 = vmatpush2.msra.mxu0 0.0
        %2333 = vmatprep.subr.mxu0 0.0
        %2334 = vmatpush2.msra.mxu0 0.0
        %2335 = vmatprep.subr.mxu0 0.0
        %2336 = vmatpush2.msra.mxu0 0.0
        %2337 = vmatprep.subr.mxu0 0.0
        %2338 = vmatpush2.msra.mxu0 0.0
        %2339 = vmatprep.subr.mxu0 0.0
        %2340 = vmatpush2.msra.mxu0 0.0
        %2341 = vmatprep.subr.mxu0 0.0
        %2342 = vmatpush2.msra.mxu0 0.0
        %2343 = vmatprep.mubr.f32.mxu0 0.0
        %v2344 = vand.u32 %v552, 4294901760
        %2345 = vmatmul.mubr.f32.gmra.mxu0 %v2344
        %v2346 = vpop.f32.mrf.mxu0
        %v2347 = vadd.f32 %v2179, %v2346
        %v2348 = vpop.f32.mrf.mxu0
        %v2349 = vadd.f32 %v2181, %v2348
        %2350 = vdwg.mxu0
        %v2351 = vand.u32 %v736, 4294901760
        %2352 = vmatprep.subr.mxu0 %v2351
        %v2353 = vand.u32 %v735, 4294901760
        %2354 = vmatpush1.msra.mxu0 %v2353
        %v2355 = vand.u32 %v724, 4294901760
        %2356 = vmatprep.subr.mxu0 %v2355
        %v2357 = vand.u32 %v723, 4294901760
        %2358 = vmatpush1.msra.mxu0 %v2357
        %v2359 = vand.u32 %v712, 4294901760
        %2360 = vmatprep.subr.mxu0 %v2359
        %v2361 = vand.u32 %v711, 4294901760
        %2362 = vmatpush1.msra.mxu0 %v2361
        %v2363 = vand.u32 %v700, 4294901760
        %2364 = vmatprep.subr.mxu0 %v2363
        %v2365 = vand.u32 %v699, 4294901760
        %2366 = vmatpush1.msra.mxu0 %v2365
        %v2367 = vand.u32 %v688, 4294901760
        %2368 = vmatprep.subr.mxu0 %v2367
        %v2369 = vand.u32 %v687, 4294901760
        %2370 = vmatpush1.msra.mxu0 %v2369
        %v2371 = vand.u32 %v676, 4294901760
        %2372 = vmatprep.subr.mxu0 %v2371
        %v2373 = vand.u32 %v675, 4294901760
        %2374 = vmatpush1.msra.mxu0 %v2373
        %v2375 = vand.u32 %v664, 4294901760
        %2376 = vmatprep.subr.mxu0 %v2375
        %v2377 = vand.u32 %v663, 4294901760
        %2378 = vmatpush1.msra.mxu0 %v2377
        %v2379 = vand.u32 %v652, 4294901760
        %2380 = vmatprep.subr.mxu0 %v2379
        %v2381 = vand.u32 %v651, 4294901760
        %2382 = vmatpush1.msra.mxu0 %v2381
        %v2383 = vand.u32 %v640, 4294901760
        %2384 = vmatprep.subr.mxu0 %v2383
        %v2385 = vand.u32 %v639, 4294901760
        %2386 = vmatpush1.msra.mxu0 %v2385
        %v2387 = vand.u32 %v628, 4294901760
        %2388 = vmatprep.subr.mxu0 %v2387
        %v2389 = vand.u32 %v627, 4294901760
        %2390 = vmatpush1.msra.mxu0 %v2389
        %v2391 = vand.u32 %v616, 4294901760
        %2392 = vmatprep.subr.mxu0 %v2391
        %v2393 = vand.u32 %v615, 4294901760
        %2394 = vmatpush1.msra.mxu0 %v2393
        %v2395 = vand.u32 %v604, 4294901760
        %2396 = vmatprep.subr.mxu0 %v2395
        %v2397 = vand.u32 %v603, 4294901760
        %2398 = vmatpush1.msra.mxu0 %v2397
        %v2399 = vand.u32 %v592, 4294901760
        %2400 = vmatprep.subr.mxu0 %v2399
        %v2401 = vand.u32 %v591, 4294901760
        %2402 = vmatpush1.msra.mxu0 %v2401
        %v2403 = vand.u32 %v580, 4294901760
        %2404 = vmatprep.subr.mxu0 %v2403
        %v2405 = vand.u32 %v579, 4294901760
        %2406 = vmatpush1.msra.mxu0 %v2405
        %v2407 = vand.u32 %v568, 4294901760
        %2408 = vmatprep.subr.mxu0 %v2407
        %v2409 = vand.u32 %v567, 4294901760
        %2410 = vmatpush1.msra.mxu0 %v2409
        %v2411 = vand.u32 %v556, 4294901760
        %2412 = vmatprep.subr.mxu0 %v2411
        %v2413 = vand.u32 %v555, 4294901760
        %2414 = vmatpush1.msra.mxu0 %v2413
        %2415 = vmatprep.subr.mxu0 0.0
        %2416 = vmatpush2.msra.mxu0 0.0
        %2417 = vmatprep.subr.mxu0 0.0
        %2418 = vmatpush2.msra.mxu0 0.0
        %2419 = vmatprep.subr.mxu0 0.0
        %2420 = vmatpush2.msra.mxu0 0.0
        %2421 = vmatprep.subr.mxu0 0.0
        %2422 = vmatpush2.msra.mxu0 0.0
        %2423 = vmatprep.subr.mxu0 0.0
        %2424 = vmatpush2.msra.mxu0 0.0
        %2425 = vmatprep.subr.mxu0 0.0
        %2426 = vmatpush2.msra.mxu0 0.0
        %2427 = vmatprep.subr.mxu0 0.0
        %2428 = vmatpush2.msra.mxu0 0.0
        %2429 = vmatprep.subr.mxu0 0.0
        %2430 = vmatpush2.msra.mxu0 0.0
        %2431 = vmatprep.subr.mxu0 0.0
        %2432 = vmatpush2.msra.mxu0 0.0
        %2433 = vmatprep.subr.mxu0 0.0
        %2434 = vmatpush2.msra.mxu0 0.0
        %2435 = vmatprep.subr.mxu0 0.0
        %2436 = vmatpush2.msra.mxu0 0.0
        %2437 = vmatprep.subr.mxu0 0.0
        %2438 = vmatpush2.msra.mxu0 0.0
        %2439 = vmatprep.subr.mxu0 0.0
        %2440 = vmatpush2.msra.mxu0 0.0
        %2441 = vmatprep.subr.mxu0 0.0
        %2442 = vmatpush2.msra.mxu0 0.0
        %2443 = vmatprep.subr.mxu0 0.0
        %2444 = vmatpush2.msra.mxu0 0.0
        %2445 = vmatprep.subr.mxu0 0.0
        %2446 = vmatpush2.msra.mxu0 0.0
        %2447 = vmatprep.mubr.f32.mxu0 0.0
        %v2448 = vand.u32 %v552, 4294901760
        %2449 = vmatmul.mubr.f32.gmra.mxu0 %v2448
        %v2450 = vpop.f32.mrf.mxu0
        %v2451 = vadd.f32 %v2347, %v2450
        %v2452 = vpop.f32.mrf.mxu0
        %v2453 = vadd.f32 %v2349, %v2452
        %2454 = vdwg.mxu0
        %v2455 = vand.u32 %v738, 4294901760
        %2456 = vmatprep.subr.mxu0 %v2455
        %v2457 = vand.u32 %v737, 4294901760
        %2458 = vmatpush1.msra.mxu0 %v2457
        %v2459 = vand.u32 %v726, 4294901760
        %2460 = vmatprep.subr.mxu0 %v2459
        %v2461 = vand.u32 %v725, 4294901760
        %2462 = vmatpush1.msra.mxu0 %v2461
        %v2463 = vand.u32 %v714, 4294901760
        %2464 = vmatprep.subr.mxu0 %v2463
        %v2465 = vand.u32 %v713, 4294901760
        %2466 = vmatpush1.msra.mxu0 %v2465
        %v2467 = vand.u32 %v702, 4294901760
        %2468 = vmatprep.subr.mxu0 %v2467
        %v2469 = vand.u32 %v701, 4294901760
        %2470 = vmatpush1.msra.mxu0 %v2469
        %v2471 = vand.u32 %v690, 4294901760
        %2472 = vmatprep.subr.mxu0 %v2471
        %v2473 = vand.u32 %v689, 4294901760
        %2474 = vmatpush1.msra.mxu0 %v2473
        %v2475 = vand.u32 %v678, 4294901760
        %2476 = vmatprep.subr.mxu0 %v2475
        %v2477 = vand.u32 %v677, 4294901760
        %2478 = vmatpush1.msra.mxu0 %v2477
        %v2479 = vand.u32 %v666, 4294901760
        %2480 = vmatprep.subr.mxu0 %v2479
        %v2481 = vand.u32 %v665, 4294901760
        %2482 = vmatpush1.msra.mxu0 %v2481
        %v2483 = vand.u32 %v654, 4294901760
        %2484 = vmatprep.subr.mxu0 %v2483
        %v2485 = vand.u32 %v653, 4294901760
        %2486 = vmatpush1.msra.mxu0 %v2485
        %v2487 = vand.u32 %v642, 4294901760
        %2488 = vmatprep.subr.mxu0 %v2487
        %v2489 = vand.u32 %v641, 4294901760
        %2490 = vmatpush1.msra.mxu0 %v2489
        %v2491 = vand.u32 %v630, 4294901760
        %2492 = vmatprep.subr.mxu0 %v2491
        %v2493 = vand.u32 %v629, 4294901760
        %2494 = vmatpush1.msra.mxu0 %v2493
        %v2495 = vand.u32 %v618, 4294901760
        %2496 = vmatprep.subr.mxu0 %v2495
        %v2497 = vand.u32 %v617, 4294901760
        %2498 = vmatpush1.msra.mxu0 %v2497
        %v2499 = vand.u32 %v606, 4294901760
        %2500 = vmatprep.subr.mxu0 %v2499
        %v2501 = vand.u32 %v605, 4294901760
        %2502 = vmatpush1.msra.mxu0 %v2501
        %v2503 = vand.u32 %v594, 4294901760
        %2504 = vmatprep.subr.mxu0 %v2503
        %v2505 = vand.u32 %v593, 4294901760
        %2506 = vmatpush1.msra.mxu0 %v2505
        %v2507 = vand.u32 %v582, 4294901760
        %2508 = vmatprep.subr.mxu0 %v2507
        %v2509 = vand.u32 %v581, 4294901760
        %2510 = vmatpush1.msra.mxu0 %v2509
        %v2511 = vand.u32 %v570, 4294901760
        %2512 = vmatprep.subr.mxu0 %v2511
        %v2513 = vand.u32 %v569, 4294901760
        %2514 = vmatpush1.msra.mxu0 %v2513
        %v2515 = vand.u32 %v558, 4294901760
        %2516 = vmatprep.subr.mxu0 %v2515
        %v2517 = vand.u32 %v557, 4294901760
        %2518 = vmatpush1.msra.mxu0 %v2517
        %2519 = vmatprep.subr.mxu0 0.0
        %2520 = vmatpush2.msra.mxu0 0.0
        %2521 = vmatprep.subr.mxu0 0.0
        %2522 = vmatpush2.msra.mxu0 0.0
        %2523 = vmatprep.subr.mxu0 0.0
        %2524 = vmatpush2.msra.mxu0 0.0
        %2525 = vmatprep.subr.mxu0 0.0
        %2526 = vmatpush2.msra.mxu0 0.0
        %2527 = vmatprep.subr.mxu0 0.0
        %2528 = vmatpush2.msra.mxu0 0.0
        %2529 = vmatprep.subr.mxu0 0.0
        %2530 = vmatpush2.msra.mxu0 0.0
        %2531 = vmatprep.subr.mxu0 0.0
        %2532 = vmatpush2.msra.mxu0 0.0
        %2533 = vmatprep.subr.mxu0 0.0
        %2534 = vmatpush2.msra.mxu0 0.0
        %2535 = vmatprep.subr.mxu0 0.0
        %2536 = vmatpush2.msra.mxu0 0.0
        %2537 = vmatprep.subr.mxu0 0.0
        %2538 = vmatpush2.msra.mxu0 0.0
        %2539 = vmatprep.subr.mxu0 0.0
        %2540 = vmatpush2.msra.mxu0 0.0
        %2541 = vmatprep.subr.mxu0 0.0
        %2542 = vmatpush2.msra.mxu0 0.0
        %2543 = vmatprep.subr.mxu0 0.0
        %2544 = vmatpush2.msra.mxu0 0.0
        %2545 = vmatprep.subr.mxu0 0.0
        %2546 = vmatpush2.msra.mxu0 0.0
        %2547 = vmatprep.subr.mxu0 0.0
        %2548 = vmatpush2.msra.mxu0 0.0
        %2549 = vmatprep.subr.mxu0 0.0
        %2550 = vmatpush2.msra.mxu0 0.0
        %2551 = vmatprep.mubr.f32.mxu0 0.0
        %v2552 = vand.u32 %v552, 4294901760
        %v2553 = vsub.f32 %v552, %v2552
        %v2554 = vand.u32 %v2553, 4294901760
        %v2555 = vsub.f32 %v2553, %v2554
        %v2556 = vand.u32 %v2555, 4294901760
        %2557 = vmatmul.mubr.f32.gmra.mxu0 %v2556
        %v2558 = vpop.f32.mrf.mxu0
        %v2559 = vadd.f32 0.0, %v2558
        %v2560 = vpop.f32.mrf.mxu0
        %v2561 = vadd.f32 0.0, %v2560
        %2562 = vdwg.mxu0
        %v2563 = vand.u32 %v738, 4294901760
        %v2564 = vsub.f32 %v738, %v2563
        %v2565 = vand.u32 %v2564, 4294901760
        %v2566 = vsub.f32 %v2564, %v2565
        %v2567 = vand.u32 %v2566, 4294901760
        %2568 = vmatprep.subr.mxu0 %v2567
        %v2569 = vand.u32 %v737, 4294901760
        %v2570 = vsub.f32 %v737, %v2569
        %v2571 = vand.u32 %v2570, 4294901760
        %v2572 = vsub.f32 %v2570, %v2571
        %v2573 = vand.u32 %v2572, 4294901760
        %2574 = vmatpush1.msra.mxu0 %v2573
        %v2575 = vand.u32 %v726, 4294901760
        %v2576 = vsub.f32 %v726, %v2575
        %v2577 = vand.u32 %v2576, 4294901760
        %v2578 = vsub.f32 %v2576, %v2577
        %v2579 = vand.u32 %v2578, 4294901760
        %2580 = vmatprep.subr.mxu0 %v2579
        %v2581 = vand.u32 %v725, 4294901760
        %v2582 = vsub.f32 %v725, %v2581
        %v2583 = vand.u32 %v2582, 4294901760
        %v2584 = vsub.f32 %v2582, %v2583
        %v2585 = vand.u32 %v2584, 4294901760
        %2586 = vmatpush1.msra.mxu0 %v2585
        %v2587 = vand.u32 %v714, 4294901760
        %v2588 = vsub.f32 %v714, %v2587
        %v2589 = vand.u32 %v2588, 4294901760
        %v2590 = vsub.f32 %v2588, %v2589
        %v2591 = vand.u32 %v2590, 4294901760
        %2592 = vmatprep.subr.mxu0 %v2591
        %v2593 = vand.u32 %v713, 4294901760
        %v2594 = vsub.f32 %v713, %v2593
        %v2595 = vand.u32 %v2594, 4294901760
        %v2596 = vsub.f32 %v2594, %v2595
        %v2597 = vand.u32 %v2596, 4294901760
        %2598 = vmatpush1.msra.mxu0 %v2597
        %v2599 = vand.u32 %v702, 4294901760
        %v2600 = vsub.f32 %v702, %v2599
        %v2601 = vand.u32 %v2600, 4294901760
        %v2602 = vsub.f32 %v2600, %v2601
        %v2603 = vand.u32 %v2602, 4294901760
        %2604 = vmatprep.subr.mxu0 %v2603
        %v2605 = vand.u32 %v701, 4294901760
        %v2606 = vsub.f32 %v701, %v2605
        %v2607 = vand.u32 %v2606, 4294901760
        %v2608 = vsub.f32 %v2606, %v2607
        %v2609 = vand.u32 %v2608, 4294901760
        %2610 = vmatpush1.msra.mxu0 %v2609
        %v2611 = vand.u32 %v690, 4294901760
        %v2612 = vsub.f32 %v690, %v2611
        %v2613 = vand.u32 %v2612, 4294901760
        %v2614 = vsub.f32 %v2612, %v2613
        %v2615 = vand.u32 %v2614, 4294901760
        %2616 = vmatprep.subr.mxu0 %v2615
        %v2617 = vand.u32 %v689, 4294901760
        %v2618 = vsub.f32 %v689, %v2617
        %v2619 = vand.u32 %v2618, 4294901760
        %v2620 = vsub.f32 %v2618, %v2619
        %v2621 = vand.u32 %v2620, 4294901760
        %2622 = vmatpush1.msra.mxu0 %v2621
        %v2623 = vand.u32 %v678, 4294901760
        %v2624 = vsub.f32 %v678, %v2623
        %v2625 = vand.u32 %v2624, 4294901760
        %v2626 = vsub.f32 %v2624, %v2625
        %v2627 = vand.u32 %v2626, 4294901760
        %2628 = vmatprep.subr.mxu0 %v2627
        %v2629 = vand.u32 %v677, 4294901760
        %v2630 = vsub.f32 %v677, %v2629
        %v2631 = vand.u32 %v2630, 4294901760
        %v2632 = vsub.f32 %v2630, %v2631
        %v2633 = vand.u32 %v2632, 4294901760
        %2634 = vmatpush1.msra.mxu0 %v2633
        %v2635 = vand.u32 %v666, 4294901760
        %v2636 = vsub.f32 %v666, %v2635
        %v2637 = vand.u32 %v2636, 4294901760
        %v2638 = vsub.f32 %v2636, %v2637
        %v2639 = vand.u32 %v2638, 4294901760
        %2640 = vmatprep.subr.mxu0 %v2639
        %v2641 = vand.u32 %v665, 4294901760
        %v2642 = vsub.f32 %v665, %v2641
        %v2643 = vand.u32 %v2642, 4294901760
        %v2644 = vsub.f32 %v2642, %v2643
        %v2645 = vand.u32 %v2644, 4294901760
        %2646 = vmatpush1.msra.mxu0 %v2645
        %v2647 = vand.u32 %v654, 4294901760
        %v2648 = vsub.f32 %v654, %v2647
        %v2649 = vand.u32 %v2648, 4294901760
        %v2650 = vsub.f32 %v2648, %v2649
        %v2651 = vand.u32 %v2650, 4294901760
        %2652 = vmatprep.subr.mxu0 %v2651
        %v2653 = vand.u32 %v653, 4294901760
        %v2654 = vsub.f32 %v653, %v2653
        %v2655 = vand.u32 %v2654, 4294901760
        %v2656 = vsub.f32 %v2654, %v2655
        %v2657 = vand.u32 %v2656, 4294901760
        %2658 = vmatpush1.msra.mxu0 %v2657
        %v2659 = vand.u32 %v642, 4294901760
        %v2660 = vsub.f32 %v642, %v2659
        %v2661 = vand.u32 %v2660, 4294901760
        %v2662 = vsub.f32 %v2660, %v2661
        %v2663 = vand.u32 %v2662, 4294901760
        %2664 = vmatprep.subr.mxu0 %v2663
        %v2665 = vand.u32 %v641, 4294901760
        %v2666 = vsub.f32 %v641, %v2665
        %v2667 = vand.u32 %v2666, 4294901760
        %v2668 = vsub.f32 %v2666, %v2667
        %v2669 = vand.u32 %v2668, 4294901760
        %2670 = vmatpush1.msra.mxu0 %v2669
        %v2671 = vand.u32 %v630, 4294901760
        %v2672 = vsub.f32 %v630, %v2671
        %v2673 = vand.u32 %v2672, 4294901760
        %v2674 = vsub.f32 %v2672, %v2673
        %v2675 = vand.u32 %v2674, 4294901760
        %2676 = vmatprep.subr.mxu0 %v2675
        %v2677 = vand.u32 %v629, 4294901760
        %v2678 = vsub.f32 %v629, %v2677
        %v2679 = vand.u32 %v2678, 4294901760
        %v2680 = vsub.f32 %v2678, %v2679
        %v2681 = vand.u32 %v2680, 4294901760
        %2682 = vmatpush1.msra.mxu0 %v2681
        %v2683 = vand.u32 %v618, 4294901760
        %v2684 = vsub.f32 %v618, %v2683
        %v2685 = vand.u32 %v2684, 4294901760
        %v2686 = vsub.f32 %v2684, %v2685
        %v2687 = vand.u32 %v2686, 4294901760
        %2688 = vmatprep.subr.mxu0 %v2687
        %v2689 = vand.u32 %v617, 4294901760
        %v2690 = vsub.f32 %v617, %v2689
        %v2691 = vand.u32 %v2690, 4294901760
        %v2692 = vsub.f32 %v2690, %v2691
        %v2693 = vand.u32 %v2692, 4294901760
        %2694 = vmatpush1.msra.mxu0 %v2693
        %v2695 = vand.u32 %v606, 4294901760
        %v2696 = vsub.f32 %v606, %v2695
        %v2697 = vand.u32 %v2696, 4294901760
        %v2698 = vsub.f32 %v2696, %v2697
        %v2699 = vand.u32 %v2698, 4294901760
        %2700 = vmatprep.subr.mxu0 %v2699
        %v2701 = vand.u32 %v605, 4294901760
        %v2702 = vsub.f32 %v605, %v2701
        %v2703 = vand.u32 %v2702, 4294901760
        %v2704 = vsub.f32 %v2702, %v2703
        %v2705 = vand.u32 %v2704, 4294901760
        %2706 = vmatpush1.msra.mxu0 %v2705
        %v2707 = vand.u32 %v594, 4294901760
        %v2708 = vsub.f32 %v594, %v2707
        %v2709 = vand.u32 %v2708, 4294901760
        %v2710 = vsub.f32 %v2708, %v2709
        %v2711 = vand.u32 %v2710, 4294901760
        %2712 = vmatprep.subr.mxu0 %v2711
        %v2713 = vand.u32 %v593, 4294901760
        %v2714 = vsub.f32 %v593, %v2713
        %v2715 = vand.u32 %v2714, 4294901760
        %v2716 = vsub.f32 %v2714, %v2715
        %v2717 = vand.u32 %v2716, 4294901760
        %2718 = vmatpush1.msra.mxu0 %v2717
        %v2719 = vand.u32 %v582, 4294901760
        %v2720 = vsub.f32 %v582, %v2719
        %v2721 = vand.u32 %v2720, 4294901760
        %v2722 = vsub.f32 %v2720, %v2721
        %v2723 = vand.u32 %v2722, 4294901760
        %2724 = vmatprep.subr.mxu0 %v2723
        %v2725 = vand.u32 %v581, 4294901760
        %v2726 = vsub.f32 %v581, %v2725
        %v2727 = vand.u32 %v2726, 4294901760
        %v2728 = vsub.f32 %v2726, %v2727
        %v2729 = vand.u32 %v2728, 4294901760
        %2730 = vmatpush1.msra.mxu0 %v2729
        %v2731 = vand.u32 %v570, 4294901760
        %v2732 = vsub.f32 %v570, %v2731
        %v2733 = vand.u32 %v2732, 4294901760
        %v2734 = vsub.f32 %v2732, %v2733
        %v2735 = vand.u32 %v2734, 4294901760
        %2736 = vmatprep.subr.mxu0 %v2735
        %v2737 = vand.u32 %v569, 4294901760
        %v2738 = vsub.f32 %v569, %v2737
        %v2739 = vand.u32 %v2738, 4294901760
        %v2740 = vsub.f32 %v2738, %v2739
        %v2741 = vand.u32 %v2740, 4294901760
        %2742 = vmatpush1.msra.mxu0 %v2741
        %v2743 = vand.u32 %v558, 4294901760
        %v2744 = vsub.f32 %v558, %v2743
        %v2745 = vand.u32 %v2744, 4294901760
        %v2746 = vsub.f32 %v2744, %v2745
        %v2747 = vand.u32 %v2746, 4294901760
        %2748 = vmatprep.subr.mxu0 %v2747
        %v2749 = vand.u32 %v557, 4294901760
        %v2750 = vsub.f32 %v557, %v2749
        %v2751 = vand.u32 %v2750, 4294901760
        %v2752 = vsub.f32 %v2750, %v2751
        %v2753 = vand.u32 %v2752, 4294901760
        %2754 = vmatpush1.msra.mxu0 %v2753
        %2755 = vmatprep.subr.mxu0 0.0
        %2756 = vmatpush2.msra.mxu0 0.0
        %2757 = vmatprep.subr.mxu0 0.0
        %2758 = vmatpush2.msra.mxu0 0.0
        %2759 = vmatprep.subr.mxu0 0.0
        %2760 = vmatpush2.msra.mxu0 0.0
        %2761 = vmatprep.subr.mxu0 0.0
        %2762 = vmatpush2.msra.mxu0 0.0
        %2763 = vmatprep.subr.mxu0 0.0
        %2764 = vmatpush2.msra.mxu0 0.0
        %2765 = vmatprep.subr.mxu0 0.0
        %2766 = vmatpush2.msra.mxu0 0.0
        %2767 = vmatprep.subr.mxu0 0.0
        %2768 = vmatpush2.msra.mxu0 0.0
        %2769 = vmatprep.subr.mxu0 0.0
        %2770 = vmatpush2.msra.mxu0 0.0
        %2771 = vmatprep.subr.mxu0 0.0
        %2772 = vmatpush2.msra.mxu0 0.0
        %2773 = vmatprep.subr.mxu0 0.0
        %2774 = vmatpush2.msra.mxu0 0.0
        %2775 = vmatprep.subr.mxu0 0.0
        %2776 = vmatpush2.msra.mxu0 0.0
        %2777 = vmatprep.subr.mxu0 0.0
        %2778 = vmatpush2.msra.mxu0 0.0
        %2779 = vmatprep.subr.mxu0 0.0
        %2780 = vmatpush2.msra.mxu0 0.0
        %2781 = vmatprep.subr.mxu0 0.0
        %2782 = vmatpush2.msra.mxu0 0.0
        %2783 = vmatprep.subr.mxu0 0.0
        %2784 = vmatpush2.msra.mxu0 0.0
        %2785 = vmatprep.subr.mxu0 0.0
        %2786 = vmatpush2.msra.mxu0 0.0
        %2787 = vmatprep.mubr.f32.mxu0 0.0
        %v2788 = vand.u32 %v552, 4294901760
        %2789 = vmatmul.mubr.f32.gmra.mxu0 %v2788
        %v2790 = vpop.f32.mrf.mxu0
        %v2791 = vadd.f32 %v2559, %v2790
        %v2792 = vpop.f32.mrf.mxu0
        %v2793 = vadd.f32 %v2561, %v2792
        %2794 = vdwg.mxu0
        %v2795 = vand.u32 %v738, 4294901760
        %v2796 = vsub.f32 %v738, %v2795
        %2797 = vmatprep.subr.mxu0 %v2796
        %v2798 = vand.u32 %v737, 4294901760
        %v2799 = vsub.f32 %v737, %v2798
        %2800 = vmatpush1.msra.mxu0 %v2799
        %v2801 = vand.u32 %v726, 4294901760
        %v2802 = vsub.f32 %v726, %v2801
        %2803 = vmatprep.subr.mxu0 %v2802
        %v2804 = vand.u32 %v725, 4294901760
        %v2805 = vsub.f32 %v725, %v2804
        %2806 = vmatpush1.msra.mxu0 %v2805
        %v2807 = vand.u32 %v714, 4294901760
        %v2808 = vsub.f32 %v714, %v2807
        %2809 = vmatprep.subr.mxu0 %v2808
        %v2810 = vand.u32 %v713, 4294901760
        %v2811 = vsub.f32 %v713, %v2810
        %2812 = vmatpush1.msra.mxu0 %v2811
        %v2813 = vand.u32 %v702, 4294901760
        %v2814 = vsub.f32 %v702, %v2813
        %2815 = vmatprep.subr.mxu0 %v2814
        %v2816 = vand.u32 %v701, 4294901760
        %v2817 = vsub.f32 %v701, %v2816
        %2818 = vmatpush1.msra.mxu0 %v2817
        %v2819 = vand.u32 %v690, 4294901760
        %v2820 = vsub.f32 %v690, %v2819
        %2821 = vmatprep.subr.mxu0 %v2820
        %v2822 = vand.u32 %v689, 4294901760
        %v2823 = vsub.f32 %v689, %v2822
        %2824 = vmatpush1.msra.mxu0 %v2823
        %v2825 = vand.u32 %v678, 4294901760
        %v2826 = vsub.f32 %v678, %v2825
        %2827 = vmatprep.subr.mxu0 %v2826
        %v2828 = vand.u32 %v677, 4294901760
        %v2829 = vsub.f32 %v677, %v2828
        %2830 = vmatpush1.msra.mxu0 %v2829
        %v2831 = vand.u32 %v666, 4294901760
        %v2832 = vsub.f32 %v666, %v2831
        %2833 = vmatprep.subr.mxu0 %v2832
        %v2834 = vand.u32 %v665, 4294901760
        %v2835 = vsub.f32 %v665, %v2834
        %2836 = vmatpush1.msra.mxu0 %v2835
        %v2837 = vand.u32 %v654, 4294901760
        %v2838 = vsub.f32 %v654, %v2837
        %2839 = vmatprep.subr.mxu0 %v2838
        %v2840 = vand.u32 %v653, 4294901760
        %v2841 = vsub.f32 %v653, %v2840
        %2842 = vmatpush1.msra.mxu0 %v2841
        %v2843 = vand.u32 %v642, 4294901760
        %v2844 = vsub.f32 %v642, %v2843
        %2845 = vmatprep.subr.mxu0 %v2844
        %v2846 = vand.u32 %v641, 4294901760
        %v2847 = vsub.f32 %v641, %v2846
        %2848 = vmatpush1.msra.mxu0 %v2847
        %v2849 = vand.u32 %v630, 4294901760
        %v2850 = vsub.f32 %v630, %v2849
        %2851 = vmatprep.subr.mxu0 %v2850
        %v2852 = vand.u32 %v629, 4294901760
        %v2853 = vsub.f32 %v629, %v2852
        %2854 = vmatpush1.msra.mxu0 %v2853
        %v2855 = vand.u32 %v618, 4294901760
        %v2856 = vsub.f32 %v618, %v2855
        %2857 = vmatprep.subr.mxu0 %v2856
        %v2858 = vand.u32 %v617, 4294901760
        %v2859 = vsub.f32 %v617, %v2858
        %2860 = vmatpush1.msra.mxu0 %v2859
        %v2861 = vand.u32 %v606, 4294901760
        %v2862 = vsub.f32 %v606, %v2861
        %2863 = vmatprep.subr.mxu0 %v2862
        %v2864 = vand.u32 %v605, 4294901760
        %v2865 = vsub.f32 %v605, %v2864
        %2866 = vmatpush1.msra.mxu0 %v2865
        %v2867 = vand.u32 %v594, 4294901760
        %v2868 = vsub.f32 %v594, %v2867
        %2869 = vmatprep.subr.mxu0 %v2868
        %v2870 = vand.u32 %v593, 4294901760
        %v2871 = vsub.f32 %v593, %v2870
        %2872 = vmatpush1.msra.mxu0 %v2871
        %v2873 = vand.u32 %v582, 4294901760
        %v2874 = vsub.f32 %v582, %v2873
        %2875 = vmatprep.subr.mxu0 %v2874
        %v2876 = vand.u32 %v581, 4294901760
        %v2877 = vsub.f32 %v581, %v2876
        %2878 = vmatpush1.msra.mxu0 %v2877
        %v2879 = vand.u32 %v570, 4294901760
        %v2880 = vsub.f32 %v570, %v2879
        %2881 = vmatprep.subr.mxu0 %v2880
        %v2882 = vand.u32 %v569, 4294901760
        %v2883 = vsub.f32 %v569, %v2882
        %2884 = vmatpush1.msra.mxu0 %v2883
        %v2885 = vand.u32 %v558, 4294901760
        %v2886 = vsub.f32 %v558, %v2885
        %2887 = vmatprep.subr.mxu0 %v2886
        %v2888 = vand.u32 %v557, 4294901760
        %v2889 = vsub.f32 %v557, %v2888
        %2890 = vmatpush1.msra.mxu0 %v2889
        %2891 = vmatprep.subr.mxu0 0.0
        %2892 = vmatpush2.msra.mxu0 0.0
        %2893 = vmatprep.subr.mxu0 0.0
        %2894 = vmatpush2.msra.mxu0 0.0
        %2895 = vmatprep.subr.mxu0 0.0
        %2896 = vmatpush2.msra.mxu0 0.0
        %2897 = vmatprep.subr.mxu0 0.0
        %2898 = vmatpush2.msra.mxu0 0.0
        %2899 = vmatprep.subr.mxu0 0.0
        %2900 = vmatpush2.msra.mxu0 0.0
        %2901 = vmatprep.subr.mxu0 0.0
        %2902 = vmatpush2.msra.mxu0 0.0
        %2903 = vmatprep.subr.mxu0 0.0
        %2904 = vmatpush2.msra.mxu0 0.0
        %2905 = vmatprep.subr.mxu0 0.0
        %2906 = vmatpush2.msra.mxu0 0.0
        %2907 = vmatprep.subr.mxu0 0.0
        %2908 = vmatpush2.msra.mxu0 0.0
        %2909 = vmatprep.subr.mxu0 0.0
        %2910 = vmatpush2.msra.mxu0 0.0
        %2911 = vmatprep.subr.mxu0 0.0
        %2912 = vmatpush2.msra.mxu0 0.0
        %2913 = vmatprep.subr.mxu0 0.0
        %2914 = vmatpush2.msra.mxu0 0.0
        %2915 = vmatprep.subr.mxu0 0.0
        %2916 = vmatpush2.msra.mxu0 0.0
        %2917 = vmatprep.subr.mxu0 0.0
        %2918 = vmatpush2.msra.mxu0 0.0
        %2919 = vmatprep.subr.mxu0 0.0
        %2920 = vmatpush2.msra.mxu0 0.0
        %2921 = vmatprep.subr.mxu0 0.0
        %2922 = vmatpush2.msra.mxu0 0.0
        %2923 = vmatprep.mubr.f32.mxu0 0.0
        %v2924 = vand.u32 %v552, 4294901760
        %v2925 = vsub.f32 %v552, %v2924
        %2926 = vmatmul.mubr.f32.gmra.mxu0 %v2925
        %v2927 = vpop.f32.mrf.mxu0
        %v2928 = vadd.f32 %v2791, %v2927
        %v2929 = vpop.f32.mrf.mxu0
        %v2930 = vadd.f32 %v2793, %v2929
        %2931 = vdwg.mxu0
        %v2932 = vand.u32 %v738, 4294901760
        %2933 = vmatprep.subr.mxu0 %v2932
        %v2934 = vand.u32 %v737, 4294901760
        %2935 = vmatpush1.msra.mxu0 %v2934
        %v2936 = vand.u32 %v726, 4294901760
        %2937 = vmatprep.subr.mxu0 %v2936
        %v2938 = vand.u32 %v725, 4294901760
        %2939 = vmatpush1.msra.mxu0 %v2938
        %v2940 = vand.u32 %v714, 4294901760
        %2941 = vmatprep.subr.mxu0 %v2940
        %v2942 = vand.u32 %v713, 4294901760
        %2943 = vmatpush1.msra.mxu0 %v2942
        %v2944 = vand.u32 %v702, 4294901760
        %2945 = vmatprep.subr.mxu0 %v2944
        %v2946 = vand.u32 %v701, 4294901760
        %2947 = vmatpush1.msra.mxu0 %v2946
        %v2948 = vand.u32 %v690, 4294901760
        %2949 = vmatprep.subr.mxu0 %v2948
        %v2950 = vand.u32 %v689, 4294901760
        %2951 = vmatpush1.msra.mxu0 %v2950
        %v2952 = vand.u32 %v678, 4294901760
        %2953 = vmatprep.subr.mxu0 %v2952
        %v2954 = vand.u32 %v677, 4294901760
        %2955 = vmatpush1.msra.mxu0 %v2954
        %v2956 = vand.u32 %v666, 4294901760
        %2957 = vmatprep.subr.mxu0 %v2956
        %v2958 = vand.u32 %v665, 4294901760
        %2959 = vmatpush1.msra.mxu0 %v2958
        %v2960 = vand.u32 %v654, 4294901760
        %2961 = vmatprep.subr.mxu0 %v2960
        %v2962 = vand.u32 %v653, 4294901760
        %2963 = vmatpush1.msra.mxu0 %v2962
        %v2964 = vand.u32 %v642, 4294901760
        %2965 = vmatprep.subr.mxu0 %v2964
        %v2966 = vand.u32 %v641, 4294901760
        %2967 = vmatpush1.msra.mxu0 %v2966
        %v2968 = vand.u32 %v630, 4294901760
        %2969 = vmatprep.subr.mxu0 %v2968
        %v2970 = vand.u32 %v629, 4294901760
        %2971 = vmatpush1.msra.mxu0 %v2970
        %v2972 = vand.u32 %v618, 4294901760
        %2973 = vmatprep.subr.mxu0 %v2972
        %v2974 = vand.u32 %v617, 4294901760
        %2975 = vmatpush1.msra.mxu0 %v2974
        %v2976 = vand.u32 %v606, 4294901760
        %2977 = vmatprep.subr.mxu0 %v2976
        %v2978 = vand.u32 %v605, 4294901760
        %2979 = vmatpush1.msra.mxu0 %v2978
        %v2980 = vand.u32 %v594, 4294901760
        %2981 = vmatprep.subr.mxu0 %v2980
        %v2982 = vand.u32 %v593, 4294901760
        %2983 = vmatpush1.msra.mxu0 %v2982
        %v2984 = vand.u32 %v582, 4294901760
        %2985 = vmatprep.subr.mxu0 %v2984
        %v2986 = vand.u32 %v581, 4294901760
        %2987 = vmatpush1.msra.mxu0 %v2986
        %v2988 = vand.u32 %v570, 4294901760
        %2989 = vmatprep.subr.mxu0 %v2988
        %v2990 = vand.u32 %v569, 4294901760
        %2991 = vmatpush1.msra.mxu0 %v2990
        %v2992 = vand.u32 %v558, 4294901760
        %2993 = vmatprep.subr.mxu0 %v2992
        %v2994 = vand.u32 %v557, 4294901760
        %2995 = vmatpush1.msra.mxu0 %v2994
        %2996 = vmatprep.subr.mxu0 0.0
        %2997 = vmatpush2.msra.mxu0 0.0
        %2998 = vmatprep.subr.mxu0 0.0
        %2999 = vmatpush2.msra.mxu0 0.0
        %3000 = vmatprep.subr.mxu0 0.0
        %3001 = vmatpush2.msra.mxu0 0.0
        %3002 = vmatprep.subr.mxu0 0.0
        %3003 = vmatpush2.msra.mxu0 0.0
        %3004 = vmatprep.subr.mxu0 0.0
        %3005 = vmatpush2.msra.mxu0 0.0
        %3006 = vmatprep.subr.mxu0 0.0
        %3007 = vmatpush2.msra.mxu0 0.0
        %3008 = vmatprep.subr.mxu0 0.0
        %3009 = vmatpush2.msra.mxu0 0.0
        %3010 = vmatprep.subr.mxu0 0.0
        %3011 = vmatpush2.msra.mxu0 0.0
        %3012 = vmatprep.subr.mxu0 0.0
        %3013 = vmatpush2.msra.mxu0 0.0
        %3014 = vmatprep.subr.mxu0 0.0
        %3015 = vmatpush2.msra.mxu0 0.0
        %3016 = vmatprep.subr.mxu0 0.0
        %3017 = vmatpush2.msra.mxu0 0.0
        %3018 = vmatprep.subr.mxu0 0.0
        %3019 = vmatpush2.msra.mxu0 0.0
        %3020 = vmatprep.subr.mxu0 0.0
        %3021 = vmatpush2.msra.mxu0 0.0
        %3022 = vmatprep.subr.mxu0 0.0
        %3023 = vmatpush2.msra.mxu0 0.0
        %3024 = vmatprep.subr.mxu0 0.0
        %3025 = vmatpush2.msra.mxu0 0.0
        %3026 = vmatprep.subr.mxu0 0.0
        %3027 = vmatpush2.msra.mxu0 0.0
        %3028 = vmatprep.mubr.f32.mxu0 0.0
        %v3029 = vand.u32 %v552, 4294901760
        %v3030 = vsub.f32 %v552, %v3029
        %v3031 = vand.u32 %v3030, 4294901760
        %3032 = vmatmul.mubr.f32.gmra.mxu0 %v3031
        %v3033 = vpop.f32.mrf.mxu0
        %v3034 = vadd.f32 %v2928, %v3033
        %v3035 = vpop.f32.mrf.mxu0
        %v3036 = vadd.f32 %v2930, %v3035
        %3037 = vdwg.mxu0
        %v3038 = vand.u32 %v738, 4294901760
        %v3039 = vsub.f32 %v738, %v3038
        %v3040 = vand.u32 %v3039, 4294901760
        %3041 = vmatprep.subr.mxu0 %v3040
        %v3042 = vand.u32 %v737, 4294901760
        %v3043 = vsub.f32 %v737, %v3042
        %v3044 = vand.u32 %v3043, 4294901760
        %3045 = vmatpush1.msra.mxu0 %v3044
        %v3046 = vand.u32 %v726, 4294901760
        %v3047 = vsub.f32 %v726, %v3046
        %v3048 = vand.u32 %v3047, 4294901760
        %3049 = vmatprep.subr.mxu0 %v3048
        %v3050 = vand.u32 %v725, 4294901760
        %v3051 = vsub.f32 %v725, %v3050
        %v3052 = vand.u32 %v3051, 4294901760
        %3053 = vmatpush1.msra.mxu0 %v3052
        %v3054 = vand.u32 %v714, 4294901760
        %v3055 = vsub.f32 %v714, %v3054
        %v3056 = vand.u32 %v3055, 4294901760
        %3057 = vmatprep.subr.mxu0 %v3056
        %v3058 = vand.u32 %v713, 4294901760
        %v3059 = vsub.f32 %v713, %v3058
        %v3060 = vand.u32 %v3059, 4294901760
        %3061 = vmatpush1.msra.mxu0 %v3060
        %v3062 = vand.u32 %v702, 4294901760
        %v3063 = vsub.f32 %v702, %v3062
        %v3064 = vand.u32 %v3063, 4294901760
        %3065 = vmatprep.subr.mxu0 %v3064
        %v3066 = vand.u32 %v701, 4294901760
        %v3067 = vsub.f32 %v701, %v3066
        %v3068 = vand.u32 %v3067, 4294901760
        %3069 = vmatpush1.msra.mxu0 %v3068
        %v3070 = vand.u32 %v690, 4294901760
        %v3071 = vsub.f32 %v690, %v3070
        %v3072 = vand.u32 %v3071, 4294901760
        %3073 = vmatprep.subr.mxu0 %v3072
        %v3074 = vand.u32 %v689, 4294901760
        %v3075 = vsub.f32 %v689, %v3074
        %v3076 = vand.u32 %v3075, 4294901760
        %3077 = vmatpush1.msra.mxu0 %v3076
        %v3078 = vand.u32 %v678, 4294901760
        %v3079 = vsub.f32 %v678, %v3078
        %v3080 = vand.u32 %v3079, 4294901760
        %3081 = vmatprep.subr.mxu0 %v3080
        %v3082 = vand.u32 %v677, 4294901760
        %v3083 = vsub.f32 %v677, %v3082
        %v3084 = vand.u32 %v3083, 4294901760
        %3085 = vmatpush1.msra.mxu0 %v3084
        %v3086 = vand.u32 %v666, 4294901760
        %v3087 = vsub.f32 %v666, %v3086
        %v3088 = vand.u32 %v3087, 4294901760
        %3089 = vmatprep.subr.mxu0 %v3088
        %v3090 = vand.u32 %v665, 4294901760
        %v3091 = vsub.f32 %v665, %v3090
        %v3092 = vand.u32 %v3091, 4294901760
        %3093 = vmatpush1.msra.mxu0 %v3092
        %v3094 = vand.u32 %v654, 4294901760
        %v3095 = vsub.f32 %v654, %v3094
        %v3096 = vand.u32 %v3095, 4294901760
        %3097 = vmatprep.subr.mxu0 %v3096
        %v3098 = vand.u32 %v653, 4294901760
        %v3099 = vsub.f32 %v653, %v3098
        %v3100 = vand.u32 %v3099, 4294901760
        %3101 = vmatpush1.msra.mxu0 %v3100
        %v3102 = vand.u32 %v642, 4294901760
        %v3103 = vsub.f32 %v642, %v3102
        %v3104 = vand.u32 %v3103, 4294901760
        %3105 = vmatprep.subr.mxu0 %v3104
        %v3106 = vand.u32 %v641, 4294901760
        %v3107 = vsub.f32 %v641, %v3106
        %v3108 = vand.u32 %v3107, 4294901760
        %3109 = vmatpush1.msra.mxu0 %v3108
        %v3110 = vand.u32 %v630, 4294901760
        %v3111 = vsub.f32 %v630, %v3110
        %v3112 = vand.u32 %v3111, 4294901760
        %3113 = vmatprep.subr.mxu0 %v3112
        %v3114 = vand.u32 %v629, 4294901760
        %v3115 = vsub.f32 %v629, %v3114
        %v3116 = vand.u32 %v3115, 4294901760
        %3117 = vmatpush1.msra.mxu0 %v3116
        %v3118 = vand.u32 %v618, 4294901760
        %v3119 = vsub.f32 %v618, %v3118
        %v3120 = vand.u32 %v3119, 4294901760
        %3121 = vmatprep.subr.mxu0 %v3120
        %v3122 = vand.u32 %v617, 4294901760
        %v3123 = vsub.f32 %v617, %v3122
        %v3124 = vand.u32 %v3123, 4294901760
        %3125 = vmatpush1.msra.mxu0 %v3124
        %v3126 = vand.u32 %v606, 4294901760
        %v3127 = vsub.f32 %v606, %v3126
        %v3128 = vand.u32 %v3127, 4294901760
        %3129 = vmatprep.subr.mxu0 %v3128
        %v3130 = vand.u32 %v605, 4294901760
        %v3131 = vsub.f32 %v605, %v3130
        %v3132 = vand.u32 %v3131, 4294901760
        %3133 = vmatpush1.msra.mxu0 %v3132
        %v3134 = vand.u32 %v594, 4294901760
        %v3135 = vsub.f32 %v594, %v3134
        %v3136 = vand.u32 %v3135, 4294901760
        %3137 = vmatprep.subr.mxu0 %v3136
        %v3138 = vand.u32 %v593, 4294901760
        %v3139 = vsub.f32 %v593, %v3138
        %v3140 = vand.u32 %v3139, 4294901760
        %3141 = vmatpush1.msra.mxu0 %v3140
        %v3142 = vand.u32 %v582, 4294901760
        %v3143 = vsub.f32 %v582, %v3142
        %v3144 = vand.u32 %v3143, 4294901760
        %3145 = vmatprep.subr.mxu0 %v3144
        %v3146 = vand.u32 %v581, 4294901760
        %v3147 = vsub.f32 %v581, %v3146
        %v3148 = vand.u32 %v3147, 4294901760
        %3149 = vmatpush1.msra.mxu0 %v3148
        %v3150 = vand.u32 %v570, 4294901760
        %v3151 = vsub.f32 %v570, %v3150
        %v3152 = vand.u32 %v3151, 4294901760
        %3153 = vmatprep.subr.mxu0 %v3152
        %v3154 = vand.u32 %v569, 4294901760
        %v3155 = vsub.f32 %v569, %v3154
        %v3156 = vand.u32 %v3155, 4294901760
        %3157 = vmatpush1.msra.mxu0 %v3156
        %v3158 = vand.u32 %v558, 4294901760
        %v3159 = vsub.f32 %v558, %v3158
        %v3160 = vand.u32 %v3159, 4294901760
        %3161 = vmatprep.subr.mxu0 %v3160
        %v3162 = vand.u32 %v557, 4294901760
        %v3163 = vsub.f32 %v557, %v3162
        %v3164 = vand.u32 %v3163, 4294901760
        %3165 = vmatpush1.msra.mxu0 %v3164
        %3166 = vmatprep.subr.mxu0 0.0
        %3167 = vmatpush2.msra.mxu0 0.0
        %3168 = vmatprep.subr.mxu0 0.0
        %3169 = vmatpush2.msra.mxu0 0.0
        %3170 = vmatprep.subr.mxu0 0.0
        %3171 = vmatpush2.msra.mxu0 0.0
        %3172 = vmatprep.subr.mxu0 0.0
        %3173 = vmatpush2.msra.mxu0 0.0
        %3174 = vmatprep.subr.mxu0 0.0
        %3175 = vmatpush2.msra.mxu0 0.0
        %3176 = vmatprep.subr.mxu0 0.0
        %3177 = vmatpush2.msra.mxu0 0.0
        %3178 = vmatprep.subr.mxu0 0.0
        %3179 = vmatpush2.msra.mxu0 0.0
        %3180 = vmatprep.subr.mxu0 0.0
        %3181 = vmatpush2.msra.mxu0 0.0
        %3182 = vmatprep.subr.mxu0 0.0
        %3183 = vmatpush2.msra.mxu0 0.0
        %3184 = vmatprep.subr.mxu0 0.0
        %3185 = vmatpush2.msra.mxu0 0.0
        %3186 = vmatprep.subr.mxu0 0.0
        %3187 = vmatpush2.msra.mxu0 0.0
        %3188 = vmatprep.subr.mxu0 0.0
        %3189 = vmatpush2.msra.mxu0 0.0
        %3190 = vmatprep.subr.mxu0 0.0
        %3191 = vmatpush2.msra.mxu0 0.0
        %3192 = vmatprep.subr.mxu0 0.0
        %3193 = vmatpush2.msra.mxu0 0.0
        %3194 = vmatprep.subr.mxu0 0.0
        %3195 = vmatpush2.msra.mxu0 0.0
        %3196 = vmatprep.subr.mxu0 0.0
        %3197 = vmatpush2.msra.mxu0 0.0
        %3198 = vmatprep.mubr.f32.mxu0 0.0
        %v3199 = vand.u32 %v552, 4294901760
        %3200 = vmatmul.mubr.f32.gmra.mxu0 %v3199
        %v3201 = vpop.f32.mrf.mxu0
        %v3202 = vadd.f32 %v3034, %v3201
        %v3203 = vpop.f32.mrf.mxu0
        %v3204 = vadd.f32 %v3036, %v3203
        %3205 = vdwg.mxu0
        %v3206 = vand.u32 %v738, 4294901760
        %3207 = vmatprep.subr.mxu0 %v3206
        %v3208 = vand.u32 %v737, 4294901760
        %3209 = vmatpush1.msra.mxu0 %v3208
        %v3210 = vand.u32 %v726, 4294901760
        %3211 = vmatprep.subr.mxu0 %v3210
        %v3212 = vand.u32 %v725, 4294901760
        %3213 = vmatpush1.msra.mxu0 %v3212
        %v3214 = vand.u32 %v714, 4294901760
        %3215 = vmatprep.subr.mxu0 %v3214
        %v3216 = vand.u32 %v713, 4294901760
        %3217 = vmatpush1.msra.mxu0 %v3216
        %v3218 = vand.u32 %v702, 4294901760
        %3219 = vmatprep.subr.mxu0 %v3218
        %v3220 = vand.u32 %v701, 4294901760
        %3221 = vmatpush1.msra.mxu0 %v3220
        %v3222 = vand.u32 %v690, 4294901760
        %3223 = vmatprep.subr.mxu0 %v3222
        %v3224 = vand.u32 %v689, 4294901760
        %3225 = vmatpush1.msra.mxu0 %v3224
        %v3226 = vand.u32 %v678, 4294901760
        %3227 = vmatprep.subr.mxu0 %v3226
        %v3228 = vand.u32 %v677, 4294901760
        %3229 = vmatpush1.msra.mxu0 %v3228
        %v3230 = vand.u32 %v666, 4294901760
        %3231 = vmatprep.subr.mxu0 %v3230
        %v3232 = vand.u32 %v665, 4294901760
        %3233 = vmatpush1.msra.mxu0 %v3232
        %v3234 = vand.u32 %v654, 4294901760
        %3235 = vmatprep.subr.mxu0 %v3234
        %v3236 = vand.u32 %v653, 4294901760
        %3237 = vmatpush1.msra.mxu0 %v3236
        %v3238 = vand.u32 %v642, 4294901760
        %3239 = vmatprep.subr.mxu0 %v3238
        %v3240 = vand.u32 %v641, 4294901760
        %3241 = vmatpush1.msra.mxu0 %v3240
        %v3242 = vand.u32 %v630, 4294901760
        %3243 = vmatprep.subr.mxu0 %v3242
        %v3244 = vand.u32 %v629, 4294901760
        %3245 = vmatpush1.msra.mxu0 %v3244
        %v3246 = vand.u32 %v618, 4294901760
        %3247 = vmatprep.subr.mxu0 %v3246
        %v3248 = vand.u32 %v617, 4294901760
        %3249 = vmatpush1.msra.mxu0 %v3248
        %v3250 = vand.u32 %v606, 4294901760
        %3251 = vmatprep.subr.mxu0 %v3250
        %v3252 = vand.u32 %v605, 4294901760
        %3253 = vmatpush1.msra.mxu0 %v3252
        %v3254 = vand.u32 %v594, 4294901760
        %3255 = vmatprep.subr.mxu0 %v3254
        %v3256 = vand.u32 %v593, 4294901760
        %3257 = vmatpush1.msra.mxu0 %v3256
        %v3258 = vand.u32 %v582, 4294901760
        %3259 = vmatprep.subr.mxu0 %v3258
        %v3260 = vand.u32 %v581, 4294901760
        %3261 = vmatpush1.msra.mxu0 %v3260
        %v3262 = vand.u32 %v570, 4294901760
        %3263 = vmatprep.subr.mxu0 %v3262
        %v3264 = vand.u32 %v569, 4294901760
        %3265 = vmatpush1.msra.mxu0 %v3264
        %v3266 = vand.u32 %v558, 4294901760
        %3267 = vmatprep.subr.mxu0 %v3266
        %v3268 = vand.u32 %v557, 4294901760
        %3269 = vmatpush1.msra.mxu0 %v3268
        %3270 = vmatprep.subr.mxu0 0.0
        %3271 = vmatpush2.msra.mxu0 0.0
        %3272 = vmatprep.subr.mxu0 0.0
        %3273 = vmatpush2.msra.mxu0 0.0
        %3274 = vmatprep.subr.mxu0 0.0
        %3275 = vmatpush2.msra.mxu0 0.0
        %3276 = vmatprep.subr.mxu0 0.0
        %3277 = vmatpush2.msra.mxu0 0.0
        %3278 = vmatprep.subr.mxu0 0.0
        %3279 = vmatpush2.msra.mxu0 0.0
        %3280 = vmatprep.subr.mxu0 0.0
        %3281 = vmatpush2.msra.mxu0 0.0
        %3282 = vmatprep.subr.mxu0 0.0
        %3283 = vmatpush2.msra.mxu0 0.0
        %3284 = vmatprep.subr.mxu0 0.0
        %3285 = vmatpush2.msra.mxu0 0.0
        %3286 = vmatprep.subr.mxu0 0.0
        %3287 = vmatpush2.msra.mxu0 0.0
        %3288 = vmatprep.subr.mxu0 0.0
        %3289 = vmatpush2.msra.mxu0 0.0
        %3290 = vmatprep.subr.mxu0 0.0
        %3291 = vmatpush2.msra.mxu0 0.0
        %3292 = vmatprep.subr.mxu0 0.0
        %3293 = vmatpush2.msra.mxu0 0.0
        %3294 = vmatprep.subr.mxu0 0.0
        %3295 = vmatpush2.msra.mxu0 0.0
        %3296 = vmatprep.subr.mxu0 0.0
        %3297 = vmatpush2.msra.mxu0 0.0
        %3298 = vmatprep.subr.mxu0 0.0
        %3299 = vmatpush2.msra.mxu0 0.0
        %3300 = vmatprep.subr.mxu0 0.0
        %3301 = vmatpush2.msra.mxu0 0.0
        %3302 = vmatprep.mubr.f32.mxu0 0.0
        %v3303 = vand.u32 %v552, 4294901760
        %3304 = vmatmul.mubr.f32.gmra.mxu0 %v3303
        %v3305 = vpop.f32.mrf.mxu0
        %v3306 = vadd.f32 %v3202, %v3305
        %v3307 = vpop.f32.mrf.mxu0
        %v3308 = vadd.f32 %v3204, %v3307
        %3309 = vdwg.mxu0
        %v3310 = vand.u32 %v740, 4294901760
        %3311 = vmatprep.subr.mxu0 %v3310
        %v3312 = vand.u32 %v739, 4294901760
        %3313 = vmatpush1.msra.mxu0 %v3312
        %v3314 = vand.u32 %v728, 4294901760
        %3315 = vmatprep.subr.mxu0 %v3314
        %v3316 = vand.u32 %v727, 4294901760
        %3317 = vmatpush1.msra.mxu0 %v3316
        %v3318 = vand.u32 %v716, 4294901760
        %3319 = vmatprep.subr.mxu0 %v3318
        %v3320 = vand.u32 %v715, 4294901760
        %3321 = vmatpush1.msra.mxu0 %v3320
        %v3322 = vand.u32 %v704, 4294901760
        %3323 = vmatprep.subr.mxu0 %v3322
        %v3324 = vand.u32 %v703, 4294901760
        %3325 = vmatpush1.msra.mxu0 %v3324
        %v3326 = vand.u32 %v692, 4294901760
        %3327 = vmatprep.subr.mxu0 %v3326
        %v3328 = vand.u32 %v691, 4294901760
        %3329 = vmatpush1.msra.mxu0 %v3328
        %v3330 = vand.u32 %v680, 4294901760
        %3331 = vmatprep.subr.mxu0 %v3330
        %v3332 = vand.u32 %v679, 4294901760
        %3333 = vmatpush1.msra.mxu0 %v3332
        %v3334 = vand.u32 %v668, 4294901760
        %3335 = vmatprep.subr.mxu0 %v3334
        %v3336 = vand.u32 %v667, 4294901760
        %3337 = vmatpush1.msra.mxu0 %v3336
        %v3338 = vand.u32 %v656, 4294901760
        %3339 = vmatprep.subr.mxu0 %v3338
        %v3340 = vand.u32 %v655, 4294901760
        %3341 = vmatpush1.msra.mxu0 %v3340
        %v3342 = vand.u32 %v644, 4294901760
        %3343 = vmatprep.subr.mxu0 %v3342
        %v3344 = vand.u32 %v643, 4294901760
        %3345 = vmatpush1.msra.mxu0 %v3344
        %v3346 = vand.u32 %v632, 4294901760
        %3347 = vmatprep.subr.mxu0 %v3346
        %v3348 = vand.u32 %v631, 4294901760
        %3349 = vmatpush1.msra.mxu0 %v3348
        %v3350 = vand.u32 %v620, 4294901760
        %3351 = vmatprep.subr.mxu0 %v3350
        %v3352 = vand.u32 %v619, 4294901760
        %3353 = vmatpush1.msra.mxu0 %v3352
        %v3354 = vand.u32 %v608, 4294901760
        %3355 = vmatprep.subr.mxu0 %v3354
        %v3356 = vand.u32 %v607, 4294901760
        %3357 = vmatpush1.msra.mxu0 %v3356
        %v3358 = vand.u32 %v596, 4294901760
        %3359 = vmatprep.subr.mxu0 %v3358
        %v3360 = vand.u32 %v595, 4294901760
        %3361 = vmatpush1.msra.mxu0 %v3360
        %v3362 = vand.u32 %v584, 4294901760
        %3363 = vmatprep.subr.mxu0 %v3362
        %v3364 = vand.u32 %v583, 4294901760
        %3365 = vmatpush1.msra.mxu0 %v3364
        %v3366 = vand.u32 %v572, 4294901760
        %3367 = vmatprep.subr.mxu0 %v3366
        %v3368 = vand.u32 %v571, 4294901760
        %3369 = vmatpush1.msra.mxu0 %v3368
        %v3370 = vand.u32 %v560, 4294901760
        %3371 = vmatprep.subr.mxu0 %v3370
        %v3372 = vand.u32 %v559, 4294901760
        %3373 = vmatpush1.msra.mxu0 %v3372
        %3374 = vmatprep.subr.mxu0 0.0
        %3375 = vmatpush2.msra.mxu0 0.0
        %3376 = vmatprep.subr.mxu0 0.0
        %3377 = vmatpush2.msra.mxu0 0.0
        %3378 = vmatprep.subr.mxu0 0.0
        %3379 = vmatpush2.msra.mxu0 0.0
        %3380 = vmatprep.subr.mxu0 0.0
        %3381 = vmatpush2.msra.mxu0 0.0
        %3382 = vmatprep.subr.mxu0 0.0
        %3383 = vmatpush2.msra.mxu0 0.0
        %3384 = vmatprep.subr.mxu0 0.0
        %3385 = vmatpush2.msra.mxu0 0.0
        %3386 = vmatprep.subr.mxu0 0.0
        %3387 = vmatpush2.msra.mxu0 0.0
        %3388 = vmatprep.subr.mxu0 0.0
        %3389 = vmatpush2.msra.mxu0 0.0
        %3390 = vmatprep.subr.mxu0 0.0
        %3391 = vmatpush2.msra.mxu0 0.0
        %3392 = vmatprep.subr.mxu0 0.0
        %3393 = vmatpush2.msra.mxu0 0.0
        %3394 = vmatprep.subr.mxu0 0.0
        %3395 = vmatpush2.msra.mxu0 0.0
        %3396 = vmatprep.subr.mxu0 0.0
        %3397 = vmatpush2.msra.mxu0 0.0
        %3398 = vmatprep.subr.mxu0 0.0
        %3399 = vmatpush2.msra.mxu0 0.0
        %3400 = vmatprep.subr.mxu0 0.0
        %3401 = vmatpush2.msra.mxu0 0.0
        %3402 = vmatprep.subr.mxu0 0.0
        %3403 = vmatpush2.msra.mxu0 0.0
        %3404 = vmatprep.subr.mxu0 0.0
        %3405 = vmatpush2.msra.mxu0 0.0
        %3406 = vmatprep.mubr.f32.mxu0 0.0
        %v3407 = vand.u32 %v552, 4294901760
        %v3408 = vsub.f32 %v552, %v3407
        %v3409 = vand.u32 %v3408, 4294901760
        %v3410 = vsub.f32 %v3408, %v3409
        %v3411 = vand.u32 %v3410, 4294901760
        %3412 = vmatmul.mubr.f32.gmra.mxu0 %v3411
        %v3413 = vpop.f32.mrf.mxu0
        %v3414 = vadd.f32 0.0, %v3413
        %v3415 = vpop.f32.mrf.mxu0
        %v3416 = vadd.f32 0.0, %v3415
        %3417 = vdwg.mxu0
        %v3418 = vand.u32 %v740, 4294901760
        %v3419 = vsub.f32 %v740, %v3418
        %v3420 = vand.u32 %v3419, 4294901760
        %v3421 = vsub.f32 %v3419, %v3420
        %v3422 = vand.u32 %v3421, 4294901760
        %3423 = vmatprep.subr.mxu0 %v3422
        %v3424 = vand.u32 %v739, 4294901760
        %v3425 = vsub.f32 %v739, %v3424
        %v3426 = vand.u32 %v3425, 4294901760
        %v3427 = vsub.f32 %v3425, %v3426
        %v3428 = vand.u32 %v3427, 4294901760
        %3429 = vmatpush1.msra.mxu0 %v3428
        %v3430 = vand.u32 %v728, 4294901760
        %v3431 = vsub.f32 %v728, %v3430
        %v3432 = vand.u32 %v3431, 4294901760
        %v3433 = vsub.f32 %v3431, %v3432
        %v3434 = vand.u32 %v3433, 4294901760
        %3435 = vmatprep.subr.mxu0 %v3434
        %v3436 = vand.u32 %v727, 4294901760
        %v3437 = vsub.f32 %v727, %v3436
        %v3438 = vand.u32 %v3437, 4294901760
        %v3439 = vsub.f32 %v3437, %v3438
        %v3440 = vand.u32 %v3439, 4294901760
        %3441 = vmatpush1.msra.mxu0 %v3440
        %v3442 = vand.u32 %v716, 4294901760
        %v3443 = vsub.f32 %v716, %v3442
        %v3444 = vand.u32 %v3443, 4294901760
        %v3445 = vsub.f32 %v3443, %v3444
        %v3446 = vand.u32 %v3445, 4294901760
        %3447 = vmatprep.subr.mxu0 %v3446
        %v3448 = vand.u32 %v715, 4294901760
        %v3449 = vsub.f32 %v715, %v3448
        %v3450 = vand.u32 %v3449, 4294901760
        %v3451 = vsub.f32 %v3449, %v3450
        %v3452 = vand.u32 %v3451, 4294901760
        %3453 = vmatpush1.msra.mxu0 %v3452
        %v3454 = vand.u32 %v704, 4294901760
        %v3455 = vsub.f32 %v704, %v3454
        %v3456 = vand.u32 %v3455, 4294901760
        %v3457 = vsub.f32 %v3455, %v3456
        %v3458 = vand.u32 %v3457, 4294901760
        %3459 = vmatprep.subr.mxu0 %v3458
        %v3460 = vand.u32 %v703, 4294901760
        %v3461 = vsub.f32 %v703, %v3460
        %v3462 = vand.u32 %v3461, 4294901760
        %v3463 = vsub.f32 %v3461, %v3462
        %v3464 = vand.u32 %v3463, 4294901760
        %3465 = vmatpush1.msra.mxu0 %v3464
        %v3466 = vand.u32 %v692, 4294901760
        %v3467 = vsub.f32 %v692, %v3466
        %v3468 = vand.u32 %v3467, 4294901760
        %v3469 = vsub.f32 %v3467, %v3468
        %v3470 = vand.u32 %v3469, 4294901760
        %3471 = vmatprep.subr.mxu0 %v3470
        %v3472 = vand.u32 %v691, 4294901760
        %v3473 = vsub.f32 %v691, %v3472
        %v3474 = vand.u32 %v3473, 4294901760
        %v3475 = vsub.f32 %v3473, %v3474
        %v3476 = vand.u32 %v3475, 4294901760
        %3477 = vmatpush1.msra.mxu0 %v3476
        %v3478 = vand.u32 %v680, 4294901760
        %v3479 = vsub.f32 %v680, %v3478
        %v3480 = vand.u32 %v3479, 4294901760
        %v3481 = vsub.f32 %v3479, %v3480
        %v3482 = vand.u32 %v3481, 4294901760
        %3483 = vmatprep.subr.mxu0 %v3482
        %v3484 = vand.u32 %v679, 4294901760
        %v3485 = vsub.f32 %v679, %v3484
        %v3486 = vand.u32 %v3485, 4294901760
        %v3487 = vsub.f32 %v3485, %v3486
        %v3488 = vand.u32 %v3487, 4294901760
        %3489 = vmatpush1.msra.mxu0 %v3488
        %v3490 = vand.u32 %v668, 4294901760
        %v3491 = vsub.f32 %v668, %v3490
        %v3492 = vand.u32 %v3491, 4294901760
        %v3493 = vsub.f32 %v3491, %v3492
        %v3494 = vand.u32 %v3493, 4294901760
        %3495 = vmatprep.subr.mxu0 %v3494
        %v3496 = vand.u32 %v667, 4294901760
        %v3497 = vsub.f32 %v667, %v3496
        %v3498 = vand.u32 %v3497, 4294901760
        %v3499 = vsub.f32 %v3497, %v3498
        %v3500 = vand.u32 %v3499, 4294901760
        %3501 = vmatpush1.msra.mxu0 %v3500
        %v3502 = vand.u32 %v656, 4294901760
        %v3503 = vsub.f32 %v656, %v3502
        %v3504 = vand.u32 %v3503, 4294901760
        %v3505 = vsub.f32 %v3503, %v3504
        %v3506 = vand.u32 %v3505, 4294901760
        %3507 = vmatprep.subr.mxu0 %v3506
        %v3508 = vand.u32 %v655, 4294901760
        %v3509 = vsub.f32 %v655, %v3508
        %v3510 = vand.u32 %v3509, 4294901760
        %v3511 = vsub.f32 %v3509, %v3510
        %v3512 = vand.u32 %v3511, 4294901760
        %3513 = vmatpush1.msra.mxu0 %v3512
        %v3514 = vand.u32 %v644, 4294901760
        %v3515 = vsub.f32 %v644, %v3514
        %v3516 = vand.u32 %v3515, 4294901760
        %v3517 = vsub.f32 %v3515, %v3516
        %v3518 = vand.u32 %v3517, 4294901760
        %3519 = vmatprep.subr.mxu0 %v3518
        %v3520 = vand.u32 %v643, 4294901760
        %v3521 = vsub.f32 %v643, %v3520
        %v3522 = vand.u32 %v3521, 4294901760
        %v3523 = vsub.f32 %v3521, %v3522
        %v3524 = vand.u32 %v3523, 4294901760
        %3525 = vmatpush1.msra.mxu0 %v3524
        %v3526 = vand.u32 %v632, 4294901760
        %v3527 = vsub.f32 %v632, %v3526
        %v3528 = vand.u32 %v3527, 4294901760
        %v3529 = vsub.f32 %v3527, %v3528
        %v3530 = vand.u32 %v3529, 4294901760
        %3531 = vmatprep.subr.mxu0 %v3530
        %v3532 = vand.u32 %v631, 4294901760
        %v3533 = vsub.f32 %v631, %v3532
        %v3534 = vand.u32 %v3533, 4294901760
        %v3535 = vsub.f32 %v3533, %v3534
        %v3536 = vand.u32 %v3535, 4294901760
        %3537 = vmatpush1.msra.mxu0 %v3536
        %v3538 = vand.u32 %v620, 4294901760
        %v3539 = vsub.f32 %v620, %v3538
        %v3540 = vand.u32 %v3539, 4294901760
        %v3541 = vsub.f32 %v3539, %v3540
        %v3542 = vand.u32 %v3541, 4294901760
        %3543 = vmatprep.subr.mxu0 %v3542
        %v3544 = vand.u32 %v619, 4294901760
        %v3545 = vsub.f32 %v619, %v3544
        %v3546 = vand.u32 %v3545, 4294901760
        %v3547 = vsub.f32 %v3545, %v3546
        %v3548 = vand.u32 %v3547, 4294901760
        %3549 = vmatpush1.msra.mxu0 %v3548
        %v3550 = vand.u32 %v608, 4294901760
        %v3551 = vsub.f32 %v608, %v3550
        %v3552 = vand.u32 %v3551, 4294901760
        %v3553 = vsub.f32 %v3551, %v3552
        %v3554 = vand.u32 %v3553, 4294901760
        %3555 = vmatprep.subr.mxu0 %v3554
        %v3556 = vand.u32 %v607, 4294901760
        %v3557 = vsub.f32 %v607, %v3556
        %v3558 = vand.u32 %v3557, 4294901760
        %v3559 = vsub.f32 %v3557, %v3558
        %v3560 = vand.u32 %v3559, 4294901760
        %3561 = vmatpush1.msra.mxu0 %v3560
        %v3562 = vand.u32 %v596, 4294901760
        %v3563 = vsub.f32 %v596, %v3562
        %v3564 = vand.u32 %v3563, 4294901760
        %v3565 = vsub.f32 %v3563, %v3564
        %v3566 = vand.u32 %v3565, 4294901760
        %3567 = vmatprep.subr.mxu0 %v3566
        %v3568 = vand.u32 %v595, 4294901760
        %v3569 = vsub.f32 %v595, %v3568
        %v3570 = vand.u32 %v3569, 4294901760
        %v3571 = vsub.f32 %v3569, %v3570
        %v3572 = vand.u32 %v3571, 4294901760
        %3573 = vmatpush1.msra.mxu0 %v3572
        %v3574 = vand.u32 %v584, 4294901760
        %v3575 = vsub.f32 %v584, %v3574
        %v3576 = vand.u32 %v3575, 4294901760
        %v3577 = vsub.f32 %v3575, %v3576
        %v3578 = vand.u32 %v3577, 4294901760
        %3579 = vmatprep.subr.mxu0 %v3578
        %v3580 = vand.u32 %v583, 4294901760
        %v3581 = vsub.f32 %v583, %v3580
        %v3582 = vand.u32 %v3581, 4294901760
        %v3583 = vsub.f32 %v3581, %v3582
        %v3584 = vand.u32 %v3583, 4294901760
        %3585 = vmatpush1.msra.mxu0 %v3584
        %v3586 = vand.u32 %v572, 4294901760
        %v3587 = vsub.f32 %v572, %v3586
        %v3588 = vand.u32 %v3587, 4294901760
        %v3589 = vsub.f32 %v3587, %v3588
        %v3590 = vand.u32 %v3589, 4294901760
        %3591 = vmatprep.subr.mxu0 %v3590
        %v3592 = vand.u32 %v571, 4294901760
        %v3593 = vsub.f32 %v571, %v3592
        %v3594 = vand.u32 %v3593, 4294901760
        %v3595 = vsub.f32 %v3593, %v3594
        %v3596 = vand.u32 %v3595, 4294901760
        %3597 = vmatpush1.msra.mxu0 %v3596
        %v3598 = vand.u32 %v560, 4294901760
        %v3599 = vsub.f32 %v560, %v3598
        %v3600 = vand.u32 %v3599, 4294901760
        %v3601 = vsub.f32 %v3599, %v3600
        %v3602 = vand.u32 %v3601, 4294901760
        %3603 = vmatprep.subr.mxu0 %v3602
        %v3604 = vand.u32 %v559, 4294901760
        %v3605 = vsub.f32 %v559, %v3604
        %v3606 = vand.u32 %v3605, 4294901760
        %v3607 = vsub.f32 %v3605, %v3606
        %v3608 = vand.u32 %v3607, 4294901760
        %3609 = vmatpush1.msra.mxu0 %v3608
        %3610 = vmatprep.subr.mxu0 0.0
        %3611 = vmatpush2.msra.mxu0 0.0
        %3612 = vmatprep.subr.mxu0 0.0
        %3613 = vmatpush2.msra.mxu0 0.0
        %3614 = vmatprep.subr.mxu0 0.0
        %3615 = vmatpush2.msra.mxu0 0.0
        %3616 = vmatprep.subr.mxu0 0.0
        %3617 = vmatpush2.msra.mxu0 0.0
        %3618 = vmatprep.subr.mxu0 0.0
        %3619 = vmatpush2.msra.mxu0 0.0
        %3620 = vmatprep.subr.mxu0 0.0
        %3621 = vmatpush2.msra.mxu0 0.0
        %3622 = vmatprep.subr.mxu0 0.0
        %3623 = vmatpush2.msra.mxu0 0.0
        %3624 = vmatprep.subr.mxu0 0.0
        %3625 = vmatpush2.msra.mxu0 0.0
        %3626 = vmatprep.subr.mxu0 0.0
        %3627 = vmatpush2.msra.mxu0 0.0
        %3628 = vmatprep.subr.mxu0 0.0
        %3629 = vmatpush2.msra.mxu0 0.0
        %3630 = vmatprep.subr.mxu0 0.0
        %3631 = vmatpush2.msra.mxu0 0.0
        %3632 = vmatprep.subr.mxu0 0.0
        %3633 = vmatpush2.msra.mxu0 0.0
        %3634 = vmatprep.subr.mxu0 0.0
        %3635 = vmatpush2.msra.mxu0 0.0
        %3636 = vmatprep.subr.mxu0 0.0
        %3637 = vmatpush2.msra.mxu0 0.0
        %3638 = vmatprep.subr.mxu0 0.0
        %3639 = vmatpush2.msra.mxu0 0.0
        %3640 = vmatprep.subr.mxu0 0.0
        %3641 = vmatpush2.msra.mxu0 0.0
        %3642 = vmatprep.mubr.f32.mxu0 0.0
        %v3643 = vand.u32 %v552, 4294901760
        %3644 = vmatmul.mubr.f32.gmra.mxu0 %v3643
        %v3645 = vpop.f32.mrf.mxu0
        %v3646 = vadd.f32 %v3414, %v3645
        %v3647 = vpop.f32.mrf.mxu0
        %v3648 = vadd.f32 %v3416, %v3647
        %3649 = vdwg.mxu0
        %v3650 = vand.u32 %v740, 4294901760
        %v3651 = vsub.f32 %v740, %v3650
        %3652 = vmatprep.subr.mxu0 %v3651
        %v3653 = vand.u32 %v739, 4294901760
        %v3654 = vsub.f32 %v739, %v3653
        %3655 = vmatpush1.msra.mxu0 %v3654
        %v3656 = vand.u32 %v728, 4294901760
        %v3657 = vsub.f32 %v728, %v3656
        %3658 = vmatprep.subr.mxu0 %v3657
        %v3659 = vand.u32 %v727, 4294901760
        %v3660 = vsub.f32 %v727, %v3659
        %3661 = vmatpush1.msra.mxu0 %v3660
        %v3662 = vand.u32 %v716, 4294901760
        %v3663 = vsub.f32 %v716, %v3662
        %3664 = vmatprep.subr.mxu0 %v3663
        %v3665 = vand.u32 %v715, 4294901760
        %v3666 = vsub.f32 %v715, %v3665
        %3667 = vmatpush1.msra.mxu0 %v3666
        %v3668 = vand.u32 %v704, 4294901760
        %v3669 = vsub.f32 %v704, %v3668
        %3670 = vmatprep.subr.mxu0 %v3669
        %v3671 = vand.u32 %v703, 4294901760
        %v3672 = vsub.f32 %v703, %v3671
        %3673 = vmatpush1.msra.mxu0 %v3672
        %v3674 = vand.u32 %v692, 4294901760
        %v3675 = vsub.f32 %v692, %v3674
        %3676 = vmatprep.subr.mxu0 %v3675
        %v3677 = vand.u32 %v691, 4294901760
        %v3678 = vsub.f32 %v691, %v3677
        %3679 = vmatpush1.msra.mxu0 %v3678
        %v3680 = vand.u32 %v680, 4294901760
        %v3681 = vsub.f32 %v680, %v3680
        %3682 = vmatprep.subr.mxu0 %v3681
        %v3683 = vand.u32 %v679, 4294901760
        %v3684 = vsub.f32 %v679, %v3683
        %3685 = vmatpush1.msra.mxu0 %v3684
        %v3686 = vand.u32 %v668, 4294901760
        %v3687 = vsub.f32 %v668, %v3686
        %3688 = vmatprep.subr.mxu0 %v3687
        %v3689 = vand.u32 %v667, 4294901760
        %v3690 = vsub.f32 %v667, %v3689
        %3691 = vmatpush1.msra.mxu0 %v3690
        %v3692 = vand.u32 %v656, 4294901760
        %v3693 = vsub.f32 %v656, %v3692
        %3694 = vmatprep.subr.mxu0 %v3693
        %v3695 = vand.u32 %v655, 4294901760
        %v3696 = vsub.f32 %v655, %v3695
        %3697 = vmatpush1.msra.mxu0 %v3696
        %v3698 = vand.u32 %v644, 4294901760
        %v3699 = vsub.f32 %v644, %v3698
        %3700 = vmatprep.subr.mxu0 %v3699
        %v3701 = vand.u32 %v643, 4294901760
        %v3702 = vsub.f32 %v643, %v3701
        %3703 = vmatpush1.msra.mxu0 %v3702
        %v3704 = vand.u32 %v632, 4294901760
        %v3705 = vsub.f32 %v632, %v3704
        %3706 = vmatprep.subr.mxu0 %v3705
        %v3707 = vand.u32 %v631, 4294901760
        %v3708 = vsub.f32 %v631, %v3707
        %3709 = vmatpush1.msra.mxu0 %v3708
        %v3710 = vand.u32 %v620, 4294901760
        %v3711 = vsub.f32 %v620, %v3710
        %3712 = vmatprep.subr.mxu0 %v3711
        %v3713 = vand.u32 %v619, 4294901760
        %v3714 = vsub.f32 %v619, %v3713
        %3715 = vmatpush1.msra.mxu0 %v3714
        %v3716 = vand.u32 %v608, 4294901760
        %v3717 = vsub.f32 %v608, %v3716
        %3718 = vmatprep.subr.mxu0 %v3717
        %v3719 = vand.u32 %v607, 4294901760
        %v3720 = vsub.f32 %v607, %v3719
        %3721 = vmatpush1.msra.mxu0 %v3720
        %v3722 = vand.u32 %v596, 4294901760
        %v3723 = vsub.f32 %v596, %v3722
        %3724 = vmatprep.subr.mxu0 %v3723
        %v3725 = vand.u32 %v595, 4294901760
        %v3726 = vsub.f32 %v595, %v3725
        %3727 = vmatpush1.msra.mxu0 %v3726
        %v3728 = vand.u32 %v584, 4294901760
        %v3729 = vsub.f32 %v584, %v3728
        %3730 = vmatprep.subr.mxu0 %v3729
        %v3731 = vand.u32 %v583, 4294901760
        %v3732 = vsub.f32 %v583, %v3731
        %3733 = vmatpush1.msra.mxu0 %v3732
        %v3734 = vand.u32 %v572, 4294901760
        %v3735 = vsub.f32 %v572, %v3734
        %3736 = vmatprep.subr.mxu0 %v3735
        %v3737 = vand.u32 %v571, 4294901760
        %v3738 = vsub.f32 %v571, %v3737
        %3739 = vmatpush1.msra.mxu0 %v3738
        %v3740 = vand.u32 %v560, 4294901760
        %v3741 = vsub.f32 %v560, %v3740
        %3742 = vmatprep.subr.mxu0 %v3741
        %v3743 = vand.u32 %v559, 4294901760
        %v3744 = vsub.f32 %v559, %v3743
        %3745 = vmatpush1.msra.mxu0 %v3744
        %3746 = vmatprep.subr.mxu0 0.0
        %3747 = vmatpush2.msra.mxu0 0.0
        %3748 = vmatprep.subr.mxu0 0.0
        %3749 = vmatpush2.msra.mxu0 0.0
        %3750 = vmatprep.subr.mxu0 0.0
        %3751 = vmatpush2.msra.mxu0 0.0
        %3752 = vmatprep.subr.mxu0 0.0
        %3753 = vmatpush2.msra.mxu0 0.0
        %3754 = vmatprep.subr.mxu0 0.0
        %3755 = vmatpush2.msra.mxu0 0.0
        %3756 = vmatprep.subr.mxu0 0.0
        %3757 = vmatpush2.msra.mxu0 0.0
        %3758 = vmatprep.subr.mxu0 0.0
        %3759 = vmatpush2.msra.mxu0 0.0
        %3760 = vmatprep.subr.mxu0 0.0
        %3761 = vmatpush2.msra.mxu0 0.0
        %3762 = vmatprep.subr.mxu0 0.0
        %3763 = vmatpush2.msra.mxu0 0.0
        %3764 = vmatprep.subr.mxu0 0.0
        %3765 = vmatpush2.msra.mxu0 0.0
        %3766 = vmatprep.subr.mxu0 0.0
        %3767 = vmatpush2.msra.mxu0 0.0
        %3768 = vmatprep.subr.mxu0 0.0
        %3769 = vmatpush2.msra.mxu0 0.0
        %3770 = vmatprep.subr.mxu0 0.0
        %3771 = vmatpush2.msra.mxu0 0.0
        %3772 = vmatprep.subr.mxu0 0.0
        %3773 = vmatpush2.msra.mxu0 0.0
        %3774 = vmatprep.subr.mxu0 0.0
        %3775 = vmatpush2.msra.mxu0 0.0
        %3776 = vmatprep.subr.mxu0 0.0
        %3777 = vmatpush2.msra.mxu0 0.0
        %3778 = vmatprep.mubr.f32.mxu0 0.0
        %v3779 = vand.u32 %v552, 4294901760
        %v3780 = vsub.f32 %v552, %v3779
        %3781 = vmatmul.mubr.f32.gmra.mxu0 %v3780
        %v3782 = vpop.f32.mrf.mxu0
        %v3783 = vadd.f32 %v3646, %v3782
        %v3784 = vpop.f32.mrf.mxu0
        %v3785 = vadd.f32 %v3648, %v3784
        %3786 = vdwg.mxu0
        %v3787 = vand.u32 %v740, 4294901760
        %3788 = vmatprep.subr.mxu0 %v3787
        %v3789 = vand.u32 %v739, 4294901760
        %3790 = vmatpush1.msra.mxu0 %v3789
        %v3791 = vand.u32 %v728, 4294901760
        %3792 = vmatprep.subr.mxu0 %v3791
        %v3793 = vand.u32 %v727, 4294901760
        %3794 = vmatpush1.msra.mxu0 %v3793
        %v3795 = vand.u32 %v716, 4294901760
        %3796 = vmatprep.subr.mxu0 %v3795
        %v3797 = vand.u32 %v715, 4294901760
        %3798 = vmatpush1.msra.mxu0 %v3797
        %v3799 = vand.u32 %v704, 4294901760
        %3800 = vmatprep.subr.mxu0 %v3799
        %v3801 = vand.u32 %v703, 4294901760
        %3802 = vmatpush1.msra.mxu0 %v3801
        %v3803 = vand.u32 %v692, 4294901760
        %3804 = vmatprep.subr.mxu0 %v3803
        %v3805 = vand.u32 %v691, 4294901760
        %3806 = vmatpush1.msra.mxu0 %v3805
        %v3807 = vand.u32 %v680, 4294901760
        %3808 = vmatprep.subr.mxu0 %v3807
        %v3809 = vand.u32 %v679, 4294901760
        %3810 = vmatpush1.msra.mxu0 %v3809
        %v3811 = vand.u32 %v668, 4294901760
        %3812 = vmatprep.subr.mxu0 %v3811
        %v3813 = vand.u32 %v667, 4294901760
        %3814 = vmatpush1.msra.mxu0 %v3813
        %v3815 = vand.u32 %v656, 4294901760
        %3816 = vmatprep.subr.mxu0 %v3815
        %v3817 = vand.u32 %v655, 4294901760
        %3818 = vmatpush1.msra.mxu0 %v3817
        %v3819 = vand.u32 %v644, 4294901760
        %3820 = vmatprep.subr.mxu0 %v3819
        %v3821 = vand.u32 %v643, 4294901760
        %3822 = vmatpush1.msra.mxu0 %v3821
        %v3823 = vand.u32 %v632, 4294901760
        %3824 = vmatprep.subr.mxu0 %v3823
        %v3825 = vand.u32 %v631, 4294901760
        %3826 = vmatpush1.msra.mxu0 %v3825
        %v3827 = vand.u32 %v620, 4294901760
        %3828 = vmatprep.subr.mxu0 %v3827
        %v3829 = vand.u32 %v619, 4294901760
        %3830 = vmatpush1.msra.mxu0 %v3829
        %v3831 = vand.u32 %v608, 4294901760
        %3832 = vmatprep.subr.mxu0 %v3831
        %v3833 = vand.u32 %v607, 4294901760
        %3834 = vmatpush1.msra.mxu0 %v3833
        %v3835 = vand.u32 %v596, 4294901760
        %3836 = vmatprep.subr.mxu0 %v3835
        %v3837 = vand.u32 %v595, 4294901760
        %3838 = vmatpush1.msra.mxu0 %v3837
        %v3839 = vand.u32 %v584, 4294901760
        %3840 = vmatprep.subr.mxu0 %v3839
        %v3841 = vand.u32 %v583, 4294901760
        %3842 = vmatpush1.msra.mxu0 %v3841
        %v3843 = vand.u32 %v572, 4294901760
        %3844 = vmatprep.subr.mxu0 %v3843
        %v3845 = vand.u32 %v571, 4294901760
        %3846 = vmatpush1.msra.mxu0 %v3845
        %v3847 = vand.u32 %v560, 4294901760
        %3848 = vmatprep.subr.mxu0 %v3847
        %v3849 = vand.u32 %v559, 4294901760
        %3850 = vmatpush1.msra.mxu0 %v3849
        %3851 = vmatprep.subr.mxu0 0.0
        %3852 = vmatpush2.msra.mxu0 0.0
        %3853 = vmatprep.subr.mxu0 0.0
        %3854 = vmatpush2.msra.mxu0 0.0
        %3855 = vmatprep.subr.mxu0 0.0
        %3856 = vmatpush2.msra.mxu0 0.0
        %3857 = vmatprep.subr.mxu0 0.0
        %3858 = vmatpush2.msra.mxu0 0.0
        %3859 = vmatprep.subr.mxu0 0.0
        %3860 = vmatpush2.msra.mxu0 0.0
        %3861 = vmatprep.subr.mxu0 0.0
        %3862 = vmatpush2.msra.mxu0 0.0
        %3863 = vmatprep.subr.mxu0 0.0
        %3864 = vmatpush2.msra.mxu0 0.0
        %3865 = vmatprep.subr.mxu0 0.0
        %3866 = vmatpush2.msra.mxu0 0.0
        %3867 = vmatprep.subr.mxu0 0.0
        %3868 = vmatpush2.msra.mxu0 0.0
        %3869 = vmatprep.subr.mxu0 0.0
        %3870 = vmatpush2.msra.mxu0 0.0
        %3871 = vmatprep.subr.mxu0 0.0
        %3872 = vmatpush2.msra.mxu0 0.0
        %3873 = vmatprep.subr.mxu0 0.0
        %3874 = vmatpush2.msra.mxu0 0.0
        %3875 = vmatprep.subr.mxu0 0.0
        %3876 = vmatpush2.msra.mxu0 0.0
        %3877 = vmatprep.subr.mxu0 0.0
        %3878 = vmatpush2.msra.mxu0 0.0
        %3879 = vmatprep.subr.mxu0 0.0
        %3880 = vmatpush2.msra.mxu0 0.0
        %3881 = vmatprep.subr.mxu0 0.0
        %3882 = vmatpush2.msra.mxu0 0.0
        %3883 = vmatprep.mubr.f32.mxu0 0.0
        %v3884 = vand.u32 %v552, 4294901760
        %v3885 = vsub.f32 %v552, %v3884
        %v3886 = vand.u32 %v3885, 4294901760
        %3887 = vmatmul.mubr.f32.gmra.mxu0 %v3886
        %v3888 = vpop.f32.mrf.mxu0
        %v3889 = vadd.f32 %v3783, %v3888
        %v3890 = vpop.f32.mrf.mxu0
        %v3891 = vadd.f32 %v3785, %v3890
        %3892 = vdwg.mxu0
        %v3893 = vand.u32 %v740, 4294901760
        %v3894 = vsub.f32 %v740, %v3893
        %v3895 = vand.u32 %v3894, 4294901760
        %3896 = vmatprep.subr.mxu0 %v3895
        %v3897 = vand.u32 %v739, 4294901760
        %v3898 = vsub.f32 %v739, %v3897
        %v3899 = vand.u32 %v3898, 4294901760
        %3900 = vmatpush1.msra.mxu0 %v3899
        %v3901 = vand.u32 %v728, 4294901760
        %v3902 = vsub.f32 %v728, %v3901
        %v3903 = vand.u32 %v3902, 4294901760
        %3904 = vmatprep.subr.mxu0 %v3903
        %v3905 = vand.u32 %v727, 4294901760
        %v3906 = vsub.f32 %v727, %v3905
        %v3907 = vand.u32 %v3906, 4294901760
        %3908 = vmatpush1.msra.mxu0 %v3907
        %v3909 = vand.u32 %v716, 4294901760
        %v3910 = vsub.f32 %v716, %v3909
        %v3911 = vand.u32 %v3910, 4294901760
        %3912 = vmatprep.subr.mxu0 %v3911
        %v3913 = vand.u32 %v715, 4294901760
        %v3914 = vsub.f32 %v715, %v3913
        %v3915 = vand.u32 %v3914, 4294901760
        %3916 = vmatpush1.msra.mxu0 %v3915
        %v3917 = vand.u32 %v704, 4294901760
        %v3918 = vsub.f32 %v704, %v3917
        %v3919 = vand.u32 %v3918, 4294901760
        %3920 = vmatprep.subr.mxu0 %v3919
        %v3921 = vand.u32 %v703, 4294901760
        %v3922 = vsub.f32 %v703, %v3921
        %v3923 = vand.u32 %v3922, 4294901760
        %3924 = vmatpush1.msra.mxu0 %v3923
        %v3925 = vand.u32 %v692, 4294901760
        %v3926 = vsub.f32 %v692, %v3925
        %v3927 = vand.u32 %v3926, 4294901760
        %3928 = vmatprep.subr.mxu0 %v3927
        %v3929 = vand.u32 %v691, 4294901760
        %v3930 = vsub.f32 %v691, %v3929
        %v3931 = vand.u32 %v3930, 4294901760
        %3932 = vmatpush1.msra.mxu0 %v3931
        %v3933 = vand.u32 %v680, 4294901760
        %v3934 = vsub.f32 %v680, %v3933
        %v3935 = vand.u32 %v3934, 4294901760
        %3936 = vmatprep.subr.mxu0 %v3935
        %v3937 = vand.u32 %v679, 4294901760
        %v3938 = vsub.f32 %v679, %v3937
        %v3939 = vand.u32 %v3938, 4294901760
        %3940 = vmatpush1.msra.mxu0 %v3939
        %v3941 = vand.u32 %v668, 4294901760
        %v3942 = vsub.f32 %v668, %v3941
        %v3943 = vand.u32 %v3942, 4294901760
        %3944 = vmatprep.subr.mxu0 %v3943
        %v3945 = vand.u32 %v667, 4294901760
        %v3946 = vsub.f32 %v667, %v3945
        %v3947 = vand.u32 %v3946, 4294901760
        %3948 = vmatpush1.msra.mxu0 %v3947
        %v3949 = vand.u32 %v656, 4294901760
        %v3950 = vsub.f32 %v656, %v3949
        %v3951 = vand.u32 %v3950, 4294901760
        %3952 = vmatprep.subr.mxu0 %v3951
        %v3953 = vand.u32 %v655, 4294901760
        %v3954 = vsub.f32 %v655, %v3953
        %v3955 = vand.u32 %v3954, 4294901760
        %3956 = vmatpush1.msra.mxu0 %v3955
        %v3957 = vand.u32 %v644, 4294901760
        %v3958 = vsub.f32 %v644, %v3957
        %v3959 = vand.u32 %v3958, 4294901760
        %3960 = vmatprep.subr.mxu0 %v3959
        %v3961 = vand.u32 %v643, 4294901760
        %v3962 = vsub.f32 %v643, %v3961
        %v3963 = vand.u32 %v3962, 4294901760
        %3964 = vmatpush1.msra.mxu0 %v3963
        %v3965 = vand.u32 %v632, 4294901760
        %v3966 = vsub.f32 %v632, %v3965
        %v3967 = vand.u32 %v3966, 4294901760
        %3968 = vmatprep.subr.mxu0 %v3967
        %v3969 = vand.u32 %v631, 4294901760
        %v3970 = vsub.f32 %v631, %v3969
        %v3971 = vand.u32 %v3970, 4294901760
        %3972 = vmatpush1.msra.mxu0 %v3971
        %v3973 = vand.u32 %v620, 4294901760
        %v3974 = vsub.f32 %v620, %v3973
        %v3975 = vand.u32 %v3974, 4294901760
        %3976 = vmatprep.subr.mxu0 %v3975
        %v3977 = vand.u32 %v619, 4294901760
        %v3978 = vsub.f32 %v619, %v3977
        %v3979 = vand.u32 %v3978, 4294901760
        %3980 = vmatpush1.msra.mxu0 %v3979
        %v3981 = vand.u32 %v608, 4294901760
        %v3982 = vsub.f32 %v608, %v3981
        %v3983 = vand.u32 %v3982, 4294901760
        %3984 = vmatprep.subr.mxu0 %v3983
        %v3985 = vand.u32 %v607, 4294901760
        %v3986 = vsub.f32 %v607, %v3985
        %v3987 = vand.u32 %v3986, 4294901760
        %3988 = vmatpush1.msra.mxu0 %v3987
        %v3989 = vand.u32 %v596, 4294901760
        %v3990 = vsub.f32 %v596, %v3989
        %v3991 = vand.u32 %v3990, 4294901760
        %3992 = vmatprep.subr.mxu0 %v3991
        %v3993 = vand.u32 %v595, 4294901760
        %v3994 = vsub.f32 %v595, %v3993
        %v3995 = vand.u32 %v3994, 4294901760
        %3996 = vmatpush1.msra.mxu0 %v3995
        %v3997 = vand.u32 %v584, 4294901760
        %v3998 = vsub.f32 %v584, %v3997
        %v3999 = vand.u32 %v3998, 4294901760
        %4000 = vmatprep.subr.mxu0 %v3999
        %v4001 = vand.u32 %v583, 4294901760
        %v4002 = vsub.f32 %v583, %v4001
        %v4003 = vand.u32 %v4002, 4294901760
        %4004 = vmatpush1.msra.mxu0 %v4003
        %v4005 = vand.u32 %v572, 4294901760
        %v4006 = vsub.f32 %v572, %v4005
        %v4007 = vand.u32 %v4006, 4294901760
        %4008 = vmatprep.subr.mxu0 %v4007
        %v4009 = vand.u32 %v571, 4294901760
        %v4010 = vsub.f32 %v571, %v4009
        %v4011 = vand.u32 %v4010, 4294901760
        %4012 = vmatpush1.msra.mxu0 %v4011
        %v4013 = vand.u32 %v560, 4294901760
        %v4014 = vsub.f32 %v560, %v4013
        %v4015 = vand.u32 %v4014, 4294901760
        %4016 = vmatprep.subr.mxu0 %v4015
        %v4017 = vand.u32 %v559, 4294901760
        %v4018 = vsub.f32 %v559, %v4017
        %v4019 = vand.u32 %v4018, 4294901760
        %4020 = vmatpush1.msra.mxu0 %v4019
        %4021 = vmatprep.subr.mxu0 0.0
        %4022 = vmatpush2.msra.mxu0 0.0
        %4023 = vmatprep.subr.mxu0 0.0
        %4024 = vmatpush2.msra.mxu0 0.0
        %4025 = vmatprep.subr.mxu0 0.0
        %4026 = vmatpush2.msra.mxu0 0.0
        %4027 = vmatprep.subr.mxu0 0.0
        %4028 = vmatpush2.msra.mxu0 0.0
        %4029 = vmatprep.subr.mxu0 0.0
        %4030 = vmatpush2.msra.mxu0 0.0
        %4031 = vmatprep.subr.mxu0 0.0
        %4032 = vmatpush2.msra.mxu0 0.0
        %4033 = vmatprep.subr.mxu0 0.0
        %4034 = vmatpush2.msra.mxu0 0.0
        %4035 = vmatprep.subr.mxu0 0.0
        %4036 = vmatpush2.msra.mxu0 0.0
        %4037 = vmatprep.subr.mxu0 0.0
        %4038 = vmatpush2.msra.mxu0 0.0
        %4039 = vmatprep.subr.mxu0 0.0
        %4040 = vmatpush2.msra.mxu0 0.0
        %4041 = vmatprep.subr.mxu0 0.0
        %4042 = vmatpush2.msra.mxu0 0.0
        %4043 = vmatprep.subr.mxu0 0.0
        %4044 = vmatpush2.msra.mxu0 0.0
        %4045 = vmatprep.subr.mxu0 0.0
        %4046 = vmatpush2.msra.mxu0 0.0
        %4047 = vmatprep.subr.mxu0 0.0
        %4048 = vmatpush2.msra.mxu0 0.0
        %4049 = vmatprep.subr.mxu0 0.0
        %4050 = vmatpush2.msra.mxu0 0.0
        %4051 = vmatprep.subr.mxu0 0.0
        %4052 = vmatpush2.msra.mxu0 0.0
        %4053 = vmatprep.mubr.f32.mxu0 0.0
        %v4054 = vand.u32 %v552, 4294901760
        %4055 = vmatmul.mubr.f32.gmra.mxu0 %v4054
        %v4056 = vpop.f32.mrf.mxu0
        %v4057 = vadd.f32 %v3889, %v4056
        %v4058 = vpop.f32.mrf.mxu0
        %v4059 = vadd.f32 %v3891, %v4058
        %4060 = vdwg.mxu0
        %v4061 = vand.u32 %v740, 4294901760
        %4062 = vmatprep.subr.mxu0 %v4061
        %v4063 = vand.u32 %v739, 4294901760
        %4064 = vmatpush1.msra.mxu0 %v4063
        %v4065 = vand.u32 %v728, 4294901760
        %4066 = vmatprep.subr.mxu0 %v4065
        %v4067 = vand.u32 %v727, 4294901760
        %4068 = vmatpush1.msra.mxu0 %v4067
        %v4069 = vand.u32 %v716, 4294901760
        %4070 = vmatprep.subr.mxu0 %v4069
        %v4071 = vand.u32 %v715, 4294901760
        %4072 = vmatpush1.msra.mxu0 %v4071
        %v4073 = vand.u32 %v704, 4294901760
        %4074 = vmatprep.subr.mxu0 %v4073
        %v4075 = vand.u32 %v703, 4294901760
        %4076 = vmatpush1.msra.mxu0 %v4075
        %v4077 = vand.u32 %v692, 4294901760
        %4078 = vmatprep.subr.mxu0 %v4077
        %v4079 = vand.u32 %v691, 4294901760
        %4080 = vmatpush1.msra.mxu0 %v4079
        %v4081 = vand.u32 %v680, 4294901760
        %4082 = vmatprep.subr.mxu0 %v4081
        %v4083 = vand.u32 %v679, 4294901760
        %4084 = vmatpush1.msra.mxu0 %v4083
        %v4085 = vand.u32 %v668, 4294901760
        %4086 = vmatprep.subr.mxu0 %v4085
        %v4087 = vand.u32 %v667, 4294901760
        %4088 = vmatpush1.msra.mxu0 %v4087
        %v4089 = vand.u32 %v656, 4294901760
        %4090 = vmatprep.subr.mxu0 %v4089
        %v4091 = vand.u32 %v655, 4294901760
        %4092 = vmatpush1.msra.mxu0 %v4091
        %v4093 = vand.u32 %v644, 4294901760
        %4094 = vmatprep.subr.mxu0 %v4093
        %v4095 = vand.u32 %v643, 4294901760
        %4096 = vmatpush1.msra.mxu0 %v4095
        %v4097 = vand.u32 %v632, 4294901760
        %4098 = vmatprep.subr.mxu0 %v4097
        %v4099 = vand.u32 %v631, 4294901760
        %4100 = vmatpush1.msra.mxu0 %v4099
        %v4101 = vand.u32 %v620, 4294901760
        %4102 = vmatprep.subr.mxu0 %v4101
        %v4103 = vand.u32 %v619, 4294901760
        %4104 = vmatpush1.msra.mxu0 %v4103
        %v4105 = vand.u32 %v608, 4294901760
        %4106 = vmatprep.subr.mxu0 %v4105
        %v4107 = vand.u32 %v607, 4294901760
        %4108 = vmatpush1.msra.mxu0 %v4107
        %v4109 = vand.u32 %v596, 4294901760
        %4110 = vmatprep.subr.mxu0 %v4109
        %v4111 = vand.u32 %v595, 4294901760
        %4112 = vmatpush1.msra.mxu0 %v4111
        %v4113 = vand.u32 %v584, 4294901760
        %4114 = vmatprep.subr.mxu0 %v4113
        %v4115 = vand.u32 %v583, 4294901760
        %4116 = vmatpush1.msra.mxu0 %v4115
        %v4117 = vand.u32 %v572, 4294901760
        %4118 = vmatprep.subr.mxu0 %v4117
        %v4119 = vand.u32 %v571, 4294901760
        %4120 = vmatpush1.msra.mxu0 %v4119
        %v4121 = vand.u32 %v560, 4294901760
        %4122 = vmatprep.subr.mxu0 %v4121
        %v4123 = vand.u32 %v559, 4294901760
        %4124 = vmatpush1.msra.mxu0 %v4123
        %4125 = vmatprep.subr.mxu0 0.0
        %4126 = vmatpush2.msra.mxu0 0.0
        %4127 = vmatprep.subr.mxu0 0.0
        %4128 = vmatpush2.msra.mxu0 0.0
        %4129 = vmatprep.subr.mxu0 0.0
        %4130 = vmatpush2.msra.mxu0 0.0
        %4131 = vmatprep.subr.mxu0 0.0
        %4132 = vmatpush2.msra.mxu0 0.0
        %4133 = vmatprep.subr.mxu0 0.0
        %4134 = vmatpush2.msra.mxu0 0.0
        %4135 = vmatprep.subr.mxu0 0.0
        %4136 = vmatpush2.msra.mxu0 0.0
        %4137 = vmatprep.subr.mxu0 0.0
        %4138 = vmatpush2.msra.mxu0 0.0
        %4139 = vmatprep.subr.mxu0 0.0
        %4140 = vmatpush2.msra.mxu0 0.0
        %4141 = vmatprep.subr.mxu0 0.0
        %4142 = vmatpush2.msra.mxu0 0.0
        %4143 = vmatprep.subr.mxu0 0.0
        %4144 = vmatpush2.msra.mxu0 0.0
        %4145 = vmatprep.subr.mxu0 0.0
        %4146 = vmatpush2.msra.mxu0 0.0
        %4147 = vmatprep.subr.mxu0 0.0
        %4148 = vmatpush2.msra.mxu0 0.0
        %4149 = vmatprep.subr.mxu0 0.0
        %4150 = vmatpush2.msra.mxu0 0.0
        %4151 = vmatprep.subr.mxu0 0.0
        %4152 = vmatpush2.msra.mxu0 0.0
        %4153 = vmatprep.subr.mxu0 0.0
        %4154 = vmatpush2.msra.mxu0 0.0
        %4155 = vmatprep.subr.mxu0 0.0
        %4156 = vmatpush2.msra.mxu0 0.0
        %4157 = vmatprep.mubr.f32.mxu0 0.0
        %v4158 = vand.u32 %v552, 4294901760
        %4159 = vmatmul.mubr.f32.gmra.mxu0 %v4158
        %v4160 = vpop.f32.mrf.mxu0
        %v4161 = vadd.f32 %v4057, %v4160
        %v4162 = vpop.f32.mrf.mxu0
        %v4163 = vadd.f32 %v4059, %v4162
        %4164 = vdwg.mxu0
        %v4165 = vand.u32 %v742, 4294901760
        %4166 = vmatprep.subr.mxu0 %v4165
        %v4167 = vand.u32 %v741, 4294901760
        %4168 = vmatpush1.msra.mxu0 %v4167
        %v4169 = vand.u32 %v730, 4294901760
        %4170 = vmatprep.subr.mxu0 %v4169
        %v4171 = vand.u32 %v729, 4294901760
        %4172 = vmatpush1.msra.mxu0 %v4171
        %v4173 = vand.u32 %v718, 4294901760
        %4174 = vmatprep.subr.mxu0 %v4173
        %v4175 = vand.u32 %v717, 4294901760
        %4176 = vmatpush1.msra.mxu0 %v4175
        %v4177 = vand.u32 %v706, 4294901760
        %4178 = vmatprep.subr.mxu0 %v4177
        %v4179 = vand.u32 %v705, 4294901760
        %4180 = vmatpush1.msra.mxu0 %v4179
        %v4181 = vand.u32 %v694, 4294901760
        %4182 = vmatprep.subr.mxu0 %v4181
        %v4183 = vand.u32 %v693, 4294901760
        %4184 = vmatpush1.msra.mxu0 %v4183
        %v4185 = vand.u32 %v682, 4294901760
        %4186 = vmatprep.subr.mxu0 %v4185
        %v4187 = vand.u32 %v681, 4294901760
        %4188 = vmatpush1.msra.mxu0 %v4187
        %v4189 = vand.u32 %v670, 4294901760
        %4190 = vmatprep.subr.mxu0 %v4189
        %v4191 = vand.u32 %v669, 4294901760
        %4192 = vmatpush1.msra.mxu0 %v4191
        %v4193 = vand.u32 %v658, 4294901760
        %4194 = vmatprep.subr.mxu0 %v4193
        %v4195 = vand.u32 %v657, 4294901760
        %4196 = vmatpush1.msra.mxu0 %v4195
        %v4197 = vand.u32 %v646, 4294901760
        %4198 = vmatprep.subr.mxu0 %v4197
        %v4199 = vand.u32 %v645, 4294901760
        %4200 = vmatpush1.msra.mxu0 %v4199
        %v4201 = vand.u32 %v634, 4294901760
        %4202 = vmatprep.subr.mxu0 %v4201
        %v4203 = vand.u32 %v633, 4294901760
        %4204 = vmatpush1.msra.mxu0 %v4203
        %v4205 = vand.u32 %v622, 4294901760
        %4206 = vmatprep.subr.mxu0 %v4205
        %v4207 = vand.u32 %v621, 4294901760
        %4208 = vmatpush1.msra.mxu0 %v4207
        %v4209 = vand.u32 %v610, 4294901760
        %4210 = vmatprep.subr.mxu0 %v4209
        %v4211 = vand.u32 %v609, 4294901760
        %4212 = vmatpush1.msra.mxu0 %v4211
        %v4213 = vand.u32 %v598, 4294901760
        %4214 = vmatprep.subr.mxu0 %v4213
        %v4215 = vand.u32 %v597, 4294901760
        %4216 = vmatpush1.msra.mxu0 %v4215
        %v4217 = vand.u32 %v586, 4294901760
        %4218 = vmatprep.subr.mxu0 %v4217
        %v4219 = vand.u32 %v585, 4294901760
        %4220 = vmatpush1.msra.mxu0 %v4219
        %v4221 = vand.u32 %v574, 4294901760
        %4222 = vmatprep.subr.mxu0 %v4221
        %v4223 = vand.u32 %v573, 4294901760
        %4224 = vmatpush1.msra.mxu0 %v4223
        %v4225 = vand.u32 %v562, 4294901760
        %4226 = vmatprep.subr.mxu0 %v4225
        %v4227 = vand.u32 %v561, 4294901760
        %4228 = vmatpush1.msra.mxu0 %v4227
        %4229 = vmatprep.subr.mxu0 0.0
        %4230 = vmatpush2.msra.mxu0 0.0
        %4231 = vmatprep.subr.mxu0 0.0
        %4232 = vmatpush2.msra.mxu0 0.0
        %4233 = vmatprep.subr.mxu0 0.0
        %4234 = vmatpush2.msra.mxu0 0.0
        %4235 = vmatprep.subr.mxu0 0.0
        %4236 = vmatpush2.msra.mxu0 0.0
        %4237 = vmatprep.subr.mxu0 0.0
        %4238 = vmatpush2.msra.mxu0 0.0
        %4239 = vmatprep.subr.mxu0 0.0
        %4240 = vmatpush2.msra.mxu0 0.0
        %4241 = vmatprep.subr.mxu0 0.0
        %4242 = vmatpush2.msra.mxu0 0.0
        %4243 = vmatprep.subr.mxu0 0.0
        %4244 = vmatpush2.msra.mxu0 0.0
        %4245 = vmatprep.subr.mxu0 0.0
        %4246 = vmatpush2.msra.mxu0 0.0
        %4247 = vmatprep.subr.mxu0 0.0
        %4248 = vmatpush2.msra.mxu0 0.0
        %4249 = vmatprep.subr.mxu0 0.0
        %4250 = vmatpush2.msra.mxu0 0.0
        %4251 = vmatprep.subr.mxu0 0.0
        %4252 = vmatpush2.msra.mxu0 0.0
        %4253 = vmatprep.subr.mxu0 0.0
        %4254 = vmatpush2.msra.mxu0 0.0
        %4255 = vmatprep.subr.mxu0 0.0
        %4256 = vmatpush2.msra.mxu0 0.0
        %4257 = vmatprep.subr.mxu0 0.0
        %4258 = vmatpush2.msra.mxu0 0.0
        %4259 = vmatprep.subr.mxu0 0.0
        %4260 = vmatpush2.msra.mxu0 0.0
        %4261 = vmatprep.mubr.f32.mxu0 0.0
        %v4262 = vand.u32 %v552, 4294901760
        %v4263 = vsub.f32 %v552, %v4262
        %v4264 = vand.u32 %v4263, 4294901760
        %v4265 = vsub.f32 %v4263, %v4264
        %v4266 = vand.u32 %v4265, 4294901760
        %4267 = vmatmul.mubr.f32.gmra.mxu0 %v4266
        %v4268 = vpop.f32.mrf.mxu0
        %v4269 = vadd.f32 0.0, %v4268
        %v4270 = vpop.f32.mrf.mxu0
        %v4271 = vadd.f32 0.0, %v4270
        %4272 = vdwg.mxu0
        %v4273 = vand.u32 %v742, 4294901760
        %v4274 = vsub.f32 %v742, %v4273
        %v4275 = vand.u32 %v4274, 4294901760
        %v4276 = vsub.f32 %v4274, %v4275
        %v4277 = vand.u32 %v4276, 4294901760
        %4278 = vmatprep.subr.mxu0 %v4277
        %v4279 = vand.u32 %v741, 4294901760
        %v4280 = vsub.f32 %v741, %v4279
        %v4281 = vand.u32 %v4280, 4294901760
        %v4282 = vsub.f32 %v4280, %v4281
        %v4283 = vand.u32 %v4282, 4294901760
        %4284 = vmatpush1.msra.mxu0 %v4283
        %v4285 = vand.u32 %v730, 4294901760
        %v4286 = vsub.f32 %v730, %v4285
        %v4287 = vand.u32 %v4286, 4294901760
        %v4288 = vsub.f32 %v4286, %v4287
        %v4289 = vand.u32 %v4288, 4294901760
        %4290 = vmatprep.subr.mxu0 %v4289
        %v4291 = vand.u32 %v729, 4294901760
        %v4292 = vsub.f32 %v729, %v4291
        %v4293 = vand.u32 %v4292, 4294901760
        %v4294 = vsub.f32 %v4292, %v4293
        %v4295 = vand.u32 %v4294, 4294901760
        %4296 = vmatpush1.msra.mxu0 %v4295
        %v4297 = vand.u32 %v718, 4294901760
        %v4298 = vsub.f32 %v718, %v4297
        %v4299 = vand.u32 %v4298, 4294901760
        %v4300 = vsub.f32 %v4298, %v4299
        %v4301 = vand.u32 %v4300, 4294901760
        %4302 = vmatprep.subr.mxu0 %v4301
        %v4303 = vand.u32 %v717, 4294901760
        %v4304 = vsub.f32 %v717, %v4303
        %v4305 = vand.u32 %v4304, 4294901760
        %v4306 = vsub.f32 %v4304, %v4305
        %v4307 = vand.u32 %v4306, 4294901760
        %4308 = vmatpush1.msra.mxu0 %v4307
        %v4309 = vand.u32 %v706, 4294901760
        %v4310 = vsub.f32 %v706, %v4309
        %v4311 = vand.u32 %v4310, 4294901760
        %v4312 = vsub.f32 %v4310, %v4311
        %v4313 = vand.u32 %v4312, 4294901760
        %4314 = vmatprep.subr.mxu0 %v4313
        %v4315 = vand.u32 %v705, 4294901760
        %v4316 = vsub.f32 %v705, %v4315
        %v4317 = vand.u32 %v4316, 4294901760
        %v4318 = vsub.f32 %v4316, %v4317
        %v4319 = vand.u32 %v4318, 4294901760
        %4320 = vmatpush1.msra.mxu0 %v4319
        %v4321 = vand.u32 %v694, 4294901760
        %v4322 = vsub.f32 %v694, %v4321
        %v4323 = vand.u32 %v4322, 4294901760
        %v4324 = vsub.f32 %v4322, %v4323
        %v4325 = vand.u32 %v4324, 4294901760
        %4326 = vmatprep.subr.mxu0 %v4325
        %v4327 = vand.u32 %v693, 4294901760
        %v4328 = vsub.f32 %v693, %v4327
        %v4329 = vand.u32 %v4328, 4294901760
        %v4330 = vsub.f32 %v4328, %v4329
        %v4331 = vand.u32 %v4330, 4294901760
        %4332 = vmatpush1.msra.mxu0 %v4331
        %v4333 = vand.u32 %v682, 4294901760
        %v4334 = vsub.f32 %v682, %v4333
        %v4335 = vand.u32 %v4334, 4294901760
        %v4336 = vsub.f32 %v4334, %v4335
        %v4337 = vand.u32 %v4336, 4294901760
        %4338 = vmatprep.subr.mxu0 %v4337
        %v4339 = vand.u32 %v681, 4294901760
        %v4340 = vsub.f32 %v681, %v4339
        %v4341 = vand.u32 %v4340, 4294901760
        %v4342 = vsub.f32 %v4340, %v4341
        %v4343 = vand.u32 %v4342, 4294901760
        %4344 = vmatpush1.msra.mxu0 %v4343
        %v4345 = vand.u32 %v670, 4294901760
        %v4346 = vsub.f32 %v670, %v4345
        %v4347 = vand.u32 %v4346, 4294901760
        %v4348 = vsub.f32 %v4346, %v4347
        %v4349 = vand.u32 %v4348, 4294901760
        %4350 = vmatprep.subr.mxu0 %v4349
        %v4351 = vand.u32 %v669, 4294901760
        %v4352 = vsub.f32 %v669, %v4351
        %v4353 = vand.u32 %v4352, 4294901760
        %v4354 = vsub.f32 %v4352, %v4353
        %v4355 = vand.u32 %v4354, 4294901760
        %4356 = vmatpush1.msra.mxu0 %v4355
        %v4357 = vand.u32 %v658, 4294901760
        %v4358 = vsub.f32 %v658, %v4357
        %v4359 = vand.u32 %v4358, 4294901760
        %v4360 = vsub.f32 %v4358, %v4359
        %v4361 = vand.u32 %v4360, 4294901760
        %4362 = vmatprep.subr.mxu0 %v4361
        %v4363 = vand.u32 %v657, 4294901760
        %v4364 = vsub.f32 %v657, %v4363
        %v4365 = vand.u32 %v4364, 4294901760
        %v4366 = vsub.f32 %v4364, %v4365
        %v4367 = vand.u32 %v4366, 4294901760
        %4368 = vmatpush1.msra.mxu0 %v4367
        %v4369 = vand.u32 %v646, 4294901760
        %v4370 = vsub.f32 %v646, %v4369
        %v4371 = vand.u32 %v4370, 4294901760
        %v4372 = vsub.f32 %v4370, %v4371
        %v4373 = vand.u32 %v4372, 4294901760
        %4374 = vmatprep.subr.mxu0 %v4373
        %v4375 = vand.u32 %v645, 4294901760
        %v4376 = vsub.f32 %v645, %v4375
        %v4377 = vand.u32 %v4376, 4294901760
        %v4378 = vsub.f32 %v4376, %v4377
        %v4379 = vand.u32 %v4378, 4294901760
        %4380 = vmatpush1.msra.mxu0 %v4379
        %v4381 = vand.u32 %v634, 4294901760
        %v4382 = vsub.f32 %v634, %v4381
        %v4383 = vand.u32 %v4382, 4294901760
        %v4384 = vsub.f32 %v4382, %v4383
        %v4385 = vand.u32 %v4384, 4294901760
        %4386 = vmatprep.subr.mxu0 %v4385
        %v4387 = vand.u32 %v633, 4294901760
        %v4388 = vsub.f32 %v633, %v4387
        %v4389 = vand.u32 %v4388, 4294901760
        %v4390 = vsub.f32 %v4388, %v4389
        %v4391 = vand.u32 %v4390, 4294901760
        %4392 = vmatpush1.msra.mxu0 %v4391
        %v4393 = vand.u32 %v622, 4294901760
        %v4394 = vsub.f32 %v622, %v4393
        %v4395 = vand.u32 %v4394, 4294901760
        %v4396 = vsub.f32 %v4394, %v4395
        %v4397 = vand.u32 %v4396, 4294901760
        %4398 = vmatprep.subr.mxu0 %v4397
        %v4399 = vand.u32 %v621, 4294901760
        %v4400 = vsub.f32 %v621, %v4399
        %v4401 = vand.u32 %v4400, 4294901760
        %v4402 = vsub.f32 %v4400, %v4401
        %v4403 = vand.u32 %v4402, 4294901760
        %4404 = vmatpush1.msra.mxu0 %v4403
        %v4405 = vand.u32 %v610, 4294901760
        %v4406 = vsub.f32 %v610, %v4405
        %v4407 = vand.u32 %v4406, 4294901760
        %v4408 = vsub.f32 %v4406, %v4407
        %v4409 = vand.u32 %v4408, 4294901760
        %4410 = vmatprep.subr.mxu0 %v4409
        %v4411 = vand.u32 %v609, 4294901760
        %v4412 = vsub.f32 %v609, %v4411
        %v4413 = vand.u32 %v4412, 4294901760
        %v4414 = vsub.f32 %v4412, %v4413
        %v4415 = vand.u32 %v4414, 4294901760
        %4416 = vmatpush1.msra.mxu0 %v4415
        %v4417 = vand.u32 %v598, 4294901760
        %v4418 = vsub.f32 %v598, %v4417
        %v4419 = vand.u32 %v4418, 4294901760
        %v4420 = vsub.f32 %v4418, %v4419
        %v4421 = vand.u32 %v4420, 4294901760
        %4422 = vmatprep.subr.mxu0 %v4421
        %v4423 = vand.u32 %v597, 4294901760
        %v4424 = vsub.f32 %v597, %v4423
        %v4425 = vand.u32 %v4424, 4294901760
        %v4426 = vsub.f32 %v4424, %v4425
        %v4427 = vand.u32 %v4426, 4294901760
        %4428 = vmatpush1.msra.mxu0 %v4427
        %v4429 = vand.u32 %v586, 4294901760
        %v4430 = vsub.f32 %v586, %v4429
        %v4431 = vand.u32 %v4430, 4294901760
        %v4432 = vsub.f32 %v4430, %v4431
        %v4433 = vand.u32 %v4432, 4294901760
        %4434 = vmatprep.subr.mxu0 %v4433
        %v4435 = vand.u32 %v585, 4294901760
        %v4436 = vsub.f32 %v585, %v4435
        %v4437 = vand.u32 %v4436, 4294901760
        %v4438 = vsub.f32 %v4436, %v4437
        %v4439 = vand.u32 %v4438, 4294901760
        %4440 = vmatpush1.msra.mxu0 %v4439
        %v4441 = vand.u32 %v574, 4294901760
        %v4442 = vsub.f32 %v574, %v4441
        %v4443 = vand.u32 %v4442, 4294901760
        %v4444 = vsub.f32 %v4442, %v4443
        %v4445 = vand.u32 %v4444, 4294901760
        %4446 = vmatprep.subr.mxu0 %v4445
        %v4447 = vand.u32 %v573, 4294901760
        %v4448 = vsub.f32 %v573, %v4447
        %v4449 = vand.u32 %v4448, 4294901760
        %v4450 = vsub.f32 %v4448, %v4449
        %v4451 = vand.u32 %v4450, 4294901760
        %4452 = vmatpush1.msra.mxu0 %v4451
        %v4453 = vand.u32 %v562, 4294901760
        %v4454 = vsub.f32 %v562, %v4453
        %v4455 = vand.u32 %v4454, 4294901760
        %v4456 = vsub.f32 %v4454, %v4455
        %v4457 = vand.u32 %v4456, 4294901760
        %4458 = vmatprep.subr.mxu0 %v4457
        %v4459 = vand.u32 %v561, 4294901760
        %v4460 = vsub.f32 %v561, %v4459
        %v4461 = vand.u32 %v4460, 4294901760
        %v4462 = vsub.f32 %v4460, %v4461
        %v4463 = vand.u32 %v4462, 4294901760
        %4464 = vmatpush1.msra.mxu0 %v4463
        %4465 = vmatprep.subr.mxu0 0.0
        %4466 = vmatpush2.msra.mxu0 0.0
        %4467 = vmatprep.subr.mxu0 0.0
        %4468 = vmatpush2.msra.mxu0 0.0
        %4469 = vmatprep.subr.mxu0 0.0
        %4470 = vmatpush2.msra.mxu0 0.0
        %4471 = vmatprep.subr.mxu0 0.0
        %4472 = vmatpush2.msra.mxu0 0.0
        %4473 = vmatprep.subr.mxu0 0.0
        %4474 = vmatpush2.msra.mxu0 0.0
        %4475 = vmatprep.subr.mxu0 0.0
        %4476 = vmatpush2.msra.mxu0 0.0
        %4477 = vmatprep.subr.mxu0 0.0
        %4478 = vmatpush2.msra.mxu0 0.0
        %4479 = vmatprep.subr.mxu0 0.0
        %4480 = vmatpush2.msra.mxu0 0.0
        %4481 = vmatprep.subr.mxu0 0.0
        %4482 = vmatpush2.msra.mxu0 0.0
        %4483 = vmatprep.subr.mxu0 0.0
        %4484 = vmatpush2.msra.mxu0 0.0
        %4485 = vmatprep.subr.mxu0 0.0
        %4486 = vmatpush2.msra.mxu0 0.0
        %4487 = vmatprep.subr.mxu0 0.0
        %4488 = vmatpush2.msra.mxu0 0.0
        %4489 = vmatprep.subr.mxu0 0.0
        %4490 = vmatpush2.msra.mxu0 0.0
        %4491 = vmatprep.subr.mxu0 0.0
        %4492 = vmatpush2.msra.mxu0 0.0
        %4493 = vmatprep.subr.mxu0 0.0
        %4494 = vmatpush2.msra.mxu0 0.0
        %4495 = vmatprep.subr.mxu0 0.0
        %4496 = vmatpush2.msra.mxu0 0.0
        %4497 = vmatprep.mubr.f32.mxu0 0.0
        %v4498 = vand.u32 %v552, 4294901760
        %4499 = vmatmul.mubr.f32.gmra.mxu0 %v4498
        %v4500 = vpop.f32.mrf.mxu0
        %v4501 = vadd.f32 %v4269, %v4500
        %v4502 = vpop.f32.mrf.mxu0
        %v4503 = vadd.f32 %v4271, %v4502
        %4504 = vdwg.mxu0
        %v4505 = vand.u32 %v742, 4294901760
        %v4506 = vsub.f32 %v742, %v4505
        %4507 = vmatprep.subr.mxu0 %v4506
        %v4508 = vand.u32 %v741, 4294901760
        %v4509 = vsub.f32 %v741, %v4508
        %4510 = vmatpush1.msra.mxu0 %v4509
        %v4511 = vand.u32 %v730, 4294901760
        %v4512 = vsub.f32 %v730, %v4511
        %4513 = vmatprep.subr.mxu0 %v4512
        %v4514 = vand.u32 %v729, 4294901760
        %v4515 = vsub.f32 %v729, %v4514
        %4516 = vmatpush1.msra.mxu0 %v4515
        %v4517 = vand.u32 %v718, 4294901760
        %v4518 = vsub.f32 %v718, %v4517
        %4519 = vmatprep.subr.mxu0 %v4518
        %v4520 = vand.u32 %v717, 4294901760
        %v4521 = vsub.f32 %v717, %v4520
        %4522 = vmatpush1.msra.mxu0 %v4521
        %v4523 = vand.u32 %v706, 4294901760
        %v4524 = vsub.f32 %v706, %v4523
        %4525 = vmatprep.subr.mxu0 %v4524
        %v4526 = vand.u32 %v705, 4294901760
        %v4527 = vsub.f32 %v705, %v4526
        %4528 = vmatpush1.msra.mxu0 %v4527
        %v4529 = vand.u32 %v694, 4294901760
        %v4530 = vsub.f32 %v694, %v4529
        %4531 = vmatprep.subr.mxu0 %v4530
        %v4532 = vand.u32 %v693, 4294901760
        %v4533 = vsub.f32 %v693, %v4532
        %4534 = vmatpush1.msra.mxu0 %v4533
        %v4535 = vand.u32 %v682, 4294901760
        %v4536 = vsub.f32 %v682, %v4535
        %4537 = vmatprep.subr.mxu0 %v4536
        %v4538 = vand.u32 %v681, 4294901760
        %v4539 = vsub.f32 %v681, %v4538
        %4540 = vmatpush1.msra.mxu0 %v4539
        %v4541 = vand.u32 %v670, 4294901760
        %v4542 = vsub.f32 %v670, %v4541
        %4543 = vmatprep.subr.mxu0 %v4542
        %v4544 = vand.u32 %v669, 4294901760
        %v4545 = vsub.f32 %v669, %v4544
        %4546 = vmatpush1.msra.mxu0 %v4545
        %v4547 = vand.u32 %v658, 4294901760
        %v4548 = vsub.f32 %v658, %v4547
        %4549 = vmatprep.subr.mxu0 %v4548
        %v4550 = vand.u32 %v657, 4294901760
        %v4551 = vsub.f32 %v657, %v4550
        %4552 = vmatpush1.msra.mxu0 %v4551
        %v4553 = vand.u32 %v646, 4294901760
        %v4554 = vsub.f32 %v646, %v4553
        %4555 = vmatprep.subr.mxu0 %v4554
        %v4556 = vand.u32 %v645, 4294901760
        %v4557 = vsub.f32 %v645, %v4556
        %4558 = vmatpush1.msra.mxu0 %v4557
        %v4559 = vand.u32 %v634, 4294901760
        %v4560 = vsub.f32 %v634, %v4559
        %4561 = vmatprep.subr.mxu0 %v4560
        %v4562 = vand.u32 %v633, 4294901760
        %v4563 = vsub.f32 %v633, %v4562
        %4564 = vmatpush1.msra.mxu0 %v4563
        %v4565 = vand.u32 %v622, 4294901760
        %v4566 = vsub.f32 %v622, %v4565
        %4567 = vmatprep.subr.mxu0 %v4566
        %v4568 = vand.u32 %v621, 4294901760
        %v4569 = vsub.f32 %v621, %v4568
        %4570 = vmatpush1.msra.mxu0 %v4569
        %v4571 = vand.u32 %v610, 4294901760
        %v4572 = vsub.f32 %v610, %v4571
        %4573 = vmatprep.subr.mxu0 %v4572
        %v4574 = vand.u32 %v609, 4294901760
        %v4575 = vsub.f32 %v609, %v4574
        %4576 = vmatpush1.msra.mxu0 %v4575
        %v4577 = vand.u32 %v598, 4294901760
        %v4578 = vsub.f32 %v598, %v4577
        %4579 = vmatprep.subr.mxu0 %v4578
        %v4580 = vand.u32 %v597, 4294901760
        %v4581 = vsub.f32 %v597, %v4580
        %4582 = vmatpush1.msra.mxu0 %v4581
        %v4583 = vand.u32 %v586, 4294901760
        %v4584 = vsub.f32 %v586, %v4583
        %4585 = vmatprep.subr.mxu0 %v4584
        %v4586 = vand.u32 %v585, 4294901760
        %v4587 = vsub.f32 %v585, %v4586
        %4588 = vmatpush1.msra.mxu0 %v4587
        %v4589 = vand.u32 %v574, 4294901760
        %v4590 = vsub.f32 %v574, %v4589
        %4591 = vmatprep.subr.mxu0 %v4590
        %v4592 = vand.u32 %v573, 4294901760
        %v4593 = vsub.f32 %v573, %v4592
        %4594 = vmatpush1.msra.mxu0 %v4593
        %v4595 = vand.u32 %v562, 4294901760
        %v4596 = vsub.f32 %v562, %v4595
        %4597 = vmatprep.subr.mxu0 %v4596
        %v4598 = vand.u32 %v561, 4294901760
        %v4599 = vsub.f32 %v561, %v4598
        %4600 = vmatpush1.msra.mxu0 %v4599
        %4601 = vmatprep.subr.mxu0 0.0
        %4602 = vmatpush2.msra.mxu0 0.0
        %4603 = vmatprep.subr.mxu0 0.0
        %4604 = vmatpush2.msra.mxu0 0.0
        %4605 = vmatprep.subr.mxu0 0.0
        %4606 = vmatpush2.msra.mxu0 0.0
        %4607 = vmatprep.subr.mxu0 0.0
        %4608 = vmatpush2.msra.mxu0 0.0
        %4609 = vmatprep.subr.mxu0 0.0
        %4610 = vmatpush2.msra.mxu0 0.0
        %4611 = vmatprep.subr.mxu0 0.0
        %4612 = vmatpush2.msra.mxu0 0.0
        %4613 = vmatprep.subr.mxu0 0.0
        %4614 = vmatpush2.msra.mxu0 0.0
        %4615 = vmatprep.subr.mxu0 0.0
        %4616 = vmatpush2.msra.mxu0 0.0
        %4617 = vmatprep.subr.mxu0 0.0
        %4618 = vmatpush2.msra.mxu0 0.0
        %4619 = vmatprep.subr.mxu0 0.0
        %4620 = vmatpush2.msra.mxu0 0.0
        %4621 = vmatprep.subr.mxu0 0.0
        %4622 = vmatpush2.msra.mxu0 0.0
        %4623 = vmatprep.subr.mxu0 0.0
        %4624 = vmatpush2.msra.mxu0 0.0
        %4625 = vmatprep.subr.mxu0 0.0
        %4626 = vmatpush2.msra.mxu0 0.0
        %4627 = vmatprep.subr.mxu0 0.0
        %4628 = vmatpush2.msra.mxu0 0.0
        %4629 = vmatprep.subr.mxu0 0.0
        %4630 = vmatpush2.msra.mxu0 0.0
        %4631 = vmatprep.subr.mxu0 0.0
        %4632 = vmatpush2.msra.mxu0 0.0
        %4633 = vmatprep.mubr.f32.mxu0 0.0
        %v4634 = vand.u32 %v552, 4294901760
        %v4635 = vsub.f32 %v552, %v4634
        %4636 = vmatmul.mubr.f32.gmra.mxu0 %v4635
        %v4637 = vpop.f32.mrf.mxu0
        %v4638 = vadd.f32 %v4501, %v4637
        %v4639 = vpop.f32.mrf.mxu0
        %v4640 = vadd.f32 %v4503, %v4639
        %4641 = vdwg.mxu0
        %v4642 = vand.u32 %v742, 4294901760
        %4643 = vmatprep.subr.mxu0 %v4642
        %v4644 = vand.u32 %v741, 4294901760
        %4645 = vmatpush1.msra.mxu0 %v4644
        %v4646 = vand.u32 %v730, 4294901760
        %4647 = vmatprep.subr.mxu0 %v4646
        %v4648 = vand.u32 %v729, 4294901760
        %4649 = vmatpush1.msra.mxu0 %v4648
        %v4650 = vand.u32 %v718, 4294901760
        %4651 = vmatprep.subr.mxu0 %v4650
        %v4652 = vand.u32 %v717, 4294901760
        %4653 = vmatpush1.msra.mxu0 %v4652
        %v4654 = vand.u32 %v706, 4294901760
        %4655 = vmatprep.subr.mxu0 %v4654
        %v4656 = vand.u32 %v705, 4294901760
        %4657 = vmatpush1.msra.mxu0 %v4656
        %v4658 = vand.u32 %v694, 4294901760
        %4659 = vmatprep.subr.mxu0 %v4658
        %v4660 = vand.u32 %v693, 4294901760
        %4661 = vmatpush1.msra.mxu0 %v4660
        %v4662 = vand.u32 %v682, 4294901760
        %4663 = vmatprep.subr.mxu0 %v4662
        %v4664 = vand.u32 %v681, 4294901760
        %4665 = vmatpush1.msra.mxu0 %v4664
        %v4666 = vand.u32 %v670, 4294901760
        %4667 = vmatprep.subr.mxu0 %v4666
        %v4668 = vand.u32 %v669, 4294901760
        %4669 = vmatpush1.msra.mxu0 %v4668
        %v4670 = vand.u32 %v658, 4294901760
        %4671 = vmatprep.subr.mxu0 %v4670
        %v4672 = vand.u32 %v657, 4294901760
        %4673 = vmatpush1.msra.mxu0 %v4672
        %v4674 = vand.u32 %v646, 4294901760
        %4675 = vmatprep.subr.mxu0 %v4674
        %v4676 = vand.u32 %v645, 4294901760
        %4677 = vmatpush1.msra.mxu0 %v4676
        %v4678 = vand.u32 %v634, 4294901760
        %4679 = vmatprep.subr.mxu0 %v4678
        %v4680 = vand.u32 %v633, 4294901760
        %4681 = vmatpush1.msra.mxu0 %v4680
        %v4682 = vand.u32 %v622, 4294901760
        %4683 = vmatprep.subr.mxu0 %v4682
        %v4684 = vand.u32 %v621, 4294901760
        %4685 = vmatpush1.msra.mxu0 %v4684
        %v4686 = vand.u32 %v610, 4294901760
        %4687 = vmatprep.subr.mxu0 %v4686
        %v4688 = vand.u32 %v609, 4294901760
        %4689 = vmatpush1.msra.mxu0 %v4688
        %v4690 = vand.u32 %v598, 4294901760
        %4691 = vmatprep.subr.mxu0 %v4690
        %v4692 = vand.u32 %v597, 4294901760
        %4693 = vmatpush1.msra.mxu0 %v4692
        %v4694 = vand.u32 %v586, 4294901760
        %4695 = vmatprep.subr.mxu0 %v4694
        %v4696 = vand.u32 %v585, 4294901760
        %4697 = vmatpush1.msra.mxu0 %v4696
        %v4698 = vand.u32 %v574, 4294901760
        %4699 = vmatprep.subr.mxu0 %v4698
        %v4700 = vand.u32 %v573, 4294901760
        %4701 = vmatpush1.msra.mxu0 %v4700
        %v4702 = vand.u32 %v562, 4294901760
        %4703 = vmatprep.subr.mxu0 %v4702
        %v4704 = vand.u32 %v561, 4294901760
        %4705 = vmatpush1.msra.mxu0 %v4704
        %4706 = vmatprep.subr.mxu0 0.0
        %4707 = vmatpush2.msra.mxu0 0.0
        %4708 = vmatprep.subr.mxu0 0.0
        %4709 = vmatpush2.msra.mxu0 0.0
        %4710 = vmatprep.subr.mxu0 0.0
        %4711 = vmatpush2.msra.mxu0 0.0
        %4712 = vmatprep.subr.mxu0 0.0
        %4713 = vmatpush2.msra.mxu0 0.0
        %4714 = vmatprep.subr.mxu0 0.0
        %4715 = vmatpush2.msra.mxu0 0.0
        %4716 = vmatprep.subr.mxu0 0.0
        %4717 = vmatpush2.msra.mxu0 0.0
        %4718 = vmatprep.subr.mxu0 0.0
        %4719 = vmatpush2.msra.mxu0 0.0
        %4720 = vmatprep.subr.mxu0 0.0
        %4721 = vmatpush2.msra.mxu0 0.0
        %4722 = vmatprep.subr.mxu0 0.0
        %4723 = vmatpush2.msra.mxu0 0.0
        %4724 = vmatprep.subr.mxu0 0.0
        %4725 = vmatpush2.msra.mxu0 0.0
        %4726 = vmatprep.subr.mxu0 0.0
        %4727 = vmatpush2.msra.mxu0 0.0
        %4728 = vmatprep.subr.mxu0 0.0
        %4729 = vmatpush2.msra.mxu0 0.0
        %4730 = vmatprep.subr.mxu0 0.0
        %4731 = vmatpush2.msra.mxu0 0.0
        %4732 = vmatprep.subr.mxu0 0.0
        %4733 = vmatpush2.msra.mxu0 0.0
        %4734 = vmatprep.subr.mxu0 0.0
        %4735 = vmatpush2.msra.mxu0 0.0
        %4736 = vmatprep.subr.mxu0 0.0
        %4737 = vmatpush2.msra.mxu0 0.0
        %4738 = vmatprep.mubr.f32.mxu0 0.0
        %v4739 = vand.u32 %v552, 4294901760
        %v4740 = vsub.f32 %v552, %v4739
        %v4741 = vand.u32 %v4740, 4294901760
        %4742 = vmatmul.mubr.f32.gmra.mxu0 %v4741
        %v4743 = vpop.f32.mrf.mxu0
        %v4744 = vadd.f32 %v4638, %v4743
        %v4745 = vpop.f32.mrf.mxu0
        %v4746 = vadd.f32 %v4640, %v4745
        %4747 = vdwg.mxu0
        %v4748 = vand.u32 %v742, 4294901760
        %v4749 = vsub.f32 %v742, %v4748
        %v4750 = vand.u32 %v4749, 4294901760
        %4751 = vmatprep.subr.mxu0 %v4750
        %v4752 = vand.u32 %v741, 4294901760
        %v4753 = vsub.f32 %v741, %v4752
        %v4754 = vand.u32 %v4753, 4294901760
        %4755 = vmatpush1.msra.mxu0 %v4754
        %v4756 = vand.u32 %v730, 4294901760
        %v4757 = vsub.f32 %v730, %v4756
        %v4758 = vand.u32 %v4757, 4294901760
        %4759 = vmatprep.subr.mxu0 %v4758
        %v4760 = vand.u32 %v729, 4294901760
        %v4761 = vsub.f32 %v729, %v4760
        %v4762 = vand.u32 %v4761, 4294901760
        %4763 = vmatpush1.msra.mxu0 %v4762
        %v4764 = vand.u32 %v718, 4294901760
        %v4765 = vsub.f32 %v718, %v4764
        %v4766 = vand.u32 %v4765, 4294901760
        %4767 = vmatprep.subr.mxu0 %v4766
        %v4768 = vand.u32 %v717, 4294901760
        %v4769 = vsub.f32 %v717, %v4768
        %v4770 = vand.u32 %v4769, 4294901760
        %4771 = vmatpush1.msra.mxu0 %v4770
        %v4772 = vand.u32 %v706, 4294901760
        %v4773 = vsub.f32 %v706, %v4772
        %v4774 = vand.u32 %v4773, 4294901760
        %4775 = vmatprep.subr.mxu0 %v4774
        %v4776 = vand.u32 %v705, 4294901760
        %v4777 = vsub.f32 %v705, %v4776
        %v4778 = vand.u32 %v4777, 4294901760
        %4779 = vmatpush1.msra.mxu0 %v4778
        %v4780 = vand.u32 %v694, 4294901760
        %v4781 = vsub.f32 %v694, %v4780
        %v4782 = vand.u32 %v4781, 4294901760
        %4783 = vmatprep.subr.mxu0 %v4782
        %v4784 = vand.u32 %v693, 4294901760
        %v4785 = vsub.f32 %v693, %v4784
        %v4786 = vand.u32 %v4785, 4294901760
        %4787 = vmatpush1.msra.mxu0 %v4786
        %v4788 = vand.u32 %v682, 4294901760
        %v4789 = vsub.f32 %v682, %v4788
        %v4790 = vand.u32 %v4789, 4294901760
        %4791 = vmatprep.subr.mxu0 %v4790
        %v4792 = vand.u32 %v681, 4294901760
        %v4793 = vsub.f32 %v681, %v4792
        %v4794 = vand.u32 %v4793, 4294901760
        %4795 = vmatpush1.msra.mxu0 %v4794
        %v4796 = vand.u32 %v670, 4294901760
        %v4797 = vsub.f32 %v670, %v4796
        %v4798 = vand.u32 %v4797, 4294901760
        %4799 = vmatprep.subr.mxu0 %v4798
        %v4800 = vand.u32 %v669, 4294901760
        %v4801 = vsub.f32 %v669, %v4800
        %v4802 = vand.u32 %v4801, 4294901760
        %4803 = vmatpush1.msra.mxu0 %v4802
        %v4804 = vand.u32 %v658, 4294901760
        %v4805 = vsub.f32 %v658, %v4804
        %v4806 = vand.u32 %v4805, 4294901760
        %4807 = vmatprep.subr.mxu0 %v4806
        %v4808 = vand.u32 %v657, 4294901760
        %v4809 = vsub.f32 %v657, %v4808
        %v4810 = vand.u32 %v4809, 4294901760
        %4811 = vmatpush1.msra.mxu0 %v4810
        %v4812 = vand.u32 %v646, 4294901760
        %v4813 = vsub.f32 %v646, %v4812
        %v4814 = vand.u32 %v4813, 4294901760
        %4815 = vmatprep.subr.mxu0 %v4814
        %v4816 = vand.u32 %v645, 4294901760
        %v4817 = vsub.f32 %v645, %v4816
        %v4818 = vand.u32 %v4817, 4294901760
        %4819 = vmatpush1.msra.mxu0 %v4818
        %v4820 = vand.u32 %v634, 4294901760
        %v4821 = vsub.f32 %v634, %v4820
        %v4822 = vand.u32 %v4821, 4294901760
        %4823 = vmatprep.subr.mxu0 %v4822
        %v4824 = vand.u32 %v633, 4294901760
        %v4825 = vsub.f32 %v633, %v4824
        %v4826 = vand.u32 %v4825, 4294901760
        %4827 = vmatpush1.msra.mxu0 %v4826
        %v4828 = vand.u32 %v622, 4294901760
        %v4829 = vsub.f32 %v622, %v4828
        %v4830 = vand.u32 %v4829, 4294901760
        %4831 = vmatprep.subr.mxu0 %v4830
        %v4832 = vand.u32 %v621, 4294901760
        %v4833 = vsub.f32 %v621, %v4832
        %v4834 = vand.u32 %v4833, 4294901760
        %4835 = vmatpush1.msra.mxu0 %v4834
        %v4836 = vand.u32 %v610, 4294901760
        %v4837 = vsub.f32 %v610, %v4836
        %v4838 = vand.u32 %v4837, 4294901760
        %4839 = vmatprep.subr.mxu0 %v4838
        %v4840 = vand.u32 %v609, 4294901760
        %v4841 = vsub.f32 %v609, %v4840
        %v4842 = vand.u32 %v4841, 4294901760
        %4843 = vmatpush1.msra.mxu0 %v4842
        %v4844 = vand.u32 %v598, 4294901760
        %v4845 = vsub.f32 %v598, %v4844
        %v4846 = vand.u32 %v4845, 4294901760
        %4847 = vmatprep.subr.mxu0 %v4846
        %v4848 = vand.u32 %v597, 4294901760
        %v4849 = vsub.f32 %v597, %v4848
        %v4850 = vand.u32 %v4849, 4294901760
        %4851 = vmatpush1.msra.mxu0 %v4850
        %v4852 = vand.u32 %v586, 4294901760
        %v4853 = vsub.f32 %v586, %v4852
        %v4854 = vand.u32 %v4853, 4294901760
        %4855 = vmatprep.subr.mxu0 %v4854
        %v4856 = vand.u32 %v585, 4294901760
        %v4857 = vsub.f32 %v585, %v4856
        %v4858 = vand.u32 %v4857, 4294901760
        %4859 = vmatpush1.msra.mxu0 %v4858
        %v4860 = vand.u32 %v574, 4294901760
        %v4861 = vsub.f32 %v574, %v4860
        %v4862 = vand.u32 %v4861, 4294901760
        %4863 = vmatprep.subr.mxu0 %v4862
        %v4864 = vand.u32 %v573, 4294901760
        %v4865 = vsub.f32 %v573, %v4864
        %v4866 = vand.u32 %v4865, 4294901760
        %4867 = vmatpush1.msra.mxu0 %v4866
        %v4868 = vand.u32 %v562, 4294901760
        %v4869 = vsub.f32 %v562, %v4868
        %v4870 = vand.u32 %v4869, 4294901760
        %4871 = vmatprep.subr.mxu0 %v4870
        %v4872 = vand.u32 %v561, 4294901760
        %v4873 = vsub.f32 %v561, %v4872
        %v4874 = vand.u32 %v4873, 4294901760
        %4875 = vmatpush1.msra.mxu0 %v4874
        %4876 = vmatprep.subr.mxu0 0.0
        %4877 = vmatpush2.msra.mxu0 0.0
        %4878 = vmatprep.subr.mxu0 0.0
        %4879 = vmatpush2.msra.mxu0 0.0
        %4880 = vmatprep.subr.mxu0 0.0
        %4881 = vmatpush2.msra.mxu0 0.0
        %4882 = vmatprep.subr.mxu0 0.0
        %4883 = vmatpush2.msra.mxu0 0.0
        %4884 = vmatprep.subr.mxu0 0.0
        %4885 = vmatpush2.msra.mxu0 0.0
        %4886 = vmatprep.subr.mxu0 0.0
        %4887 = vmatpush2.msra.mxu0 0.0
        %4888 = vmatprep.subr.mxu0 0.0
        %4889 = vmatpush2.msra.mxu0 0.0
        %4890 = vmatprep.subr.mxu0 0.0
        %4891 = vmatpush2.msra.mxu0 0.0
        %4892 = vmatprep.subr.mxu0 0.0
        %4893 = vmatpush2.msra.mxu0 0.0
        %4894 = vmatprep.subr.mxu0 0.0
        %4895 = vmatpush2.msra.mxu0 0.0
        %4896 = vmatprep.subr.mxu0 0.0
        %4897 = vmatpush2.msra.mxu0 0.0
        %4898 = vmatprep.subr.mxu0 0.0
        %4899 = vmatpush2.msra.mxu0 0.0
        %4900 = vmatprep.subr.mxu0 0.0
        %4901 = vmatpush2.msra.mxu0 0.0
        %4902 = vmatprep.subr.mxu0 0.0
        %4903 = vmatpush2.msra.mxu0 0.0
        %4904 = vmatprep.subr.mxu0 0.0
        %4905 = vmatpush2.msra.mxu0 0.0
        %4906 = vmatprep.subr.mxu0 0.0
        %4907 = vmatpush2.msra.mxu0 0.0
        %4908 = vmatprep.mubr.f32.mxu0 0.0
        %v4909 = vand.u32 %v552, 4294901760
        %4910 = vmatmul.mubr.f32.gmra.mxu0 %v4909
        %v4911 = vpop.f32.mrf.mxu0
        %v4912 = vadd.f32 %v4744, %v4911
        %v4913 = vpop.f32.mrf.mxu0
        %v4914 = vadd.f32 %v4746, %v4913
        %4915 = vdwg.mxu0
        %v4916 = vand.u32 %v742, 4294901760
        %4917 = vmatprep.subr.mxu0 %v4916
        %v4918 = vand.u32 %v741, 4294901760
        %4919 = vmatpush1.msra.mxu0 %v4918
        %v4920 = vand.u32 %v730, 4294901760
        %4921 = vmatprep.subr.mxu0 %v4920
        %v4922 = vand.u32 %v729, 4294901760
        %4923 = vmatpush1.msra.mxu0 %v4922
        %v4924 = vand.u32 %v718, 4294901760
        %4925 = vmatprep.subr.mxu0 %v4924
        %v4926 = vand.u32 %v717, 4294901760
        %4927 = vmatpush1.msra.mxu0 %v4926
        %v4928 = vand.u32 %v706, 4294901760
        %4929 = vmatprep.subr.mxu0 %v4928
        %v4930 = vand.u32 %v705, 4294901760
        %4931 = vmatpush1.msra.mxu0 %v4930
        %v4932 = vand.u32 %v694, 4294901760
        %4933 = vmatprep.subr.mxu0 %v4932
        %v4934 = vand.u32 %v693, 4294901760
        %4935 = vmatpush1.msra.mxu0 %v4934
        %v4936 = vand.u32 %v682, 4294901760
        %4937 = vmatprep.subr.mxu0 %v4936
        %v4938 = vand.u32 %v681, 4294901760
        %4939 = vmatpush1.msra.mxu0 %v4938
        %v4940 = vand.u32 %v670, 4294901760
        %4941 = vmatprep.subr.mxu0 %v4940
        %v4942 = vand.u32 %v669, 4294901760
        %4943 = vmatpush1.msra.mxu0 %v4942
        %v4944 = vand.u32 %v658, 4294901760
        %4945 = vmatprep.subr.mxu0 %v4944
        %v4946 = vand.u32 %v657, 4294901760
        %4947 = vmatpush1.msra.mxu0 %v4946
        %v4948 = vand.u32 %v646, 4294901760
        %4949 = vmatprep.subr.mxu0 %v4948
        %v4950 = vand.u32 %v645, 4294901760
        %4951 = vmatpush1.msra.mxu0 %v4950
        %v4952 = vand.u32 %v634, 4294901760
        %4953 = vmatprep.subr.mxu0 %v4952
        %v4954 = vand.u32 %v633, 4294901760
        %4955 = vmatpush1.msra.mxu0 %v4954
        %v4956 = vand.u32 %v622, 4294901760
        %4957 = vmatprep.subr.mxu0 %v4956
        %v4958 = vand.u32 %v621, 4294901760
        %4959 = vmatpush1.msra.mxu0 %v4958
        %v4960 = vand.u32 %v610, 4294901760
        %4961 = vmatprep.subr.mxu0 %v4960
        %v4962 = vand.u32 %v609, 4294901760
        %4963 = vmatpush1.msra.mxu0 %v4962
        %v4964 = vand.u32 %v598, 4294901760
        %4965 = vmatprep.subr.mxu0 %v4964
        %v4966 = vand.u32 %v597, 4294901760
        %4967 = vmatpush1.msra.mxu0 %v4966
        %v4968 = vand.u32 %v586, 4294901760
        %4969 = vmatprep.subr.mxu0 %v4968
        %v4970 = vand.u32 %v585, 4294901760
        %4971 = vmatpush1.msra.mxu0 %v4970
        %v4972 = vand.u32 %v574, 4294901760
        %4973 = vmatprep.subr.mxu0 %v4972
        %v4974 = vand.u32 %v573, 4294901760
        %4975 = vmatpush1.msra.mxu0 %v4974
        %v4976 = vand.u32 %v562, 4294901760
        %4977 = vmatprep.subr.mxu0 %v4976
        %v4978 = vand.u32 %v561, 4294901760
        %4979 = vmatpush1.msra.mxu0 %v4978
        %4980 = vmatprep.subr.mxu0 0.0
        %4981 = vmatpush2.msra.mxu0 0.0
        %4982 = vmatprep.subr.mxu0 0.0
        %4983 = vmatpush2.msra.mxu0 0.0
        %4984 = vmatprep.subr.mxu0 0.0
        %4985 = vmatpush2.msra.mxu0 0.0
        %4986 = vmatprep.subr.mxu0 0.0
        %4987 = vmatpush2.msra.mxu0 0.0
        %4988 = vmatprep.subr.mxu0 0.0
        %4989 = vmatpush2.msra.mxu0 0.0
        %4990 = vmatprep.subr.mxu0 0.0
        %4991 = vmatpush2.msra.mxu0 0.0
        %4992 = vmatprep.subr.mxu0 0.0
        %4993 = vmatpush2.msra.mxu0 0.0
        %4994 = vmatprep.subr.mxu0 0.0
        %4995 = vmatpush2.msra.mxu0 0.0
        %4996 = vmatprep.subr.mxu0 0.0
        %4997 = vmatpush2.msra.mxu0 0.0
        %4998 = vmatprep.subr.mxu0 0.0
        %4999 = vmatpush2.msra.mxu0 0.0
        %5000 = vmatprep.subr.mxu0 0.0
        %5001 = vmatpush2.msra.mxu0 0.0
        %5002 = vmatprep.subr.mxu0 0.0
        %5003 = vmatpush2.msra.mxu0 0.0
        %5004 = vmatprep.subr.mxu0 0.0
        %5005 = vmatpush2.msra.mxu0 0.0
        %5006 = vmatprep.subr.mxu0 0.0
        %5007 = vmatpush2.msra.mxu0 0.0
        %5008 = vmatprep.subr.mxu0 0.0
        %5009 = vmatpush2.msra.mxu0 0.0
        %5010 = vmatprep.subr.mxu0 0.0
        %5011 = vmatpush2.msra.mxu0 0.0
        %5012 = vmatprep.mubr.f32.mxu0 0.0
        %v5013 = vand.u32 %v552, 4294901760
        %5014 = vmatmul.mubr.f32.gmra.mxu0 %v5013
        %v5015 = vpop.f32.mrf.mxu0
        %v5016 = vadd.f32 %v4912, %v5015
        %v5017 = vpop.f32.mrf.mxu0
        %v5018 = vadd.f32 %v4914, %v5017
        %5019 = vdwg.mxu0
        %v5020 = vand.u32 %v744, 4294901760
        %5021 = vmatprep.subr.mxu0 %v5020
        %v5022 = vand.u32 %v743, 4294901760
        %5023 = vmatpush1.msra.mxu0 %v5022
        %v5024 = vand.u32 %v732, 4294901760
        %5025 = vmatprep.subr.mxu0 %v5024
        %v5026 = vand.u32 %v731, 4294901760
        %5027 = vmatpush1.msra.mxu0 %v5026
        %v5028 = vand.u32 %v720, 4294901760
        %5029 = vmatprep.subr.mxu0 %v5028
        %v5030 = vand.u32 %v719, 4294901760
        %5031 = vmatpush1.msra.mxu0 %v5030
        %v5032 = vand.u32 %v708, 4294901760
        %5033 = vmatprep.subr.mxu0 %v5032
        %v5034 = vand.u32 %v707, 4294901760
        %5035 = vmatpush1.msra.mxu0 %v5034
        %v5036 = vand.u32 %v696, 4294901760
        %5037 = vmatprep.subr.mxu0 %v5036
        %v5038 = vand.u32 %v695, 4294901760
        %5039 = vmatpush1.msra.mxu0 %v5038
        %v5040 = vand.u32 %v684, 4294901760
        %5041 = vmatprep.subr.mxu0 %v5040
        %v5042 = vand.u32 %v683, 4294901760
        %5043 = vmatpush1.msra.mxu0 %v5042
        %v5044 = vand.u32 %v672, 4294901760
        %5045 = vmatprep.subr.mxu0 %v5044
        %v5046 = vand.u32 %v671, 4294901760
        %5047 = vmatpush1.msra.mxu0 %v5046
        %v5048 = vand.u32 %v660, 4294901760
        %5049 = vmatprep.subr.mxu0 %v5048
        %v5050 = vand.u32 %v659, 4294901760
        %5051 = vmatpush1.msra.mxu0 %v5050
        %v5052 = vand.u32 %v648, 4294901760
        %5053 = vmatprep.subr.mxu0 %v5052
        %v5054 = vand.u32 %v647, 4294901760
        %5055 = vmatpush1.msra.mxu0 %v5054
        %v5056 = vand.u32 %v636, 4294901760
        %5057 = vmatprep.subr.mxu0 %v5056
        %v5058 = vand.u32 %v635, 4294901760
        %5059 = vmatpush1.msra.mxu0 %v5058
        %v5060 = vand.u32 %v624, 4294901760
        %5061 = vmatprep.subr.mxu0 %v5060
        %v5062 = vand.u32 %v623, 4294901760
        %5063 = vmatpush1.msra.mxu0 %v5062
        %v5064 = vand.u32 %v612, 4294901760
        %5065 = vmatprep.subr.mxu0 %v5064
        %v5066 = vand.u32 %v611, 4294901760
        %5067 = vmatpush1.msra.mxu0 %v5066
        %v5068 = vand.u32 %v600, 4294901760
        %5069 = vmatprep.subr.mxu0 %v5068
        %v5070 = vand.u32 %v599, 4294901760
        %5071 = vmatpush1.msra.mxu0 %v5070
        %v5072 = vand.u32 %v588, 4294901760
        %5073 = vmatprep.subr.mxu0 %v5072
        %v5074 = vand.u32 %v587, 4294901760
        %5075 = vmatpush1.msra.mxu0 %v5074
        %v5076 = vand.u32 %v576, 4294901760
        %5077 = vmatprep.subr.mxu0 %v5076
        %v5078 = vand.u32 %v575, 4294901760
        %5079 = vmatpush1.msra.mxu0 %v5078
        %v5080 = vand.u32 %v564, 4294901760
        %5081 = vmatprep.subr.mxu0 %v5080
        %v5082 = vand.u32 %v563, 4294901760
        %5083 = vmatpush1.msra.mxu0 %v5082
        %5084 = vmatprep.subr.mxu0 0.0
        %5085 = vmatpush2.msra.mxu0 0.0
        %5086 = vmatprep.subr.mxu0 0.0
        %5087 = vmatpush2.msra.mxu0 0.0
        %5088 = vmatprep.subr.mxu0 0.0
        %5089 = vmatpush2.msra.mxu0 0.0
        %5090 = vmatprep.subr.mxu0 0.0
        %5091 = vmatpush2.msra.mxu0 0.0
        %5092 = vmatprep.subr.mxu0 0.0
        %5093 = vmatpush2.msra.mxu0 0.0
        %5094 = vmatprep.subr.mxu0 0.0
        %5095 = vmatpush2.msra.mxu0 0.0
        %5096 = vmatprep.subr.mxu0 0.0
        %5097 = vmatpush2.msra.mxu0 0.0
        %5098 = vmatprep.subr.mxu0 0.0
        %5099 = vmatpush2.msra.mxu0 0.0
        %5100 = vmatprep.subr.mxu0 0.0
        %5101 = vmatpush2.msra.mxu0 0.0
        %5102 = vmatprep.subr.mxu0 0.0
        %5103 = vmatpush2.msra.mxu0 0.0
        %5104 = vmatprep.subr.mxu0 0.0
        %5105 = vmatpush2.msra.mxu0 0.0
        %5106 = vmatprep.subr.mxu0 0.0
        %5107 = vmatpush2.msra.mxu0 0.0
        %5108 = vmatprep.subr.mxu0 0.0
        %5109 = vmatpush2.msra.mxu0 0.0
        %5110 = vmatprep.subr.mxu0 0.0
        %5111 = vmatpush2.msra.mxu0 0.0
        %5112 = vmatprep.subr.mxu0 0.0
        %5113 = vmatpush2.msra.mxu0 0.0
        %5114 = vmatprep.subr.mxu0 0.0
        %5115 = vmatpush2.msra.mxu0 0.0
        %5116 = vmatprep.mubr.f32.mxu0 0.0
        %v5117 = vand.u32 %v552, 4294901760
        %v5118 = vsub.f32 %v552, %v5117
        %v5119 = vand.u32 %v5118, 4294901760
        %v5120 = vsub.f32 %v5118, %v5119
        %v5121 = vand.u32 %v5120, 4294901760
        %5122 = vmatmul.mubr.f32.gmra.mxu0 %v5121
        %v5123 = vpop.f32.mrf.mxu0
        %v5124 = vadd.f32 0.0, %v5123
        %v5125 = vpop.f32.mrf.mxu0
        %v5126 = vadd.f32 0.0, %v5125
        %5127 = vdwg.mxu0
        %v5128 = vand.u32 %v744, 4294901760
        %v5129 = vsub.f32 %v744, %v5128
        %v5130 = vand.u32 %v5129, 4294901760
        %v5131 = vsub.f32 %v5129, %v5130
        %v5132 = vand.u32 %v5131, 4294901760
        %5133 = vmatprep.subr.mxu0 %v5132
        %v5134 = vand.u32 %v743, 4294901760
        %v5135 = vsub.f32 %v743, %v5134
        %v5136 = vand.u32 %v5135, 4294901760
        %v5137 = vsub.f32 %v5135, %v5136
        %v5138 = vand.u32 %v5137, 4294901760
        %5139 = vmatpush1.msra.mxu0 %v5138
        %v5140 = vand.u32 %v732, 4294901760
        %v5141 = vsub.f32 %v732, %v5140
        %v5142 = vand.u32 %v5141, 4294901760
        %v5143 = vsub.f32 %v5141, %v5142
        %v5144 = vand.u32 %v5143, 4294901760
        %5145 = vmatprep.subr.mxu0 %v5144
        %v5146 = vand.u32 %v731, 4294901760
        %v5147 = vsub.f32 %v731, %v5146
        %v5148 = vand.u32 %v5147, 4294901760
        %v5149 = vsub.f32 %v5147, %v5148
        %v5150 = vand.u32 %v5149, 4294901760
        %5151 = vmatpush1.msra.mxu0 %v5150
        %v5152 = vand.u32 %v720, 4294901760
        %v5153 = vsub.f32 %v720, %v5152
        %v5154 = vand.u32 %v5153, 4294901760
        %v5155 = vsub.f32 %v5153, %v5154
        %v5156 = vand.u32 %v5155, 4294901760
        %5157 = vmatprep.subr.mxu0 %v5156
        %v5158 = vand.u32 %v719, 4294901760
        %v5159 = vsub.f32 %v719, %v5158
        %v5160 = vand.u32 %v5159, 4294901760
        %v5161 = vsub.f32 %v5159, %v5160
        %v5162 = vand.u32 %v5161, 4294901760
        %5163 = vmatpush1.msra.mxu0 %v5162
        %v5164 = vand.u32 %v708, 4294901760
        %v5165 = vsub.f32 %v708, %v5164
        %v5166 = vand.u32 %v5165, 4294901760
        %v5167 = vsub.f32 %v5165, %v5166
        %v5168 = vand.u32 %v5167, 4294901760
        %5169 = vmatprep.subr.mxu0 %v5168
        %v5170 = vand.u32 %v707, 4294901760
        %v5171 = vsub.f32 %v707, %v5170
        %v5172 = vand.u32 %v5171, 4294901760
        %v5173 = vsub.f32 %v5171, %v5172
        %v5174 = vand.u32 %v5173, 4294901760
        %5175 = vmatpush1.msra.mxu0 %v5174
        %v5176 = vand.u32 %v696, 4294901760
        %v5177 = vsub.f32 %v696, %v5176
        %v5178 = vand.u32 %v5177, 4294901760
        %v5179 = vsub.f32 %v5177, %v5178
        %v5180 = vand.u32 %v5179, 4294901760
        %5181 = vmatprep.subr.mxu0 %v5180
        %v5182 = vand.u32 %v695, 4294901760
        %v5183 = vsub.f32 %v695, %v5182
        %v5184 = vand.u32 %v5183, 4294901760
        %v5185 = vsub.f32 %v5183, %v5184
        %v5186 = vand.u32 %v5185, 4294901760
        %5187 = vmatpush1.msra.mxu0 %v5186
        %v5188 = vand.u32 %v684, 4294901760
        %v5189 = vsub.f32 %v684, %v5188
        %v5190 = vand.u32 %v5189, 4294901760
        %v5191 = vsub.f32 %v5189, %v5190
        %v5192 = vand.u32 %v5191, 4294901760
        %5193 = vmatprep.subr.mxu0 %v5192
        %v5194 = vand.u32 %v683, 4294901760
        %v5195 = vsub.f32 %v683, %v5194
        %v5196 = vand.u32 %v5195, 4294901760
        %v5197 = vsub.f32 %v5195, %v5196
        %v5198 = vand.u32 %v5197, 4294901760
        %5199 = vmatpush1.msra.mxu0 %v5198
        %v5200 = vand.u32 %v672, 4294901760
        %v5201 = vsub.f32 %v672, %v5200
        %v5202 = vand.u32 %v5201, 4294901760
        %v5203 = vsub.f32 %v5201, %v5202
        %v5204 = vand.u32 %v5203, 4294901760
        %5205 = vmatprep.subr.mxu0 %v5204
        %v5206 = vand.u32 %v671, 4294901760
        %v5207 = vsub.f32 %v671, %v5206
        %v5208 = vand.u32 %v5207, 4294901760
        %v5209 = vsub.f32 %v5207, %v5208
        %v5210 = vand.u32 %v5209, 4294901760
        %5211 = vmatpush1.msra.mxu0 %v5210
        %v5212 = vand.u32 %v660, 4294901760
        %v5213 = vsub.f32 %v660, %v5212
        %v5214 = vand.u32 %v5213, 4294901760
        %v5215 = vsub.f32 %v5213, %v5214
        %v5216 = vand.u32 %v5215, 4294901760
        %5217 = vmatprep.subr.mxu0 %v5216
        %v5218 = vand.u32 %v659, 4294901760
        %v5219 = vsub.f32 %v659, %v5218
        %v5220 = vand.u32 %v5219, 4294901760
        %v5221 = vsub.f32 %v5219, %v5220
        %v5222 = vand.u32 %v5221, 4294901760
        %5223 = vmatpush1.msra.mxu0 %v5222
        %v5224 = vand.u32 %v648, 4294901760
        %v5225 = vsub.f32 %v648, %v5224
        %v5226 = vand.u32 %v5225, 4294901760
        %v5227 = vsub.f32 %v5225, %v5226
        %v5228 = vand.u32 %v5227, 4294901760
        %5229 = vmatprep.subr.mxu0 %v5228
        %v5230 = vand.u32 %v647, 4294901760
        %v5231 = vsub.f32 %v647, %v5230
        %v5232 = vand.u32 %v5231, 4294901760
        %v5233 = vsub.f32 %v5231, %v5232
        %v5234 = vand.u32 %v5233, 4294901760
        %5235 = vmatpush1.msra.mxu0 %v5234
        %v5236 = vand.u32 %v636, 4294901760
        %v5237 = vsub.f32 %v636, %v5236
        %v5238 = vand.u32 %v5237, 4294901760
        %v5239 = vsub.f32 %v5237, %v5238
        %v5240 = vand.u32 %v5239, 4294901760
        %5241 = vmatprep.subr.mxu0 %v5240
        %v5242 = vand.u32 %v635, 4294901760
        %v5243 = vsub.f32 %v635, %v5242
        %v5244 = vand.u32 %v5243, 4294901760
        %v5245 = vsub.f32 %v5243, %v5244
        %v5246 = vand.u32 %v5245, 4294901760
        %5247 = vmatpush1.msra.mxu0 %v5246
        %v5248 = vand.u32 %v624, 4294901760
        %v5249 = vsub.f32 %v624, %v5248
        %v5250 = vand.u32 %v5249, 4294901760
        %v5251 = vsub.f32 %v5249, %v5250
        %v5252 = vand.u32 %v5251, 4294901760
        %5253 = vmatprep.subr.mxu0 %v5252
        %v5254 = vand.u32 %v623, 4294901760
        %v5255 = vsub.f32 %v623, %v5254
        %v5256 = vand.u32 %v5255, 4294901760
        %v5257 = vsub.f32 %v5255, %v5256
        %v5258 = vand.u32 %v5257, 4294901760
        %5259 = vmatpush1.msra.mxu0 %v5258
        %v5260 = vand.u32 %v612, 4294901760
        %v5261 = vsub.f32 %v612, %v5260
        %v5262 = vand.u32 %v5261, 4294901760
        %v5263 = vsub.f32 %v5261, %v5262
        %v5264 = vand.u32 %v5263, 4294901760
        %5265 = vmatprep.subr.mxu0 %v5264
        %v5266 = vand.u32 %v611, 4294901760
        %v5267 = vsub.f32 %v611, %v5266
        %v5268 = vand.u32 %v5267, 4294901760
        %v5269 = vsub.f32 %v5267, %v5268
        %v5270 = vand.u32 %v5269, 4294901760
        %5271 = vmatpush1.msra.mxu0 %v5270
        %v5272 = vand.u32 %v600, 4294901760
        %v5273 = vsub.f32 %v600, %v5272
        %v5274 = vand.u32 %v5273, 4294901760
        %v5275 = vsub.f32 %v5273, %v5274
        %v5276 = vand.u32 %v5275, 4294901760
        %5277 = vmatprep.subr.mxu0 %v5276
        %v5278 = vand.u32 %v599, 4294901760
        %v5279 = vsub.f32 %v599, %v5278
        %v5280 = vand.u32 %v5279, 4294901760
        %v5281 = vsub.f32 %v5279, %v5280
        %v5282 = vand.u32 %v5281, 4294901760
        %5283 = vmatpush1.msra.mxu0 %v5282
        %v5284 = vand.u32 %v588, 4294901760
        %v5285 = vsub.f32 %v588, %v5284
        %v5286 = vand.u32 %v5285, 4294901760
        %v5287 = vsub.f32 %v5285, %v5286
        %v5288 = vand.u32 %v5287, 4294901760
        %5289 = vmatprep.subr.mxu0 %v5288
        %v5290 = vand.u32 %v587, 4294901760
        %v5291 = vsub.f32 %v587, %v5290
        %v5292 = vand.u32 %v5291, 4294901760
        %v5293 = vsub.f32 %v5291, %v5292
        %v5294 = vand.u32 %v5293, 4294901760
        %5295 = vmatpush1.msra.mxu0 %v5294
        %v5296 = vand.u32 %v576, 4294901760
        %v5297 = vsub.f32 %v576, %v5296
        %v5298 = vand.u32 %v5297, 4294901760
        %v5299 = vsub.f32 %v5297, %v5298
        %v5300 = vand.u32 %v5299, 4294901760
        %5301 = vmatprep.subr.mxu0 %v5300
        %v5302 = vand.u32 %v575, 4294901760
        %v5303 = vsub.f32 %v575, %v5302
        %v5304 = vand.u32 %v5303, 4294901760
        %v5305 = vsub.f32 %v5303, %v5304
        %v5306 = vand.u32 %v5305, 4294901760
        %5307 = vmatpush1.msra.mxu0 %v5306
        %v5308 = vand.u32 %v564, 4294901760
        %v5309 = vsub.f32 %v564, %v5308
        %v5310 = vand.u32 %v5309, 4294901760
        %v5311 = vsub.f32 %v5309, %v5310
        %v5312 = vand.u32 %v5311, 4294901760
        %5313 = vmatprep.subr.mxu0 %v5312
        %v5314 = vand.u32 %v563, 4294901760
        %v5315 = vsub.f32 %v563, %v5314
        %v5316 = vand.u32 %v5315, 4294901760
        %v5317 = vsub.f32 %v5315, %v5316
        %v5318 = vand.u32 %v5317, 4294901760
        %5319 = vmatpush1.msra.mxu0 %v5318
        %5320 = vmatprep.subr.mxu0 0.0
        %5321 = vmatpush2.msra.mxu0 0.0
        %5322 = vmatprep.subr.mxu0 0.0
        %5323 = vmatpush2.msra.mxu0 0.0
        %5324 = vmatprep.subr.mxu0 0.0
        %5325 = vmatpush2.msra.mxu0 0.0
        %5326 = vmatprep.subr.mxu0 0.0
        %5327 = vmatpush2.msra.mxu0 0.0
        %5328 = vmatprep.subr.mxu0 0.0
        %5329 = vmatpush2.msra.mxu0 0.0
        %5330 = vmatprep.subr.mxu0 0.0
        %5331 = vmatpush2.msra.mxu0 0.0
        %5332 = vmatprep.subr.mxu0 0.0
        %5333 = vmatpush2.msra.mxu0 0.0
        %5334 = vmatprep.subr.mxu0 0.0
        %5335 = vmatpush2.msra.mxu0 0.0
        %5336 = vmatprep.subr.mxu0 0.0
        %5337 = vmatpush2.msra.mxu0 0.0
        %5338 = vmatprep.subr.mxu0 0.0
        %5339 = vmatpush2.msra.mxu0 0.0
        %5340 = vmatprep.subr.mxu0 0.0
        %5341 = vmatpush2.msra.mxu0 0.0
        %5342 = vmatprep.subr.mxu0 0.0
        %5343 = vmatpush2.msra.mxu0 0.0
        %5344 = vmatprep.subr.mxu0 0.0
        %5345 = vmatpush2.msra.mxu0 0.0
        %5346 = vmatprep.subr.mxu0 0.0
        %5347 = vmatpush2.msra.mxu0 0.0
        %5348 = vmatprep.subr.mxu0 0.0
        %5349 = vmatpush2.msra.mxu0 0.0
        %5350 = vmatprep.subr.mxu0 0.0
        %5351 = vmatpush2.msra.mxu0 0.0
        %5352 = vmatprep.mubr.f32.mxu0 0.0
        %v5353 = vand.u32 %v552, 4294901760
        %5354 = vmatmul.mubr.f32.gmra.mxu0 %v5353
        %v5355 = vpop.f32.mrf.mxu0
        %v5356 = vadd.f32 %v5124, %v5355
        %v5357 = vpop.f32.mrf.mxu0
        %v5358 = vadd.f32 %v5126, %v5357
        %5359 = vdwg.mxu0
        %v5360 = vand.u32 %v744, 4294901760
        %v5361 = vsub.f32 %v744, %v5360
        %5362 = vmatprep.subr.mxu0 %v5361
        %v5363 = vand.u32 %v743, 4294901760
        %v5364 = vsub.f32 %v743, %v5363
        %5365 = vmatpush1.msra.mxu0 %v5364
        %v5366 = vand.u32 %v732, 4294901760
        %v5367 = vsub.f32 %v732, %v5366
        %5368 = vmatprep.subr.mxu0 %v5367
        %v5369 = vand.u32 %v731, 4294901760
        %v5370 = vsub.f32 %v731, %v5369
        %5371 = vmatpush1.msra.mxu0 %v5370
        %v5372 = vand.u32 %v720, 4294901760
        %v5373 = vsub.f32 %v720, %v5372
        %5374 = vmatprep.subr.mxu0 %v5373
        %v5375 = vand.u32 %v719, 4294901760
        %v5376 = vsub.f32 %v719, %v5375
        %5377 = vmatpush1.msra.mxu0 %v5376
        %v5378 = vand.u32 %v708, 4294901760
        %v5379 = vsub.f32 %v708, %v5378
        %5380 = vmatprep.subr.mxu0 %v5379
        %v5381 = vand.u32 %v707, 4294901760
        %v5382 = vsub.f32 %v707, %v5381
        %5383 = vmatpush1.msra.mxu0 %v5382
        %v5384 = vand.u32 %v696, 4294901760
        %v5385 = vsub.f32 %v696, %v5384
        %5386 = vmatprep.subr.mxu0 %v5385
        %v5387 = vand.u32 %v695, 4294901760
        %v5388 = vsub.f32 %v695, %v5387
        %5389 = vmatpush1.msra.mxu0 %v5388
        %v5390 = vand.u32 %v684, 4294901760
        %v5391 = vsub.f32 %v684, %v5390
        %5392 = vmatprep.subr.mxu0 %v5391
        %v5393 = vand.u32 %v683, 4294901760
        %v5394 = vsub.f32 %v683, %v5393
        %5395 = vmatpush1.msra.mxu0 %v5394
        %v5396 = vand.u32 %v672, 4294901760
        %v5397 = vsub.f32 %v672, %v5396
        %5398 = vmatprep.subr.mxu0 %v5397
        %v5399 = vand.u32 %v671, 4294901760
        %v5400 = vsub.f32 %v671, %v5399
        %5401 = vmatpush1.msra.mxu0 %v5400
        %v5402 = vand.u32 %v660, 4294901760
        %v5403 = vsub.f32 %v660, %v5402
        %5404 = vmatprep.subr.mxu0 %v5403
        %v5405 = vand.u32 %v659, 4294901760
        %v5406 = vsub.f32 %v659, %v5405
        %5407 = vmatpush1.msra.mxu0 %v5406
        %v5408 = vand.u32 %v648, 4294901760
        %v5409 = vsub.f32 %v648, %v5408
        %5410 = vmatprep.subr.mxu0 %v5409
        %v5411 = vand.u32 %v647, 4294901760
        %v5412 = vsub.f32 %v647, %v5411
        %5413 = vmatpush1.msra.mxu0 %v5412
        %v5414 = vand.u32 %v636, 4294901760
        %v5415 = vsub.f32 %v636, %v5414
        %5416 = vmatprep.subr.mxu0 %v5415
        %v5417 = vand.u32 %v635, 4294901760
        %v5418 = vsub.f32 %v635, %v5417
        %5419 = vmatpush1.msra.mxu0 %v5418
        %v5420 = vand.u32 %v624, 4294901760
        %v5421 = vsub.f32 %v624, %v5420
        %5422 = vmatprep.subr.mxu0 %v5421
        %v5423 = vand.u32 %v623, 4294901760
        %v5424 = vsub.f32 %v623, %v5423
        %5425 = vmatpush1.msra.mxu0 %v5424
        %v5426 = vand.u32 %v612, 4294901760
        %v5427 = vsub.f32 %v612, %v5426
        %5428 = vmatprep.subr.mxu0 %v5427
        %v5429 = vand.u32 %v611, 4294901760
        %v5430 = vsub.f32 %v611, %v5429
        %5431 = vmatpush1.msra.mxu0 %v5430
        %v5432 = vand.u32 %v600, 4294901760
        %v5433 = vsub.f32 %v600, %v5432
        %5434 = vmatprep.subr.mxu0 %v5433
        %v5435 = vand.u32 %v599, 4294901760
        %v5436 = vsub.f32 %v599, %v5435
        %5437 = vmatpush1.msra.mxu0 %v5436
        %v5438 = vand.u32 %v588, 4294901760
        %v5439 = vsub.f32 %v588, %v5438
        %5440 = vmatprep.subr.mxu0 %v5439
        %v5441 = vand.u32 %v587, 4294901760
        %v5442 = vsub.f32 %v587, %v5441
        %5443 = vmatpush1.msra.mxu0 %v5442
        %v5444 = vand.u32 %v576, 4294901760
        %v5445 = vsub.f32 %v576, %v5444
        %5446 = vmatprep.subr.mxu0 %v5445
        %v5447 = vand.u32 %v575, 4294901760
        %v5448 = vsub.f32 %v575, %v5447
        %5449 = vmatpush1.msra.mxu0 %v5448
        %v5450 = vand.u32 %v564, 4294901760
        %v5451 = vsub.f32 %v564, %v5450
        %5452 = vmatprep.subr.mxu0 %v5451
        %v5453 = vand.u32 %v563, 4294901760
        %v5454 = vsub.f32 %v563, %v5453
        %5455 = vmatpush1.msra.mxu0 %v5454
        %5456 = vmatprep.subr.mxu0 0.0
        %5457 = vmatpush2.msra.mxu0 0.0
        %5458 = vmatprep.subr.mxu0 0.0
        %5459 = vmatpush2.msra.mxu0 0.0
        %5460 = vmatprep.subr.mxu0 0.0
        %5461 = vmatpush2.msra.mxu0 0.0
        %5462 = vmatprep.subr.mxu0 0.0
        %5463 = vmatpush2.msra.mxu0 0.0
        %5464 = vmatprep.subr.mxu0 0.0
        %5465 = vmatpush2.msra.mxu0 0.0
        %5466 = vmatprep.subr.mxu0 0.0
        %5467 = vmatpush2.msra.mxu0 0.0
        %5468 = vmatprep.subr.mxu0 0.0
        %5469 = vmatpush2.msra.mxu0 0.0
        %5470 = vmatprep.subr.mxu0 0.0
        %5471 = vmatpush2.msra.mxu0 0.0
        %5472 = vmatprep.subr.mxu0 0.0
        %5473 = vmatpush2.msra.mxu0 0.0
        %5474 = vmatprep.subr.mxu0 0.0
        %5475 = vmatpush2.msra.mxu0 0.0
        %5476 = vmatprep.subr.mxu0 0.0
        %5477 = vmatpush2.msra.mxu0 0.0
        %5478 = vmatprep.subr.mxu0 0.0
        %5479 = vmatpush2.msra.mxu0 0.0
        %5480 = vmatprep.subr.mxu0 0.0
        %5481 = vmatpush2.msra.mxu0 0.0
        %5482 = vmatprep.subr.mxu0 0.0
        %5483 = vmatpush2.msra.mxu0 0.0
        %5484 = vmatprep.subr.mxu0 0.0
        %5485 = vmatpush2.msra.mxu0 0.0
        %5486 = vmatprep.subr.mxu0 0.0
        %5487 = vmatpush2.msra.mxu0 0.0
        %5488 = vmatprep.mubr.f32.mxu0 0.0
        %v5489 = vand.u32 %v552, 4294901760
        %v5490 = vsub.f32 %v552, %v5489
        %5491 = vmatmul.mubr.f32.gmra.mxu0 %v5490
        %v5492 = vpop.f32.mrf.mxu0
        %v5493 = vadd.f32 %v5356, %v5492
        %v5494 = vpop.f32.mrf.mxu0
        %v5495 = vadd.f32 %v5358, %v5494
        %5496 = vdwg.mxu0
        %v5497 = vand.u32 %v744, 4294901760
        %5498 = vmatprep.subr.mxu0 %v5497
        %v5499 = vand.u32 %v743, 4294901760
        %5500 = vmatpush1.msra.mxu0 %v5499
        %v5501 = vand.u32 %v732, 4294901760
        %5502 = vmatprep.subr.mxu0 %v5501
        %v5503 = vand.u32 %v731, 4294901760
        %5504 = vmatpush1.msra.mxu0 %v5503
        %v5505 = vand.u32 %v720, 4294901760
        %5506 = vmatprep.subr.mxu0 %v5505
        %v5507 = vand.u32 %v719, 4294901760
        %5508 = vmatpush1.msra.mxu0 %v5507
        %v5509 = vand.u32 %v708, 4294901760
        %5510 = vmatprep.subr.mxu0 %v5509
        %v5511 = vand.u32 %v707, 4294901760
        %5512 = vmatpush1.msra.mxu0 %v5511
        %v5513 = vand.u32 %v696, 4294901760
        %5514 = vmatprep.subr.mxu0 %v5513
        %v5515 = vand.u32 %v695, 4294901760
        %5516 = vmatpush1.msra.mxu0 %v5515
        %v5517 = vand.u32 %v684, 4294901760
        %5518 = vmatprep.subr.mxu0 %v5517
        %v5519 = vand.u32 %v683, 4294901760
        %5520 = vmatpush1.msra.mxu0 %v5519
        %v5521 = vand.u32 %v672, 4294901760
        %5522 = vmatprep.subr.mxu0 %v5521
        %v5523 = vand.u32 %v671, 4294901760
        %5524 = vmatpush1.msra.mxu0 %v5523
        %v5525 = vand.u32 %v660, 4294901760
        %5526 = vmatprep.subr.mxu0 %v5525
        %v5527 = vand.u32 %v659, 4294901760
        %5528 = vmatpush1.msra.mxu0 %v5527
        %v5529 = vand.u32 %v648, 4294901760
        %5530 = vmatprep.subr.mxu0 %v5529
        %v5531 = vand.u32 %v647, 4294901760
        %5532 = vmatpush1.msra.mxu0 %v5531
        %v5533 = vand.u32 %v636, 4294901760
        %5534 = vmatprep.subr.mxu0 %v5533
        %v5535 = vand.u32 %v635, 4294901760
        %5536 = vmatpush1.msra.mxu0 %v5535
        %v5537 = vand.u32 %v624, 4294901760
        %5538 = vmatprep.subr.mxu0 %v5537
        %v5539 = vand.u32 %v623, 4294901760
        %5540 = vmatpush1.msra.mxu0 %v5539
        %v5541 = vand.u32 %v612, 4294901760
        %5542 = vmatprep.subr.mxu0 %v5541
        %v5543 = vand.u32 %v611, 4294901760
        %5544 = vmatpush1.msra.mxu0 %v5543
        %v5545 = vand.u32 %v600, 4294901760
        %5546 = vmatprep.subr.mxu0 %v5545
        %v5547 = vand.u32 %v599, 4294901760
        %5548 = vmatpush1.msra.mxu0 %v5547
        %v5549 = vand.u32 %v588, 4294901760
        %5550 = vmatprep.subr.mxu0 %v5549
        %v5551 = vand.u32 %v587, 4294901760
        %5552 = vmatpush1.msra.mxu0 %v5551
        %v5553 = vand.u32 %v576, 4294901760
        %5554 = vmatprep.subr.mxu0 %v5553
        %v5555 = vand.u32 %v575, 4294901760
        %5556 = vmatpush1.msra.mxu0 %v5555
        %v5557 = vand.u32 %v564, 4294901760
        %5558 = vmatprep.subr.mxu0 %v5557
        %v5559 = vand.u32 %v563, 4294901760
        %5560 = vmatpush1.msra.mxu0 %v5559
        %5561 = vmatprep.subr.mxu0 0.0
        %5562 = vmatpush2.msra.mxu0 0.0
        %5563 = vmatprep.subr.mxu0 0.0
        %5564 = vmatpush2.msra.mxu0 0.0
        %5565 = vmatprep.subr.mxu0 0.0
        %5566 = vmatpush2.msra.mxu0 0.0
        %5567 = vmatprep.subr.mxu0 0.0
        %5568 = vmatpush2.msra.mxu0 0.0
        %5569 = vmatprep.subr.mxu0 0.0
        %5570 = vmatpush2.msra.mxu0 0.0
        %5571 = vmatprep.subr.mxu0 0.0
        %5572 = vmatpush2.msra.mxu0 0.0
        %5573 = vmatprep.subr.mxu0 0.0
        %5574 = vmatpush2.msra.mxu0 0.0
        %5575 = vmatprep.subr.mxu0 0.0
        %5576 = vmatpush2.msra.mxu0 0.0
        %5577 = vmatprep.subr.mxu0 0.0
        %5578 = vmatpush2.msra.mxu0 0.0
        %5579 = vmatprep.subr.mxu0 0.0
        %5580 = vmatpush2.msra.mxu0 0.0
        %5581 = vmatprep.subr.mxu0 0.0
        %5582 = vmatpush2.msra.mxu0 0.0
        %5583 = vmatprep.subr.mxu0 0.0
        %5584 = vmatpush2.msra.mxu0 0.0
        %5585 = vmatprep.subr.mxu0 0.0
        %5586 = vmatpush2.msra.mxu0 0.0
        %5587 = vmatprep.subr.mxu0 0.0
        %5588 = vmatpush2.msra.mxu0 0.0
        %5589 = vmatprep.subr.mxu0 0.0
        %5590 = vmatpush2.msra.mxu0 0.0
        %5591 = vmatprep.subr.mxu0 0.0
        %5592 = vmatpush2.msra.mxu0 0.0
        %5593 = vmatprep.mubr.f32.mxu0 0.0
        %v5594 = vand.u32 %v552, 4294901760
        %v5595 = vsub.f32 %v552, %v5594
        %v5596 = vand.u32 %v5595, 4294901760
        %5597 = vmatmul.mubr.f32.gmra.mxu0 %v5596
        %v5598 = vpop.f32.mrf.mxu0
        %v5599 = vadd.f32 %v5493, %v5598
        %v5600 = vpop.f32.mrf.mxu0
        %v5601 = vadd.f32 %v5495, %v5600
        %5602 = vdwg.mxu0
        %v5603 = vand.u32 %v744, 4294901760
        %v5604 = vsub.f32 %v744, %v5603
        %v5605 = vand.u32 %v5604, 4294901760
        %5606 = vmatprep.subr.mxu0 %v5605
        %v5607 = vand.u32 %v743, 4294901760
        %v5608 = vsub.f32 %v743, %v5607
        %v5609 = vand.u32 %v5608, 4294901760
        %5610 = vmatpush1.msra.mxu0 %v5609
        %v5611 = vand.u32 %v732, 4294901760
        %v5612 = vsub.f32 %v732, %v5611
        %v5613 = vand.u32 %v5612, 4294901760
        %5614 = vmatprep.subr.mxu0 %v5613
        %v5615 = vand.u32 %v731, 4294901760
        %v5616 = vsub.f32 %v731, %v5615
        %v5617 = vand.u32 %v5616, 4294901760
        %5618 = vmatpush1.msra.mxu0 %v5617
        %v5619 = vand.u32 %v720, 4294901760
        %v5620 = vsub.f32 %v720, %v5619
        %v5621 = vand.u32 %v5620, 4294901760
        %5622 = vmatprep.subr.mxu0 %v5621
        %v5623 = vand.u32 %v719, 4294901760
        %v5624 = vsub.f32 %v719, %v5623
        %v5625 = vand.u32 %v5624, 4294901760
        %5626 = vmatpush1.msra.mxu0 %v5625
        %v5627 = vand.u32 %v708, 4294901760
        %v5628 = vsub.f32 %v708, %v5627
        %v5629 = vand.u32 %v5628, 4294901760
        %5630 = vmatprep.subr.mxu0 %v5629
        %v5631 = vand.u32 %v707, 4294901760
        %v5632 = vsub.f32 %v707, %v5631
        %v5633 = vand.u32 %v5632, 4294901760
        %5634 = vmatpush1.msra.mxu0 %v5633
        %v5635 = vand.u32 %v696, 4294901760
        %v5636 = vsub.f32 %v696, %v5635
        %v5637 = vand.u32 %v5636, 4294901760
        %5638 = vmatprep.subr.mxu0 %v5637
        %v5639 = vand.u32 %v695, 4294901760
        %v5640 = vsub.f32 %v695, %v5639
        %v5641 = vand.u32 %v5640, 4294901760
        %5642 = vmatpush1.msra.mxu0 %v5641
        %v5643 = vand.u32 %v684, 4294901760
        %v5644 = vsub.f32 %v684, %v5643
        %v5645 = vand.u32 %v5644, 4294901760
        %5646 = vmatprep.subr.mxu0 %v5645
        %v5647 = vand.u32 %v683, 4294901760
        %v5648 = vsub.f32 %v683, %v5647
        %v5649 = vand.u32 %v5648, 4294901760
        %5650 = vmatpush1.msra.mxu0 %v5649
        %v5651 = vand.u32 %v672, 4294901760
        %v5652 = vsub.f32 %v672, %v5651
        %v5653 = vand.u32 %v5652, 4294901760
        %5654 = vmatprep.subr.mxu0 %v5653
        %v5655 = vand.u32 %v671, 4294901760
        %v5656 = vsub.f32 %v671, %v5655
        %v5657 = vand.u32 %v5656, 4294901760
        %5658 = vmatpush1.msra.mxu0 %v5657
        %v5659 = vand.u32 %v660, 4294901760
        %v5660 = vsub.f32 %v660, %v5659
        %v5661 = vand.u32 %v5660, 4294901760
        %5662 = vmatprep.subr.mxu0 %v5661
        %v5663 = vand.u32 %v659, 4294901760
        %v5664 = vsub.f32 %v659, %v5663
        %v5665 = vand.u32 %v5664, 4294901760
        %5666 = vmatpush1.msra.mxu0 %v5665
        %v5667 = vand.u32 %v648, 4294901760
        %v5668 = vsub.f32 %v648, %v5667
        %v5669 = vand.u32 %v5668, 4294901760
        %5670 = vmatprep.subr.mxu0 %v5669
        %v5671 = vand.u32 %v647, 4294901760
        %v5672 = vsub.f32 %v647, %v5671
        %v5673 = vand.u32 %v5672, 4294901760
        %5674 = vmatpush1.msra.mxu0 %v5673
        %v5675 = vand.u32 %v636, 4294901760
        %v5676 = vsub.f32 %v636, %v5675
        %v5677 = vand.u32 %v5676, 4294901760
        %5678 = vmatprep.subr.mxu0 %v5677
        %v5679 = vand.u32 %v635, 4294901760
        %v5680 = vsub.f32 %v635, %v5679
        %v5681 = vand.u32 %v5680, 4294901760
        %5682 = vmatpush1.msra.mxu0 %v5681
        %v5683 = vand.u32 %v624, 4294901760
        %v5684 = vsub.f32 %v624, %v5683
        %v5685 = vand.u32 %v5684, 4294901760
        %5686 = vmatprep.subr.mxu0 %v5685
        %v5687 = vand.u32 %v623, 4294901760
        %v5688 = vsub.f32 %v623, %v5687
        %v5689 = vand.u32 %v5688, 4294901760
        %5690 = vmatpush1.msra.mxu0 %v5689
        %v5691 = vand.u32 %v612, 4294901760
        %v5692 = vsub.f32 %v612, %v5691
        %v5693 = vand.u32 %v5692, 4294901760
        %5694 = vmatprep.subr.mxu0 %v5693
        %v5695 = vand.u32 %v611, 4294901760
        %v5696 = vsub.f32 %v611, %v5695
        %v5697 = vand.u32 %v5696, 4294901760
        %5698 = vmatpush1.msra.mxu0 %v5697
        %v5699 = vand.u32 %v600, 4294901760
        %v5700 = vsub.f32 %v600, %v5699
        %v5701 = vand.u32 %v5700, 4294901760
        %5702 = vmatprep.subr.mxu0 %v5701
        %v5703 = vand.u32 %v599, 4294901760
        %v5704 = vsub.f32 %v599, %v5703
        %v5705 = vand.u32 %v5704, 4294901760
        %5706 = vmatpush1.msra.mxu0 %v5705
        %v5707 = vand.u32 %v588, 4294901760
        %v5708 = vsub.f32 %v588, %v5707
        %v5709 = vand.u32 %v5708, 4294901760
        %5710 = vmatprep.subr.mxu0 %v5709
        %v5711 = vand.u32 %v587, 4294901760
        %v5712 = vsub.f32 %v587, %v5711
        %v5713 = vand.u32 %v5712, 4294901760
        %5714 = vmatpush1.msra.mxu0 %v5713
        %v5715 = vand.u32 %v576, 4294901760
        %v5716 = vsub.f32 %v576, %v5715
        %v5717 = vand.u32 %v5716, 4294901760
        %5718 = vmatprep.subr.mxu0 %v5717
        %v5719 = vand.u32 %v575, 4294901760
        %v5720 = vsub.f32 %v575, %v5719
        %v5721 = vand.u32 %v5720, 4294901760
        %5722 = vmatpush1.msra.mxu0 %v5721
        %v5723 = vand.u32 %v564, 4294901760
        %v5724 = vsub.f32 %v564, %v5723
        %v5725 = vand.u32 %v5724, 4294901760
        %5726 = vmatprep.subr.mxu0 %v5725
        %v5727 = vand.u32 %v563, 4294901760
        %v5728 = vsub.f32 %v563, %v5727
        %v5729 = vand.u32 %v5728, 4294901760
        %5730 = vmatpush1.msra.mxu0 %v5729
        %5731 = vmatprep.subr.mxu0 0.0
        %5732 = vmatpush2.msra.mxu0 0.0
        %5733 = vmatprep.subr.mxu0 0.0
        %5734 = vmatpush2.msra.mxu0 0.0
        %5735 = vmatprep.subr.mxu0 0.0
        %5736 = vmatpush2.msra.mxu0 0.0
        %5737 = vmatprep.subr.mxu0 0.0
        %5738 = vmatpush2.msra.mxu0 0.0
        %5739 = vmatprep.subr.mxu0 0.0
        %5740 = vmatpush2.msra.mxu0 0.0
        %5741 = vmatprep.subr.mxu0 0.0
        %5742 = vmatpush2.msra.mxu0 0.0
        %5743 = vmatprep.subr.mxu0 0.0
        %5744 = vmatpush2.msra.mxu0 0.0
        %5745 = vmatprep.subr.mxu0 0.0
        %5746 = vmatpush2.msra.mxu0 0.0
        %5747 = vmatprep.subr.mxu0 0.0
        %5748 = vmatpush2.msra.mxu0 0.0
        %5749 = vmatprep.subr.mxu0 0.0
        %5750 = vmatpush2.msra.mxu0 0.0
        %5751 = vmatprep.subr.mxu0 0.0
        %5752 = vmatpush2.msra.mxu0 0.0
        %5753 = vmatprep.subr.mxu0 0.0
        %5754 = vmatpush2.msra.mxu0 0.0
        %5755 = vmatprep.subr.mxu0 0.0
        %5756 = vmatpush2.msra.mxu0 0.0
        %5757 = vmatprep.subr.mxu0 0.0
        %5758 = vmatpush2.msra.mxu0 0.0
        %5759 = vmatprep.subr.mxu0 0.0
        %5760 = vmatpush2.msra.mxu0 0.0
        %5761 = vmatprep.subr.mxu0 0.0
        %5762 = vmatpush2.msra.mxu0 0.0
        %5763 = vmatprep.mubr.f32.mxu0 0.0
        %v5764 = vand.u32 %v552, 4294901760
        %5765 = vmatmul.mubr.f32.gmra.mxu0 %v5764
        %v5766 = vpop.f32.mrf.mxu0
        %v5767 = vadd.f32 %v5599, %v5766
        %v5768 = vpop.f32.mrf.mxu0
        %v5769 = vadd.f32 %v5601, %v5768
        %5770 = vdwg.mxu0
        %v5771 = vand.u32 %v744, 4294901760
        %5772 = vmatprep.subr.mxu0 %v5771
        %v5773 = vand.u32 %v743, 4294901760
        %5774 = vmatpush1.msra.mxu0 %v5773
        %v5775 = vand.u32 %v732, 4294901760
        %5776 = vmatprep.subr.mxu0 %v5775
        %v5777 = vand.u32 %v731, 4294901760
        %5778 = vmatpush1.msra.mxu0 %v5777
        %v5779 = vand.u32 %v720, 4294901760
        %5780 = vmatprep.subr.mxu0 %v5779
        %v5781 = vand.u32 %v719, 4294901760
        %5782 = vmatpush1.msra.mxu0 %v5781
        %v5783 = vand.u32 %v708, 4294901760
        %5784 = vmatprep.subr.mxu0 %v5783
        %v5785 = vand.u32 %v707, 4294901760
        %5786 = vmatpush1.msra.mxu0 %v5785
        %v5787 = vand.u32 %v696, 4294901760
        %5788 = vmatprep.subr.mxu0 %v5787
        %v5789 = vand.u32 %v695, 4294901760
        %5790 = vmatpush1.msra.mxu0 %v5789
        %v5791 = vand.u32 %v684, 4294901760
        %5792 = vmatprep.subr.mxu0 %v5791
        %v5793 = vand.u32 %v683, 4294901760
        %5794 = vmatpush1.msra.mxu0 %v5793
        %v5795 = vand.u32 %v672, 4294901760
        %5796 = vmatprep.subr.mxu0 %v5795
        %v5797 = vand.u32 %v671, 4294901760
        %5798 = vmatpush1.msra.mxu0 %v5797
        %v5799 = vand.u32 %v660, 4294901760
        %5800 = vmatprep.subr.mxu0 %v5799
        %v5801 = vand.u32 %v659, 4294901760
        %5802 = vmatpush1.msra.mxu0 %v5801
        %v5803 = vand.u32 %v648, 4294901760
        %5804 = vmatprep.subr.mxu0 %v5803
        %v5805 = vand.u32 %v647, 4294901760
        %5806 = vmatpush1.msra.mxu0 %v5805
        %v5807 = vand.u32 %v636, 4294901760
        %5808 = vmatprep.subr.mxu0 %v5807
        %v5809 = vand.u32 %v635, 4294901760
        %5810 = vmatpush1.msra.mxu0 %v5809
        %v5811 = vand.u32 %v624, 4294901760
        %5812 = vmatprep.subr.mxu0 %v5811
        %v5813 = vand.u32 %v623, 4294901760
        %5814 = vmatpush1.msra.mxu0 %v5813
        %v5815 = vand.u32 %v612, 4294901760
        %5816 = vmatprep.subr.mxu0 %v5815
        %v5817 = vand.u32 %v611, 4294901760
        %5818 = vmatpush1.msra.mxu0 %v5817
        %v5819 = vand.u32 %v600, 4294901760
        %5820 = vmatprep.subr.mxu0 %v5819
        %v5821 = vand.u32 %v599, 4294901760
        %5822 = vmatpush1.msra.mxu0 %v5821
        %v5823 = vand.u32 %v588, 4294901760
        %5824 = vmatprep.subr.mxu0 %v5823
        %v5825 = vand.u32 %v587, 4294901760
        %5826 = vmatpush1.msra.mxu0 %v5825
        %v5827 = vand.u32 %v576, 4294901760
        %5828 = vmatprep.subr.mxu0 %v5827
        %v5829 = vand.u32 %v575, 4294901760
        %5830 = vmatpush1.msra.mxu0 %v5829
        %v5831 = vand.u32 %v564, 4294901760
        %5832 = vmatprep.subr.mxu0 %v5831
        %v5833 = vand.u32 %v563, 4294901760
        %5834 = vmatpush1.msra.mxu0 %v5833
        %5835 = vmatprep.subr.mxu0 0.0
        %5836 = vmatpush2.msra.mxu0 0.0
        %5837 = vmatprep.subr.mxu0 0.0
        %5838 = vmatpush2.msra.mxu0 0.0
        %5839 = vmatprep.subr.mxu0 0.0
        %5840 = vmatpush2.msra.mxu0 0.0
        %5841 = vmatprep.subr.mxu0 0.0
        %5842 = vmatpush2.msra.mxu0 0.0
        %5843 = vmatprep.subr.mxu0 0.0
        %5844 = vmatpush2.msra.mxu0 0.0
        %5845 = vmatprep.subr.mxu0 0.0
        %5846 = vmatpush2.msra.mxu0 0.0
        %5847 = vmatprep.subr.mxu0 0.0
        %5848 = vmatpush2.msra.mxu0 0.0
        %5849 = vmatprep.subr.mxu0 0.0
        %5850 = vmatpush2.msra.mxu0 0.0
        %5851 = vmatprep.subr.mxu0 0.0
        %5852 = vmatpush2.msra.mxu0 0.0
        %5853 = vmatprep.subr.mxu0 0.0
        %5854 = vmatpush2.msra.mxu0 0.0
        %5855 = vmatprep.subr.mxu0 0.0
        %5856 = vmatpush2.msra.mxu0 0.0
        %5857 = vmatprep.subr.mxu0 0.0
        %5858 = vmatpush2.msra.mxu0 0.0
        %5859 = vmatprep.subr.mxu0 0.0
        %5860 = vmatpush2.msra.mxu0 0.0
        %5861 = vmatprep.subr.mxu0 0.0
        %5862 = vmatpush2.msra.mxu0 0.0
        %5863 = vmatprep.subr.mxu0 0.0
        %5864 = vmatpush2.msra.mxu0 0.0
        %5865 = vmatprep.subr.mxu0 0.0
        %5866 = vmatpush2.msra.mxu0 0.0
        %5867 = vmatprep.mubr.f32.mxu0 0.0
        %v5868 = vand.u32 %v552, 4294901760
        %5869 = vmatmul.mubr.f32.gmra.mxu0 %v5868
        %v5870 = vpop.f32.mrf.mxu0
        %v5871 = vadd.f32 %v5767, %v5870
        %v5872 = vpop.f32.mrf.mxu0
        %v5873 = vadd.f32 %v5769, %v5872
        %5874 = vdwg.mxu0
        %5875 = vst [vmem:[%s154] sm:$0xff] %v1596
        %5876 = vst [vmem:[%s154 + $0x8] sm:$0xff] %v1598
        %5877 = vst [vmem:[%s154 + $0x10] sm:$0xff] %v2451
        %5878 = vst [vmem:[%s154 + $0x18] sm:$0xff] %v2453
        %5879 = vst [vmem:[%s154 + $0x20] sm:$0xff] %v3306
        %5880 = vst [vmem:[%s154 + $0x28] sm:$0xff] %v3308
        %5881 = vst [vmem:[%s154 + $0x30] sm:$0xff] %v4161
        %5882 = vst [vmem:[%s154 + $0x38] sm:$0xff] %v4163
        %5883 = vst [vmem:[%s154 + $0x40] sm:$0xff] %v5016
        %5884 = vst [vmem:[%s154 + $0x48] sm:$0xff] %v5018
        %5885 = vst [vmem:[%s154 + $0x50] sm:$0xff] %v5871
        %5886 = vst [vmem:[%s154 + $0x58] sm:$0xff] %v5873
        %s5887 = sand.u32 %s73, 1
        %s5888 = scalar_lea.sflag [#allocation7], %s5887
        %s5889 = sand.u32 %s73, 1
        %s5890 = smul.addr %s5889, 96
        %s5891 = scalar_lea.vmem [#allocation10], %s5890
        // Predicated region
        $region37: #{tpu_custom_call.1} parent=27 // pred_check
          %p5892 = pneg %p83
        $region38: #{tpu_custom_call.1} parent=27 // pred_check_branch
          %5894 = sbr.rel (%p5892) target = $region40
        $region39: #{tpu_custom_call.1} parent=27 // pred_region
          %s5896 = ssub.s32 1536, 1536
          %5897 = vsyncadd %s5888, %s5896
          %s5898 = smul.addr %s23, 12
          %s5899 = smul.addr %s5898, 128
          %s5900 = scalar_lea.hbm %s3, %s5899
          %s5902 = sshll.u32 %s5891, 4
          %s5903 = int_to_ptr.vmem [resolvable:$true] %s5902
          %5905 = dma.vmem_to_hbm [thread:$0]  %s5903, 1536, %s5900, %s5888
        $region40: #{tpu_custom_call.1} parent=27 // pred_fallthru
          _
      $region28: #{tpu_custom_call.1} parent=5 // pred_fallthru
        _
      %p5906 = scmp.le.s32.totalorder 2, %s18
      // Predicated region
      $region41: #{tpu_custom_call.1} parent=5 // pred_check
        %p5907 = pneg %p5906
      $region42: #{tpu_custom_call.1} parent=5 // pred_check_branch
        %5909 = sbr.rel (%p5907) target = $region44
      $region43: #{tpu_custom_call.1} parent=5 // pred_region
        %s5910 = ssub.s32 %s18, 2
        // Predicated region
        $region45: #{tpu_custom_call.1} parent=43 // pred_check
          %p5911 = pneg %p89
        $region46: #{tpu_custom_call.1} parent=43 // pred_check_branch
          %5913 = sbr.rel (%p5911) target = $region48
        $region47: #{tpu_custom_call.1} parent=43 // pred_region
          %s5914 = sand.u32 %s74, 1
          %s5915 = scalar_lea.sflag [#allocation7], %s5914
          %s5916 = sand.u32 %s74, 1
          %s5917 = smul.addr %s5916, 96
          %s5918 = scalar_lea.vmem [#allocation10], %s5917
          %5919 = dma.done %s5915, 1536
        $region48: #{tpu_custom_call.1} parent=43 // pred_fallthru
          _
      $region44: #{tpu_custom_call.1} parent=5 // pred_fallthru
        _
    $region6: #{tpu_custom_call.1} parent=1 // loop_footer
      %s22 = sadd.s32 1, %s18
    $region7: #{tpu_custom_call.1} parent=1 // loop_footer_branch
      %17 = sbr.rel target = $region3
    $region8: #{tpu_custom_call.1} parent=1 // loop_exit
      _
    %5920 = vsyncpa [#allocation6], 1
    %s5921 = scalar_lea.sflag [#allocation6], 1
    %5922 = vsyncpa %s5921, 1
    %5923 = vsyncpa [#allocation9], 1
    %5924 = vsyncpa [#allocation7], 1
    %s5925 = scalar_lea.sflag [#allocation7], 1
    %5926 = vsyncpa %s5925, 1

</llo_original>
